<compile_context>
chip_gen: v5e
topology: v5e:2x2
jax: 0.10.0
libtpu: 0.0.40
codegen_flags: <defaults>
</compile_context>

<pallas_src>
import functools

import jax
import jax.numpy as jnp
from jax.experimental import pallas as pl
from jax.experimental.pallas import tpu as pltpu

EPS = 1e-5  # nn.BatchNorm2d default eps


def _vmem():
    return pl.BlockSpec(memory_space=pltpu.MemorySpace.VMEM)


# ----------------------------- Pallas kernels ------------------------------ #

def _gemm_bn_relu_kernel(nslab, cdim, x_ref, w_ref, g_ref, b_ref, o_ref):
    """out = relu(BN(x @ w)).

    x: (R, K) bf16, w: (K, nslab*cdim) bf16, g/b: (1, cdim) f32, o: (R, nslab*cdim) bf16.
    Column layout is slab-major: col = slab*cdim + channel.  BatchNorm statistics for a
    channel pool over all rows AND all slabs, i.e. over the full N*H*W conv-output extent.
    (slabs = 16 spatial positions for layer1, 4 sub-pixel phases for layers 2/3.)
    """
    acc = jnp.dot(x_ref[...], w_ref[...], preferred_element_type=jnp.float32)
    colsum = jnp.sum(acc, axis=0, keepdims=True)          # (1, nslab*cdim)
    colsq = jnp.sum(acc * acc, axis=0, keepdims=True)
    s = colsum[:, :cdim]
    ss = colsq[:, :cdim]
    for p in range(1, nslab):
        s = s + colsum[:, p * cdim:(p + 1) * cdim]
        ss = ss + colsq[:, p * cdim:(p + 1) * cdim]
    count = float(nslab * acc.shape[0])                   # static N*H*W
    mean = s / count
    var = jnp.maximum(ss / count - mean * mean, 0.0)      # biased var (train mode)
    scale = g_ref[...] * jax.lax.rsqrt(var + EPS)         # (1, cdim)
    shift = b_ref[...] - mean * scale
    scale_f = jnp.concatenate([scale] * nslab, axis=1)    # tile back to (1, nslab*cdim)
    shift_f = jnp.concatenate([shift] * nslab, axis=1)
    o_ref[...] = jnp.maximum(acc * scale_f + shift_f, 0.0).astype(o_ref.dtype)


def _gemm_bias_tanh_kernel(w_ref, b_ref, p_ref, o_ref):
    # w: (4, K) bf16, b: (1, 1) f32, p: (K, TR) bf16, o: (4, TR) f32
    acc = jnp.dot(w_ref[...], p_ref[...], preferred_element_type=jnp.float32)
    o_ref[...] = jnp.tanh(acc + b_ref[...])


# ------------------------------ kernel wrappers ----------------------------- #

def gemm_bn_relu(x, w, gamma, beta, *, nslab, cdim):
    rows = x.shape[0]
    cols = w.shape[1]
    kern = functools.partial(_gemm_bn_relu_kernel, nslab, cdim)
    return pl.pallas_call(
        kern,
        out_shape=jax.ShapeDtypeStruct((rows, cols), jnp.bfloat16),
        in_specs=[_vmem()] * 4,
        out_specs=_vmem(),
    )(x, w, gamma, beta)


def gemm_bias_tanh(w_t, bias, p_t, *, tile=256):
    nrow, k = w_t.shape
    _, r = p_t.shape
    assert r % tile == 0, (r, tile)
    return pl.pallas_call(
        _gemm_bias_tanh_kernel,
        out_shape=jax.ShapeDtypeStruct((nrow, r), jnp.float32),
        grid=(r // tile,),
        in_specs=[
            pl.BlockSpec((nrow, k), lambda i: (0, 0)),   # weight: resident
            pl.BlockSpec((1, 1), lambda i: (0, 0)),      # bias:   resident
            pl.BlockSpec((k, tile), lambda i: (0, i)),   # patches: tiled over columns
        ],
        out_specs=pl.BlockSpec((nrow, tile), lambda i: (0, i)),
        compiler_params=pltpu.CompilerParams(dimension_semantics=("parallel",)),
    )(w_t, bias, p_t)


# ------------------------------ glue (no FLOPs) ----------------------------- #

def _build_patches_3x3(x):
    """x: (N, H, W, C) -> (N*H*W, 9*C) im2col of the 3x3 input neighborhood."""
    n, h, w, c = x.shape
    xp = jnp.pad(x, ((0, 0), (1, 1), (1, 1), (0, 0)))
    cols = [xp[:, di:di + h, dj:dj + w, :] for di in range(3) for dj in range(3)]
    p = jnp.stack(cols, axis=3)                       # (N, H, W, 9, C)
    return p.reshape(n * h * w, 9 * c)


def _build_patches_3x3_T(x):
    """x: (N, H, W, C) -> (9*C, N*H*W) transposed im2col (lane-dense GEMM RHS)."""
    n, h, w, c = x.shape
    xp = jnp.pad(x, ((0, 0), (1, 1), (1, 1), (0, 0)))
    cols = [xp[:, di:di + h, dj:dj + w, :] for di in range(3) for dj in range(3)]
    p = jnp.stack(cols, axis=0)                       # (9, N, H, W, C)
    p = jnp.transpose(p, (0, 4, 1, 2, 3))             # (9, C, N, H, W)
    return p.reshape(9 * c, n * h * w)


def _pixel_shuffle(y2d, n, h, w, c):
    """y2d: (N*H*W, 4*C) with col = (ph*2+pw)*C + c  ->  (N, 2H, 2W, C) NHWC."""
    y = y2d.reshape(n, h, w, 2, 2, c)
    y = jnp.transpose(y, (0, 1, 3, 2, 4, 5))          # (N, H, ph, W, pw, C)
    return y.reshape(n, 2 * h, 2 * w, c)


def _make_layer1_weight(w1_1, w1_2, d):
    """Fused block-diagonal weight for the two 1x1-input deconvs.

    Returns (128, 16*4d).  K rows = [100 noise | 10 label | 18 zero pad];
    column = (h*4 + w)*(4d) + channel, channels = [2d branch1 | 2d branch2]
    (matches torch.cat([x, y], dim=1)).
    """
    c2 = 2 * d
    wa = jnp.transpose(w1_1, (0, 2, 3, 1))                      # (100, 4, 4, 2d)
    wb = jnp.transpose(w1_2, (0, 2, 3, 1))                      # (10, 4, 4, 2d)
    top = jnp.concatenate([wa, jnp.zeros((100, 4, 4, c2), jnp.float32)], axis=-1)
    bot = jnp.concatenate([jnp.zeros((10, 4, 4, c2), jnp.float32), wb], axis=-1)
    pad = jnp.zeros((18, 4, 4, 2 * c2), jnp.float32)
    wf = jnp.concatenate([top, bot, pad], axis=0)               # (128, 4, 4, 4d)
    return wf.reshape(128, 16 * 2 * c2)


def _make_subpixel_weight(w):
    """ConvTranspose2d(k=4, s=2, p=1) weight (Cin, Cout, 4, 4) -> (9*Cin, 4*Cout).

    Sub-pixel decomposition: output pixel (2m+ph, 2n+pw) is a stride-1 3x3 conv of the
    input at (m, n) with taps W[:, :, ph+3-2*di, pw+3-2*dj] (indices outside [0,4) are
    structurally zero).  Row = (di*3+dj)*Cin + ci, column = (ph*2+pw)*Cout + co.
    """
    cin, cout = w.shape[0], w.shape[1]
    wc = jnp.zeros((3, 3, 2, 2, cin, cout), jnp.float32)
    for di in range(3):
        for dj in range(3):
            for ph in range(2):
                for pw in range(2):
                    kh = ph + 3 - 2 * di
                    kw = pw + 3 - 2 * dj
                    if 0 <= kh < 4 and 0 <= kw < 4:
                        wc = wc.at[di, dj, ph, pw].set(w[:, :, kh, kw])
    wc = jnp.transpose(wc, (0, 1, 4, 2, 3, 5))                  # (3,3,Cin,2,2,Cout)
    return wc.reshape(9 * cin, 4 * cout)


# ------------------------------- forward pass ------------------------------- #

def _generator_forward(params, noise_nchw, label_nchw, *, d):
    n = noise_nchw.shape[0]

    # layer 1: both 1x1-input deconvs fused into one GEMM (+BN+ReLU), K padded to 128
    z = jnp.concatenate(
        [noise_nchw.reshape(n, 100).astype(jnp.float32),
         label_nchw.reshape(n, 10).astype(jnp.float32),
         jnp.zeros((n, 18), jnp.float32)], axis=1).astype(jnp.bfloat16)
    y = gemm_bn_relu(z, params["w1"], params["g1"], params["b1"],
                     nslab=16, cdim=4 * d)                       # (N, 16*4d)
    x = y.reshape(n, 4, 4, 4 * d)                                # NHWC, concat already done

    # layer 2: 4x4/s2/p1 deconv + BN + ReLU via sub-pixel GEMM  -> (N, 8, 8, 2d)
    p = _build_patches_3x3(x)                                    # (N*16, 9*4d) bf16
    y = gemm_bn_relu(p, params["w2"], params["g2"], params["b2"],
                     nslab=4, cdim=2 * d)                        # (N*16, 4*2d)
    x = _pixel_shuffle(y, n, 4, 4, 2 * d)

    # layer 3 -> (N, 16, 16, d)
    p = _build_patches_3x3(x)                                    # (N*64, 9*2d)
    y = gemm_bn_relu(p, params["w3"], params["g3"], params["b3"],
                     nslab=4, cdim=d)                            # (N*64, 4*d)
    x = _pixel_shuffle(y, n, 8, 8, d)

    # layer 4: deconv + bias + tanh, transposed GEMM (lane-dense output, row-tiled grid)
    pt = _build_patches_3x3_T(x)                                 # (9*d, N*256) bf16
    y = gemm_bias_tanh(params["w4t"], params["b4"], pt)          # (4, N*256) f32
    img = y.reshape(2, 2, n, 16, 16)
    img = jnp.transpose(img, (2, 3, 0, 4, 1)).reshape(n, 32, 32)
    return img[:, None, :, :]                                    # NCHW (N, 1, 32, 32)


# ------------------------------- the module -------------------------------- #

class PallasGenerator:
    """JAX/Pallas port of Generator(d) with weight_init(mean=0.0, std=0.02) applied."""

    def __init__(self, d=32, key=jax.random.PRNGKey(0)):
        self.d = d
        ks = jax.random.split(key, 5)

        def conv_w(k, cin, cout):
            # PyTorch ConvTranspose2d weight layout (Cin, Cout, 4, 4), normal(0, 0.02)
            return 0.02 * jax.random.normal(k, (cin, cout, 4, 4), jnp.float32)

        w1_1 = conv_w(ks[0], 100, 2 * d)
        w1_2 = conv_w(ks[1], 10, 2 * d)
        w2 = conv_w(ks[2], 4 * d, 2 * d)
        w3 = conv_w(ks[3], 2 * d, d)
        w4 = conv_w(ks[4], d, 1)
        b4 = jnp.zeros((1,), jnp.float32)   # ConvTranspose2d bias (zero-init)

        ones = lambda c: jnp.ones((1, c), jnp.float32)
        zeros = lambda c: jnp.zeros((1, c), jnp.float32)

        # NOTE: biases of deconv1_1 / deconv1_2 / deconv2 / deconv3 are dropped: a
        # per-channel constant added before BatchNorm is exactly cancelled by the
        # BN mean subtraction (they are zero-initialized anyway).
        # TODO(synk): BatchNorm running_mean/running_var state updates are not modeled;
        # normalization uses batch statistics, matching PyTorch train-mode forward().
        self.params = {
            "w1": _make_layer1_weight(w1_1, w1_2, d).astype(jnp.bfloat16),
            "g1": ones(4 * d), "b1": zeros(4 * d),          # [bn1_1 | bn1_2] channels
            "w2": _make_subpixel_weight(w2).astype(jnp.bfloat16),
            "g2": ones(2 * d), "b2": zeros(2 * d),
            "w3": _make_subpixel_weight(w3).astype(jnp.bfloat16),
            "g3": ones(d), "b3": zeros(d),
            "w4t": _make_subpixel_weight(w4).T.astype(jnp.bfloat16),   # (4, 9*d)
            "b4": b4.reshape(1, 1),
        }
        self._fwd = jax.jit(functools.partial(_generator_forward, d=d))

    def __call__(self, noise_nchw, label_nchw):
        return self._fwd(self.params, noise_nchw, label_nchw)


if __name__ == "__main__":
    key = jax.random.PRNGKey(0)
    k_in, k_lab, k_params = jax.random.split(key, 3)

    batch = 2
    noise = jax.random.normal(k_in, (batch, 100, 1, 1), jnp.float32)     # NCHW
    cls = jnp.arange(batch) % 10
    label = jax.nn.one_hot(cls, 10, dtype=jnp.float32).reshape(batch, 10, 1, 1)

    gen = PallasGenerator(d=32, key=k_params)
    out = gen(noise, label)
    out = jax.block_until_ready(out)

    assert out.shape == (batch, 1, 32, 32), out.shape
    assert bool(jnp.all(jnp.isfinite(out)))
    assert bool(jnp.all(jnp.abs(out) <= 1.0 + 1e-6))
    print("KERNEL_OK")
</pallas_src>

<mosaic_0001>
module attributes {stable_mosaic.version = 11 : i64} {
  func.func @_gemm_bn_relu_kernel(%arg0: memref<2x128xbf16, #tpu.memory_space<vmem>>, %arg1: memref<128x2048xbf16, #tpu.memory_space<vmem>>, %arg2: memref<1x128xf32, #tpu.memory_space<vmem>>, %arg3: memref<1x128xf32, #tpu.memory_space<vmem>>, %arg4: memref<2x2048xbf16, #tpu.memory_space<vmem>>) attributes {dimension_semantics = [], scalar_prefetch = 0 : i64, scratch_operands = 0 : i64, tpu.core_type = #tpu.core_type<tc>} {
    %c0 = arith.constant 0 : index
    %c0_0 = arith.constant 0 : index
    %0 = vector.load %arg0[%c0, %c0_0] : memref<2x128xbf16, #tpu.memory_space<vmem>>, vector<2x128xbf16>
    %c0_1 = arith.constant 0 : index
    %c0_2 = arith.constant 0 : index
    %1 = vector.load %arg1[%c0_1, %c0_2] : memref<128x2048xbf16, #tpu.memory_space<vmem>>, vector<128x2048xbf16>
    %cst = arith.constant dense<0.000000e+00> : vector<2x2048xf32>
    %2 = tpu.matmul %0, %1, %cst {dimension_numbers = #tpu.dot_dimension_numbers<[1], [0], [0], [1], [0, 0, 1, 1], [], []>} : vector<2x128xbf16>, vector<128x2048xbf16>, vector<2x2048xf32> -> vector<2x2048xf32>
    %cst_3 = arith.constant dense<0.000000e+00> : vector<2048xf32>
    %3 = vector.multi_reduction <add>, %2, %cst_3 [0] : vector<2x2048xf32> to vector<2048xf32>
    %4 = vector.shape_cast %3 : vector<2048xf32> to vector<1x2048xf32>
    %5 = arith.mulf %2, %2 : vector<2x2048xf32>
    %cst_4 = arith.constant dense<0.000000e+00> : vector<2048xf32>
    %6 = vector.multi_reduction <add>, %5, %cst_4 [0] : vector<2x2048xf32> to vector<2048xf32>
    %7 = vector.shape_cast %6 : vector<2048xf32> to vector<1x2048xf32>
    %8 = vector.extract_strided_slice %4 {offsets = [0, 0], sizes = [1, 128], strides = [1, 1]} : vector<1x2048xf32> to vector<1x128xf32>
    %9 = vector.extract_strided_slice %7 {offsets = [0, 0], sizes = [1, 128], strides = [1, 1]} : vector<1x2048xf32> to vector<1x128xf32>
    %10 = vector.extract_strided_slice %4 {offsets = [0, 128], sizes = [1, 128], strides = [1, 1]} : vector<1x2048xf32> to vector<1x128xf32>
    %11 = arith.addf %8, %10 : vector<1x128xf32>
    %12 = vector.extract_strided_slice %7 {offsets = [0, 128], sizes = [1, 128], strides = [1, 1]} : vector<1x2048xf32> to vector<1x128xf32>
    %13 = arith.addf %9, %12 : vector<1x128xf32>
    %14 = vector.extract_strided_slice %4 {offsets = [0, 256], sizes = [1, 128], strides = [1, 1]} : vector<1x2048xf32> to vector<1x128xf32>
    %15 = arith.addf %11, %14 : vector<1x128xf32>
    %16 = vector.extract_strided_slice %7 {offsets = [0, 256], sizes = [1, 128], strides = [1, 1]} : vector<1x2048xf32> to vector<1x128xf32>
    %17 = arith.addf %13, %16 : vector<1x128xf32>
    %18 = vector.extract_strided_slice %4 {offsets = [0, 384], sizes = [1, 128], strides = [1, 1]} : vector<1x2048xf32> to vector<1x128xf32>
    %19 = arith.addf %15, %18 : vector<1x128xf32>
    %20 = vector.extract_strided_slice %7 {offsets = [0, 384], sizes = [1, 128], strides = [1, 1]} : vector<1x2048xf32> to vector<1x128xf32>
    %21 = arith.addf %17, %20 : vector<1x128xf32>
    %22 = vector.extract_strided_slice %4 {offsets = [0, 512], sizes = [1, 128], strides = [1, 1]} : vector<1x2048xf32> to vector<1x128xf32>
    %23 = arith.addf %19, %22 : vector<1x128xf32>
    %24 = vector.extract_strided_slice %7 {offsets = [0, 512], sizes = [1, 128], strides = [1, 1]} : vector<1x2048xf32> to vector<1x128xf32>
    %25 = arith.addf %21, %24 : vector<1x128xf32>
    %26 = vector.extract_strided_slice %4 {offsets = [0, 640], sizes = [1, 128], strides = [1, 1]} : vector<1x2048xf32> to vector<1x128xf32>
    %27 = arith.addf %23, %26 : vector<1x128xf32>
    %28 = vector.extract_strided_slice %7 {offsets = [0, 640], sizes = [1, 128], strides = [1, 1]} : vector<1x2048xf32> to vector<1x128xf32>
    %29 = arith.addf %25, %28 : vector<1x128xf32>
    %30 = vector.extract_strided_slice %4 {offsets = [0, 768], sizes = [1, 128], strides = [1, 1]} : vector<1x2048xf32> to vector<1x128xf32>
    %31 = arith.addf %27, %30 : vector<1x128xf32>
    %32 = vector.extract_strided_slice %7 {offsets = [0, 768], sizes = [1, 128], strides = [1, 1]} : vector<1x2048xf32> to vector<1x128xf32>
    %33 = arith.addf %29, %32 : vector<1x128xf32>
    %34 = vector.extract_strided_slice %4 {offsets = [0, 896], sizes = [1, 128], strides = [1, 1]} : vector<1x2048xf32> to vector<1x128xf32>
    %35 = arith.addf %31, %34 : vector<1x128xf32>
    %36 = vector.extract_strided_slice %7 {offsets = [0, 896], sizes = [1, 128], strides = [1, 1]} : vector<1x2048xf32> to vector<1x128xf32>
    %37 = arith.addf %33, %36 : vector<1x128xf32>
    %38 = vector.extract_strided_slice %4 {offsets = [0, 1024], sizes = [1, 128], strides = [1, 1]} : vector<1x2048xf32> to vector<1x128xf32>
    %39 = arith.addf %35, %38 : vector<1x128xf32>
    %40 = vector.extract_strided_slice %7 {offsets = [0, 1024], sizes = [1, 128], strides = [1, 1]} : vector<1x2048xf32> to vector<1x128xf32>
    %41 = arith.addf %37, %40 : vector<1x128xf32>
    %42 = vector.extract_strided_slice %4 {offsets = [0, 1152], sizes = [1, 128], strides = [1, 1]} : vector<1x2048xf32> to vector<1x128xf32>
    %43 = arith.addf %39, %42 : vector<1x128xf32>
    %44 = vector.extract_strided_slice %7 {offsets = [0, 1152], sizes = [1, 128], strides = [1, 1]} : vector<1x2048xf32> to vector<1x128xf32>
    %45 = arith.addf %41, %44 : vector<1x128xf32>
    %46 = vector.extract_strided_slice %4 {offsets = [0, 1280], sizes = [1, 128], strides = [1, 1]} : vector<1x2048xf32> to vector<1x128xf32>
    %47 = arith.addf %43, %46 : vector<1x128xf32>
    %48 = vector.extract_strided_slice %7 {offsets = [0, 1280], sizes = [1, 128], strides = [1, 1]} : vector<1x2048xf32> to vector<1x128xf32>
    %49 = arith.addf %45, %48 : vector<1x128xf32>
    %50 = vector.extract_strided_slice %4 {offsets = [0, 1408], sizes = [1, 128], strides = [1, 1]} : vector<1x2048xf32> to vector<1x128xf32>
    %51 = arith.addf %47, %50 : vector<1x128xf32>
    %52 = vector.extract_strided_slice %7 {offsets = [0, 1408], sizes = [1, 128], strides = [1, 1]} : vector<1x2048xf32> to vector<1x128xf32>
    %53 = arith.addf %49, %52 : vector<1x128xf32>
    %54 = vector.extract_strided_slice %4 {offsets = [0, 1536], sizes = [1, 128], strides = [1, 1]} : vector<1x2048xf32> to vector<1x128xf32>
    %55 = arith.addf %51, %54 : vector<1x128xf32>
    %56 = vector.extract_strided_slice %7 {offsets = [0, 1536], sizes = [1, 128], strides = [1, 1]} : vector<1x2048xf32> to vector<1x128xf32>
    %57 = arith.addf %53, %56 : vector<1x128xf32>
    %58 = vector.extract_strided_slice %4 {offsets = [0, 1664], sizes = [1, 128], strides = [1, 1]} : vector<1x2048xf32> to vector<1x128xf32>
    %59 = arith.addf %55, %58 : vector<1x128xf32>
    %60 = vector.extract_strided_slice %7 {offsets = [0, 1664], sizes = [1, 128], strides = [1, 1]} : vector<1x2048xf32> to vector<1x128xf32>
    %61 = arith.addf %57, %60 : vector<1x128xf32>
    %62 = vector.extract_strided_slice %4 {offsets = [0, 1792], sizes = [1, 128], strides = [1, 1]} : vector<1x2048xf32> to vector<1x128xf32>
    %63 = arith.addf %59, %62 : vector<1x128xf32>
    %64 = vector.extract_strided_slice %7 {offsets = [0, 1792], sizes = [1, 128], strides = [1, 1]} : vector<1x2048xf32> to vector<1x128xf32>
    %65 = arith.addf %61, %64 : vector<1x128xf32>
    %66 = vector.extract_strided_slice %4 {offsets = [0, 1920], sizes = [1, 128], strides = [1, 1]} : vector<1x2048xf32> to vector<1x128xf32>
    %67 = arith.addf %63, %66 : vector<1x128xf32>
    %68 = vector.extract_strided_slice %7 {offsets = [0, 1920], sizes = [1, 128], strides = [1, 1]} : vector<1x2048xf32> to vector<1x128xf32>
    %69 = arith.addf %65, %68 : vector<1x128xf32>
    %cst_5 = arith.constant 3.200000e+01 : f32
    %70 = vector.broadcast %cst_5 : f32 to vector<1x128xf32>
    %71 = arith.divf %67, %70 : vector<1x128xf32>
    %cst_6 = arith.constant 3.200000e+01 : f32
    %72 = vector.broadcast %cst_6 : f32 to vector<1x128xf32>
    %73 = arith.divf %69, %72 : vector<1x128xf32>
    %74 = arith.mulf %71, %71 : vector<1x128xf32>
    %75 = arith.subf %73, %74 : vector<1x128xf32>
    %cst_7 = arith.constant 0.000000e+00 : f32
    %76 = vector.broadcast %cst_7 : f32 to vector<1x128xf32>
    %77 = arith.maximumf %75, %76 : vector<1x128xf32>
    %c0_8 = arith.constant 0 : index
    %c0_9 = arith.constant 0 : index
    %78 = vector.load %arg2[%c0_8, %c0_9] : memref<1x128xf32, #tpu.memory_space<vmem>>, vector<1x128xf32>
    %cst_10 = arith.constant 9.99999974E-6 : f32
    %79 = vector.broadcast %cst_10 : f32 to vector<1x128xf32>
    %80 = arith.addf %77, %79 : vector<1x128xf32>
    %81 = math.rsqrt %80 : vector<1x128xf32>
    %82 = arith.mulf %78, %81 : vector<1x128xf32>
    %c0_11 = arith.constant 0 : index
    %c0_12 = arith.constant 0 : index
    %83 = vector.load %arg3[%c0_11, %c0_12] : memref<1x128xf32, #tpu.memory_space<vmem>>, vector<1x128xf32>
    %84 = arith.mulf %71, %82 : vector<1x128xf32>
    %85 = arith.subf %83, %84 : vector<1x128xf32>
    %86 = tpu.concatenate %82, %82, %82, %82, %82, %82, %82, %82, %82, %82, %82, %82, %82, %82, %82, %82 in 1 : vector<1x128xf32>, vector<1x128xf32>, vector<1x128xf32>, vector<1x128xf32>, vector<1x128xf32>, vector<1x128xf32>, vector<1x128xf32>, vector<1x128xf32>, vector<1x128xf32>, vector<1x128xf32>, vector<1x128xf32>, vector<1x128xf32>, vector<1x128xf32>, vector<1x128xf32>, vector<1x128xf32>, vector<1x128xf32> -> vector<1x2048xf32>
    %87 = tpu.concatenate %85, %85, %85, %85, %85, %85, %85, %85, %85, %85, %85, %85, %85, %85, %85, %85 in 1 : vector<1x128xf32>, vector<1x128xf32>, vector<1x128xf32>, vector<1x128xf32>, vector<1x128xf32>, vector<1x128xf32>, vector<1x128xf32>, vector<1x128xf32>, vector<1x128xf32>, vector<1x128xf32>, vector<1x128xf32>, vector<1x128xf32>, vector<1x128xf32>, vector<1x128xf32>, vector<1x128xf32>, vector<1x128xf32> -> vector<1x2048xf32>
    %88 = vector.broadcast %86 : vector<1x2048xf32> to vector<2x2048xf32>
    %89 = arith.mulf %2, %88 : vector<2x2048xf32>
    %90 = vector.broadcast %87 : vector<1x2048xf32> to vector<2x2048xf32>
    %91 = arith.addf %89, %90 : vector<2x2048xf32>
    %cst_13 = arith.constant 0.000000e+00 : f32
    %92 = vector.broadcast %cst_13 : f32 to vector<2x2048xf32>
    %93 = arith.maximumf %91, %92 : vector<2x2048xf32>
    %94 = arith.truncf %93 : vector<2x2048xf32> to vector<2x2048xbf16>
    %c0_14 = arith.constant 0 : index
    %c0_15 = arith.constant 0 : index
    %95 = vector.load %arg4[%c0_14, %c0_15] : memref<2x2048xbf16, #tpu.memory_space<vmem>>, vector<2x2048xbf16>
    tpu.vector_store %arg4[%c0_14, %c0_15], %94 {strides = array<i32>} : memref<2x2048xbf16, #tpu.memory_space<vmem>>, vector<2x2048xbf16>,
    return
  }
}

module attributes {stable_mosaic.version = 11 : i64} {
  func.func @_gemm_bn_relu_kernel(%arg0: memref<32x1152xbf16, #tpu.memory_space<vmem>>, %arg1: memref<1152x256xbf16, #tpu.memory_space<vmem>>, %arg2: memref<1x64xf32, #tpu.memory_space<vmem>>, %arg3: memref<1x64xf32, #tpu.memory_space<vmem>>, %arg4: memref<32x256xbf16, #tpu.memory_space<vmem>>) attributes {dimension_semantics = [], scalar_prefetch = 0 : i64, scratch_operands = 0 : i64, tpu.core_type = #tpu.core_type<tc>} {
    %c0 = arith.constant 0 : index
    %c0_0 = arith.constant 0 : index
    %0 = vector.load %arg0[%c0, %c0_0] : memref<32x1152xbf16, #tpu.memory_space<vmem>>, vector<32x1152xbf16>
    %c0_1 = arith.constant 0 : index
    %c0_2 = arith.constant 0 : index
    %1 = vector.load %arg1[%c0_1, %c0_2] : memref<1152x256xbf16, #tpu.memory_space<vmem>>, vector<1152x256xbf16>
    %cst = arith.constant dense<0.000000e+00> : vector<32x256xf32>
    %2 = tpu.matmul %0, %1, %cst {dimension_numbers = #tpu.dot_dimension_numbers<[1], [0], [0], [1], [0, 0, 1, 1], [], []>} : vector<32x1152xbf16>, vector<1152x256xbf16>, vector<32x256xf32> -> vector<32x256xf32>
    %cst_3 = arith.constant dense<0.000000e+00> : vector<256xf32>
    %3 = vector.multi_reduction <add>, %2, %cst_3 [0] : vector<32x256xf32> to vector<256xf32>
    %4 = vector.shape_cast %3 : vector<256xf32> to vector<1x256xf32>
    %5 = arith.mulf %2, %2 : vector<32x256xf32>
    %cst_4 = arith.constant dense<0.000000e+00> : vector<256xf32>
    %6 = vector.multi_reduction <add>, %5, %cst_4 [0] : vector<32x256xf32> to vector<256xf32>
    %7 = vector.shape_cast %6 : vector<256xf32> to vector<1x256xf32>
    %8 = vector.extract_strided_slice %4 {offsets = [0, 0], sizes = [1, 64], strides = [1, 1]} : vector<1x256xf32> to vector<1x64xf32>
    %9 = vector.extract_strided_slice %7 {offsets = [0, 0], sizes = [1, 64], strides = [1, 1]} : vector<1x256xf32> to vector<1x64xf32>
    %10 = vector.extract_strided_slice %4 {offsets = [0, 64], sizes = [1, 64], strides = [1, 1]} : vector<1x256xf32> to vector<1x64xf32>
    %11 = arith.addf %8, %10 : vector<1x64xf32>
    %12 = vector.extract_strided_slice %7 {offsets = [0, 64], sizes = [1, 64], strides = [1, 1]} : vector<1x256xf32> to vector<1x64xf32>
    %13 = arith.addf %9, %12 : vector<1x64xf32>
    %14 = vector.extract_strided_slice %4 {offsets = [0, 128], sizes = [1, 64], strides = [1, 1]} : vector<1x256xf32> to vector<1x64xf32>
    %15 = arith.addf %11, %14 : vector<1x64xf32>
    %16 = vector.extract_strided_slice %7 {offsets = [0, 128], sizes = [1, 64], strides = [1, 1]} : vector<1x256xf32> to vector<1x64xf32>
    %17 = arith.addf %13, %16 : vector<1x64xf32>
    %18 = vector.extract_strided_slice %4 {offsets = [0, 192], sizes = [1, 64], strides = [1, 1]} : vector<1x256xf32> to vector<1x64xf32>
    %19 = arith.addf %15, %18 : vector<1x64xf32>
    %20 = vector.extract_strided_slice %7 {offsets = [0, 192], sizes = [1, 64], strides = [1, 1]} : vector<1x256xf32> to vector<1x64xf32>
    %21 = arith.addf %17, %20 : vector<1x64xf32>
    %cst_5 = arith.constant 1.280000e+02 : f32
    %22 = vector.broadcast %cst_5 : f32 to vector<1x64xf32>
    %23 = arith.divf %19, %22 : vector<1x64xf32>
    %cst_6 = arith.constant 1.280000e+02 : f32
    %24 = vector.broadcast %cst_6 : f32 to vector<1x64xf32>
    %25 = arith.divf %21, %24 : vector<1x64xf32>
    %26 = arith.mulf %23, %23 : vector<1x64xf32>
    %27 = arith.subf %25, %26 : vector<1x64xf32>
    %cst_7 = arith.constant 0.000000e+00 : f32
    %28 = vector.broadcast %cst_7 : f32 to vector<1x64xf32>
    %29 = arith.maximumf %27, %28 : vector<1x64xf32>
    %c0_8 = arith.constant 0 : index
    %c0_9 = arith.constant 0 : index
    %30 = vector.load %arg2[%c0_8, %c0_9] : memref<1x64xf32, #tpu.memory_space<vmem>>, vector<1x64xf32>
    %cst_10 = arith.constant 9.99999974E-6 : f32
    %31 = vector.broadcast %cst_10 : f32 to vector<1x64xf32>
    %32 = arith.addf %29, %31 : vector<1x64xf32>
    %33 = math.rsqrt %32 : vector<1x64xf32>
    %34 = arith.mulf %30, %33 : vector<1x64xf32>
    %c0_11 = arith.constant 0 : index
    %c0_12 = arith.constant 0 : index
    %35 = vector.load %arg3[%c0_11, %c0_12] : memref<1x64xf32, #tpu.memory_space<vmem>>, vector<1x64xf32>
    %36 = arith.mulf %23, %34 : vector<1x64xf32>
    %37 = arith.subf %35, %36 : vector<1x64xf32>
    %38 = tpu.concatenate %34, %34, %34, %34 in 1 : vector<1x64xf32>, vector<1x64xf32>, vector<1x64xf32>, vector<1x64xf32> -> vector<1x256xf32>
    %39 = tpu.concatenate %37, %37, %37, %37 in 1 : vector<1x64xf32>, vector<1x64xf32>, vector<1x64xf32>, vector<1x64xf32> -> vector<1x256xf32>
    %40 = vector.broadcast %38 : vector<1x256xf32> to vector<32x256xf32>
    %41 = arith.mulf %2, %40 : vector<32x256xf32>
    %42 = vector.broadcast %39 : vector<1x256xf32> to vector<32x256xf32>
    %43 = arith.addf %41, %42 : vector<32x256xf32>
    %cst_13 = arith.constant 0.000000e+00 : f32
    %44 = vector.broadcast %cst_13 : f32 to vector<32x256xf32>
    %45 = arith.maximumf %43, %44 : vector<32x256xf32>
    %46 = arith.truncf %45 : vector<32x256xf32> to vector<32x256xbf16>
    %c0_14 = arith.constant 0 : index
    %c0_15 = arith.constant 0 : index
    %47 = vector.load %arg4[%c0_14, %c0_15] : memref<32x256xbf16, #tpu.memory_space<vmem>>, vector<32x256xbf16>
    tpu.vector_store %arg4[%c0_14, %c0_15], %46 {strides = array<i32>} : memref<32x256xbf16, #tpu.memory_space<vmem>>, vector<32x256xbf16>,
    return
  }
}

module attributes {stable_mosaic.version = 11 : i64} {
  func.func @_gemm_bn_relu_kernel(%arg0: memref<128x576xbf16, #tpu.memory_space<vmem>>, %arg1: memref<576x128xbf16, #tpu.memory_space<vmem>>, %arg2: memref<1x32xf32, #tpu.memory_space<vmem>>, %arg3: memref<1x32xf32, #tpu.memory_space<vmem>>, %arg4: memref<128x128xbf16, #tpu.memory_space<vmem>>) attributes {dimension_semantics = [], scalar_prefetch = 0 : i64, scratch_operands = 0 : i64, tpu.core_type = #tpu.core_type<tc>} {
    %c0 = arith.constant 0 : index
    %c0_0 = arith.constant 0 : index
    %0 = vector.load %arg0[%c0, %c0_0] : memref<128x576xbf16, #tpu.memory_space<vmem>>, vector<128x576xbf16>
    %c0_1 = arith.constant 0 : index
    %c0_2 = arith.constant 0 : index
    %1 = vector.load %arg1[%c0_1, %c0_2] : memref<576x128xbf16, #tpu.memory_space<vmem>>, vector<576x128xbf16>
    %cst = arith.constant dense<0.000000e+00> : vector<128x128xf32>
    %2 = tpu.matmul %0, %1, %cst {dimension_numbers = #tpu.dot_dimension_numbers<[1], [0], [0], [1], [0, 0, 1, 1], [], []>} : vector<128x576xbf16>, vector<576x128xbf16>, vector<128x128xf32> -> vector<128x128xf32>
    %cst_3 = arith.constant dense<0.000000e+00> : vector<128xf32>
    %3 = vector.multi_reduction <add>, %2, %cst_3 [0] : vector<128x128xf32> to vector<128xf32>
    %4 = vector.shape_cast %3 : vector<128xf32> to vector<1x128xf32>
    %5 = arith.mulf %2, %2 : vector<128x128xf32>
    %cst_4 = arith.constant dense<0.000000e+00> : vector<128xf32>
    %6 = vector.multi_reduction <add>, %5, %cst_4 [0] : vector<128x128xf32> to vector<128xf32>
    %7 = vector.shape_cast %6 : vector<128xf32> to vector<1x128xf32>
    %8 = vector.extract_strided_slice %4 {offsets = [0, 0], sizes = [1, 32], strides = [1, 1]} : vector<1x128xf32> to vector<1x32xf32>
    %9 = vector.extract_strided_slice %7 {offsets = [0, 0], sizes = [1, 32], strides = [1, 1]} : vector<1x128xf32> to vector<1x32xf32>
    %10 = vector.extract_strided_slice %4 {offsets = [0, 32], sizes = [1, 32], strides = [1, 1]} : vector<1x128xf32> to vector<1x32xf32>
    %11 = arith.addf %8, %10 : vector<1x32xf32>
    %12 = vector.extract_strided_slice %7 {offsets = [0, 32], sizes = [1, 32], strides = [1, 1]} : vector<1x128xf32> to vector<1x32xf32>
    %13 = arith.addf %9, %12 : vector<1x32xf32>
    %14 = vector.extract_strided_slice %4 {offsets = [0, 64], sizes = [1, 32], strides = [1, 1]} : vector<1x128xf32> to vector<1x32xf32>
    %15 = arith.addf %11, %14 : vector<1x32xf32>
    %16 = vector.extract_strided_slice %7 {offsets = [0, 64], sizes = [1, 32], strides = [1, 1]} : vector<1x128xf32> to vector<1x32xf32>
    %17 = arith.addf %13, %16 : vector<1x32xf32>
    %18 = vector.extract_strided_slice %4 {offsets = [0, 96], sizes = [1, 32], strides = [1, 1]} : vector<1x128xf32> to vector<1x32xf32>
    %19 = arith.addf %15, %18 : vector<1x32xf32>
    %20 = vector.extract_strided_slice %7 {offsets = [0, 96], sizes = [1, 32], strides = [1, 1]} : vector<1x128xf32> to vector<1x32xf32>
    %21 = arith.addf %17, %20 : vector<1x32xf32>
    %cst_5 = arith.constant 5.120000e+02 : f32
    %22 = vector.broadcast %cst_5 : f32 to vector<1x32xf32>
    %23 = arith.divf %19, %22 : vector<1x32xf32>
    %cst_6 = arith.constant 5.120000e+02 : f32
    %24 = vector.broadcast %cst_6 : f32 to vector<1x32xf32>
    %25 = arith.divf %21, %24 : vector<1x32xf32>
    %26 = arith.mulf %23, %23 : vector<1x32xf32>
    %27 = arith.subf %25, %26 : vector<1x32xf32>
    %cst_7 = arith.constant 0.000000e+00 : f32
    %28 = vector.broadcast %cst_7 : f32 to vector<1x32xf32>
    %29 = arith.maximumf %27, %28 : vector<1x32xf32>
    %c0_8 = arith.constant 0 : index
    %c0_9 = arith.constant 0 : index
    %30 = vector.load %arg2[%c0_8, %c0_9] : memref<1x32xf32, #tpu.memory_space<vmem>>, vector<1x32xf32>
    %cst_10 = arith.constant 9.99999974E-6 : f32
    %31 = vector.broadcast %cst_10 : f32 to vector<1x32xf32>
    %32 = arith.addf %29, %31 : vector<1x32xf32>
    %33 = math.rsqrt %32 : vector<1x32xf32>
    %34 = arith.mulf %30, %33 : vector<1x32xf32>
    %c0_11 = arith.constant 0 : index
    %c0_12 = arith.constant 0 : index
    %35 = vector.load %arg3[%c0_11, %c0_12] : memref<1x32xf32, #tpu.memory_space<vmem>>, vector<1x32xf32>
    %36 = arith.mulf %23, %34 : vector<1x32xf32>
    %37 = arith.subf %35, %36 : vector<1x32xf32>
    %38 = tpu.concatenate %34, %34, %34, %34 in 1 : vector<1x32xf32>, vector<1x32xf32>, vector<1x32xf32>, vector<1x32xf32> -> vector<1x128xf32>
    %39 = tpu.concatenate %37, %37, %37, %37 in 1 : vector<1x32xf32>, vector<1x32xf32>, vector<1x32xf32>, vector<1x32xf32> -> vector<1x128xf32>
    %40 = vector.broadcast %38 : vector<1x128xf32> to vector<128x128xf32>
    %41 = arith.mulf %2, %40 : vector<128x128xf32>
    %42 = vector.broadcast %39 : vector<1x128xf32> to vector<128x128xf32>
    %43 = arith.addf %41, %42 : vector<128x128xf32>
    %cst_13 = arith.constant 0.000000e+00 : f32
    %44 = vector.broadcast %cst_13 : f32 to vector<128x128xf32>
    %45 = arith.maximumf %43, %44 : vector<128x128xf32>
    %46 = arith.truncf %45 : vector<128x128xf32> to vector<128x128xbf16>
    %c0_14 = arith.constant 0 : index
    %c0_15 = arith.constant 0 : index
    %47 = vector.load %arg4[%c0_14, %c0_15] : memref<128x128xbf16, #tpu.memory_space<vmem>>, vector<128x128xbf16>
    tpu.vector_store %arg4[%c0_14, %c0_15], %46 {strides = array<i32>} : memref<128x128xbf16, #tpu.memory_space<vmem>>, vector<128x128xbf16>,
    return
  }
}

module attributes {stable_mosaic.version = 11 : i64} {
  func.func @_gemm_bias_tanh_kernel(%arg0: i32, %arg1: memref<4x288xbf16, #tpu.memory_space<vmem>>, %arg2: memref<1x1xf32, #tpu.memory_space<vmem>>, %arg3: memref<288x256xbf16, #tpu.memory_space<vmem>>, %arg4: memref<4x256xf32, #tpu.memory_space<vmem>>) attributes {dimension_semantics = [#tpu.dimension_semantics<parallel>], iteration_bounds = array<i64: 2>, scalar_prefetch = 0 : i64, scratch_operands = 0 : i64, tpu.core_type = #tpu.core_type<tc>, window_params = [{pipeline_mode = #tpu.pipeline_mode<synchronous>, transform_indices = @transform_0, window_bounds = array<i64: 4, 288>}, {pipeline_mode = #tpu.pipeline_mode<synchronous>, transform_indices = @transform_1, window_bounds = array<i64: 1, 1>}, {transform_indices = @transform_2, window_bounds = array<i64: 288, 256>}, {transform_indices = @transform_3, window_bounds = array<i64: 4, 256>}]} {
    %c0 = arith.constant 0 : index
    %c0_0 = arith.constant 0 : index
    %0 = vector.load %arg1[%c0, %c0_0] : memref<4x288xbf16, #tpu.memory_space<vmem>>, vector<4x288xbf16>
    %c0_1 = arith.constant 0 : index
    %c0_2 = arith.constant 0 : index
    %1 = vector.load %arg3[%c0_1, %c0_2] : memref<288x256xbf16, #tpu.memory_space<vmem>>, vector<288x256xbf16>
    %cst = arith.constant dense<0.000000e+00> : vector<4x256xf32>
    %2 = tpu.matmul %0, %1, %cst {dimension_numbers = #tpu.dot_dimension_numbers<[1], [0], [0], [1], [0, 0, 1, 1], [], []>} : vector<4x288xbf16>, vector<288x256xbf16>, vector<4x256xf32> -> vector<4x256xf32>
    %c0_3 = arith.constant 0 : index
    %c0_4 = arith.constant 0 : index
    %3 = vector.load %arg2[%c0_3, %c0_4] : memref<1x1xf32, #tpu.memory_space<vmem>>, vector<1x1xf32>
    %4 = vector.broadcast %3 : vector<1x1xf32> to vector<4x256xf32>
    %5 = arith.addf %2, %4 : vector<4x256xf32>
    %6 = math.tanh %5 : vector<4x256xf32>
    %c0_5 = arith.constant 0 : index
    %c0_6 = arith.constant 0 : index
    %7 = vector.load %arg4[%c0_5, %c0_6] : memref<4x256xf32, #tpu.memory_space<vmem>>, vector<4x256xf32>
    tpu.vector_store %arg4[%c0_5, %c0_6], %6 {strides = array<i32>} : memref<4x256xf32, #tpu.memory_space<vmem>>, vector<4x256xf32>,
    return
  }
  func.func @transform_0(%arg0: i32) -> (i32, i32) {
    %c0_i32 = arith.constant 0 : i32
    %c0_i32_0 = arith.constant 0 : i32
    %c0_i32_1 = arith.constant 0 : i32
    return %c0_i32, %c0_i32_0 : i32, i32
  }
  func.func @transform_1(%arg0: i32) -> (i32, i32) {
    %c0_i32 = arith.constant 0 : i32
    %c0_i32_0 = arith.constant 0 : i32
    %c0_i32_1 = arith.constant 0 : i32
    return %c0_i32, %c0_i32_0 : i32, i32
  }
  func.func @transform_2(%arg0: i32) -> (i32, i32) {
    %c0_i32 = arith.constant 0 : i32
    %c0_i32_0 = arith.constant 0 : i32
    return %c0_i32, %arg0 : i32, i32
  }
  func.func @transform_3(%arg0: i32) -> (i32, i32) {
    %c0_i32 = arith.constant 0 : i32
    %c0_i32_0 = arith.constant 0 : i32
    return %c0_i32, %arg0 : i32, i32
  }
}

</mosaic_0001>

<llo_original>
// kernel: _generator_forward.4
$region0: #{_generator_forward.4}
  #allocation0 [shape = 'u32[]', space=smem, size = 0x4, offset = 0x4, fixed_abs, tag = 'smem constant byte address 0x4 - core index']
  #allocation1 [shape = 'u32[72,128]{1,0:T(1,128)}', space=vmem, size = 0x9000, scoped, tag = 'internal scratch']
  %s0 = inlined_call_operand.vmem [shape: bf16[2,128], index: 0, kind: input, shape index: {}]
  %s1 = inlined_call_operand.hbm [shape: bf16[128,2048], index: 1, kind: input, shape index: {}]
  %s2 = inlined_call_operand.hbm [shape: f32[1,128], index: 2, kind: input, shape index: {}]
  %s3 = inlined_call_operand.hbm [shape: f32[1,128], index: 3, kind: input, shape index: {}]
  %s4 = inlined_call_operand.vmem [shape: bf16[2,2048], index: 4, kind: output, shape index: {}]
  %s5 = sld [smem:[#allocation0]]
  $region38: #{_generator_forward.4} parent=0
    _
  %s7 = ssub.s32 1, %s5
  %s8 = scalar_select 0, %s7, %s5
  $region1: #{_generator_forward.4} parent=0
    #allocation2 [shape = 'u8[524288]{0}', space=vmem, size = 0x80000, scoped, tag = 'input window, operand 1, single buffered']
    #allocation3 [shape = 's32[1]{0}', space=sflag, size = 0x4, scoped, tag = 'scoped memory for _generator_forward.4']
    #allocation4 [shape = 'u8[512]{0}', space=vmem, size = 0x400, scoped, tag = 'input window, operand 2, single buffered']
    #allocation5 [shape = 's32[1]{0}', space=sflag, size = 0x4, scoped, tag = 'scoped memory for _generator_forward.4']
    #allocation6 [shape = 'u8[512]{0}', space=vmem, size = 0x400, scoped, tag = 'input window, operand 3, single buffered']
    %9 = vsyncpa [#allocation3], 0
    %10 = vsyncpa [#allocation5], 0
    // Predicated region
    $region2: #{_generator_forward.4} parent=1 // pred_check
      _
    $region3: #{_generator_forward.4} parent=1 // pred_check_branch
      %12 = sbr.rel (0) target = $region5
    $region4: #{_generator_forward.4} parent=1 // pred_region
      _
    $region5: #{_generator_forward.4} parent=1 // pred_fallthru
      _
    // Predicated region
    $region6: #{_generator_forward.4} parent=1 // pred_check
      _
    $region7: #{_generator_forward.4} parent=1 // pred_check_branch
      %14 = sbr.rel (0) target = $region9
    $region8: #{_generator_forward.4} parent=1 // pred_region
      %16 = vsyncadd [#allocation3], 0
      %s17 = sshll.u32 %s1, 4
      %s18 = int_to_ptr.hbm [resolvable:$true] %s17
      %s19 = sshll.u32 [#allocation2], 4
      %s20 = int_to_ptr.vmem [resolvable:$true] %s19
      %25 = dma.hbm_to_vmem [thread:$0]  %s18, 16384, %s20, [#allocation3], 1024, 1024, 64
    $region9: #{_generator_forward.4} parent=1 // pred_fallthru
      _
    // Predicated region
    $region10: #{_generator_forward.4} parent=1 // pred_check
      _
    $region11: #{_generator_forward.4} parent=1 // pred_check_branch
      %27 = sbr.rel (0) target = $region13
    $region12: #{_generator_forward.4} parent=1 // pred_region
      %29 = vsyncadd [#allocation5], 0
      %s31 = sshll.u32 %s2, 4
      %s32 = int_to_ptr.hbm [resolvable:$true] %s31
      %s33 = sshll.u32 [#allocation4], 4
      %s34 = int_to_ptr.vmem [resolvable:$true] %s33
      %36 = dma.hbm_to_vmem [thread:$0]  %s32, 16, %s34, [#allocation5]
    $region13: #{_generator_forward.4} parent=1 // pred_fallthru
      _
    // Predicated region
    $region14: #{_generator_forward.4} parent=1 // pred_check
      _
    $region15: #{_generator_forward.4} parent=1 // pred_check_branch
      %38 = sbr.rel (0) target = $region17
    $region16: #{_generator_forward.4} parent=1 // pred_region
      %40 = vsyncadd [#allocation5], 0
      %s42 = sshll.u32 %s3, 4
      %s43 = int_to_ptr.hbm [resolvable:$true] %s42
      %s44 = sshll.u32 [#allocation6], 4
      %s45 = int_to_ptr.vmem [resolvable:$true] %s44
      %47 = dma.hbm_to_vmem [thread:$0]  %s43, 16, %s45, [#allocation5]
    $region17: #{_generator_forward.4} parent=1 // pred_fallthru
      _
    // Predicated region
    $region18: #{_generator_forward.4} parent=1 // pred_check
      _
    $region19: #{_generator_forward.4} parent=1 // pred_check_branch
      %49 = sbr.rel (0) target = $region21
    $region20: #{_generator_forward.4} parent=1 // pred_region
      %51 = dma.done [#allocation3], 16384
    $region21: #{_generator_forward.4} parent=1 // pred_fallthru
      _
    // Predicated region
    $region22: #{_generator_forward.4} parent=1 // pred_check
      _
    $region23: #{_generator_forward.4} parent=1 // pred_check_branch
      %53 = sbr.rel (0) target = $region25
    $region24: #{_generator_forward.4} parent=1 // pred_region
      %55 = dma.done [#allocation5], 16
    $region25: #{_generator_forward.4} parent=1 // pred_fallthru
      _
    // Predicated region
    $region26: #{_generator_forward.4} parent=1 // pred_check
      _
    $region27: #{_generator_forward.4} parent=1 // pred_check_branch
      %57 = sbr.rel (0) target = $region29
    $region28: #{_generator_forward.4} parent=1 // pred_region
      %59 = dma.done [#allocation5], 16
    $region29: #{_generator_forward.4} parent=1 // pred_fallthru
      _
    %v60 = vld [vmem:[%s0] sm:$0x1]
    %v61 = vld [vmem:[#allocation2] sm:$0xff]
    %v62 = vld [vmem:[#allocation2 + $0x8] sm:$0xff]
    %v63 = vld [vmem:[#allocation2 + $0x10] sm:$0xff]
    %v64 = vld [vmem:[#allocation2 + $0x18] sm:$0xff]
    %v65 = vld [vmem:[#allocation2 + $0x20] sm:$0xff]
    %v66 = vld [vmem:[#allocation2 + $0x28] sm:$0xff]
    %v67 = vld [vmem:[#allocation2 + $0x30] sm:$0xff]
    %v68 = vld [vmem:[#allocation2 + $0x38] sm:$0xff]
    %v69 = vld [vmem:[#allocation2 + $0x40] sm:$0xff]
    %v70 = vld [vmem:[#allocation2 + $0x48] sm:$0xff]
    %v71 = vld [vmem:[#allocation2 + $0x50] sm:$0xff]
    %v72 = vld [vmem:[#allocation2 + $0x58] sm:$0xff]
    %v73 = vld [vmem:[#allocation2 + $0x60] sm:$0xff]
    %v74 = vld [vmem:[#allocation2 + $0x68] sm:$0xff]
    %v75 = vld [vmem:[#allocation2 + $0x70] sm:$0xff]
    %v76 = vld [vmem:[#allocation2 + $0x78] sm:$0xff]
    %v77 = vld [vmem:[#allocation2 + $0x80] sm:$0xff]
    %v78 = vld [vmem:[#allocation2 + $0x88] sm:$0xff]
    %v79 = vld [vmem:[#allocation2 + $0x90] sm:$0xff]
    %v80 = vld [vmem:[#allocation2 + $0x98] sm:$0xff]
    %v81 = vld [vmem:[#allocation2 + $0xa0] sm:$0xff]
    %v82 = vld [vmem:[#allocation2 + $0xa8] sm:$0xff]
    %v83 = vld [vmem:[#allocation2 + $0xb0] sm:$0xff]
    %v84 = vld [vmem:[#allocation2 + $0xb8] sm:$0xff]
    %v85 = vld [vmem:[#allocation2 + $0xc0] sm:$0xff]
    %v86 = vld [vmem:[#allocation2 + $0xc8] sm:$0xff]
    %v87 = vld [vmem:[#allocation2 + $0xd0] sm:$0xff]
    %v88 = vld [vmem:[#allocation2 + $0xd8] sm:$0xff]
    %v89 = vld [vmem:[#allocation2 + $0xe0] sm:$0xff]
    %v90 = vld [vmem:[#allocation2 + $0xe8] sm:$0xff]
    %v91 = vld [vmem:[#allocation2 + $0xf0] sm:$0xff]
    %v92 = vld [vmem:[#allocation2 + $0xf8] sm:$0xff]
    %v93 = vld [vmem:[#allocation2 + $0x100] sm:$0xff]
    %v94 = vld [vmem:[#allocation2 + $0x108] sm:$0xff]
    %v95 = vld [vmem:[#allocation2 + $0x110] sm:$0xff]
    %v96 = vld [vmem:[#allocation2 + $0x118] sm:$0xff]
    %v97 = vld [vmem:[#allocation2 + $0x120] sm:$0xff]
    %v98 = vld [vmem:[#allocation2 + $0x128] sm:$0xff]
    %v99 = vld [vmem:[#allocation2 + $0x130] sm:$0xff]
    %v100 = vld [vmem:[#allocation2 + $0x138] sm:$0xff]
    %v101 = vld [vmem:[#allocation2 + $0x140] sm:$0xff]
    %v102 = vld [vmem:[#allocation2 + $0x148] sm:$0xff]
    %v103 = vld [vmem:[#allocation2 + $0x150] sm:$0xff]
    %v104 = vld [vmem:[#allocation2 + $0x158] sm:$0xff]
    %v105 = vld [vmem:[#allocation2 + $0x160] sm:$0xff]
    %v106 = vld [vmem:[#allocation2 + $0x168] sm:$0xff]
    %v107 = vld [vmem:[#allocation2 + $0x170] sm:$0xff]
    %v108 = vld [vmem:[#allocation2 + $0x178] sm:$0xff]
    %v109 = vld [vmem:[#allocation2 + $0x180] sm:$0xff]
    %v110 = vld [vmem:[#allocation2 + $0x188] sm:$0xff]
    %v111 = vld [vmem:[#allocation2 + $0x190] sm:$0xff]
    %v112 = vld [vmem:[#allocation2 + $0x198] sm:$0xff]
    %v113 = vld [vmem:[#allocation2 + $0x1a0] sm:$0xff]
    %v114 = vld [vmem:[#allocation2 + $0x1a8] sm:$0xff]
    %v115 = vld [vmem:[#allocation2 + $0x1b0] sm:$0xff]
    %v116 = vld [vmem:[#allocation2 + $0x1b8] sm:$0xff]
    %v117 = vld [vmem:[#allocation2 + $0x1c0] sm:$0xff]
    %v118 = vld [vmem:[#allocation2 + $0x1c8] sm:$0xff]
    %v119 = vld [vmem:[#allocation2 + $0x1d0] sm:$0xff]
    %v120 = vld [vmem:[#allocation2 + $0x1d8] sm:$0xff]
    %v121 = vld [vmem:[#allocation2 + $0x1e0] sm:$0xff]
    %v122 = vld [vmem:[#allocation2 + $0x1e8] sm:$0xff]
    %v123 = vld [vmem:[#allocation2 + $0x1f0] sm:$0xff]
    %v124 = vld [vmem:[#allocation2 + $0x1f8] sm:$0xff]
    %v125 = vld [vmem:[#allocation2 + $0x200] sm:$0xff]
    %v126 = vld [vmem:[#allocation2 + $0x208] sm:$0xff]
    %v127 = vld [vmem:[#allocation2 + $0x210] sm:$0xff]
    %v128 = vld [vmem:[#allocation2 + $0x218] sm:$0xff]
    %v129 = vld [vmem:[#allocation2 + $0x220] sm:$0xff]
    %v130 = vld [vmem:[#allocation2 + $0x228] sm:$0xff]
    %v131 = vld [vmem:[#allocation2 + $0x230] sm:$0xff]
    %v132 = vld [vmem:[#allocation2 + $0x238] sm:$0xff]
    %v133 = vld [vmem:[#allocation2 + $0x240] sm:$0xff]
    %v134 = vld [vmem:[#allocation2 + $0x248] sm:$0xff]
    %v135 = vld [vmem:[#allocation2 + $0x250] sm:$0xff]
    %v136 = vld [vmem:[#allocation2 + $0x258] sm:$0xff]
    %v137 = vld [vmem:[#allocation2 + $0x260] sm:$0xff]
    %v138 = vld [vmem:[#allocation2 + $0x268] sm:$0xff]
    %v139 = vld [vmem:[#allocation2 + $0x270] sm:$0xff]
    %v140 = vld [vmem:[#allocation2 + $0x278] sm:$0xff]
    %v141 = vld [vmem:[#allocation2 + $0x280] sm:$0xff]
    %v142 = vld [vmem:[#allocation2 + $0x288] sm:$0xff]
    %v143 = vld [vmem:[#allocation2 + $0x290] sm:$0xff]
    %v144 = vld [vmem:[#allocation2 + $0x298] sm:$0xff]
    %v145 = vld [vmem:[#allocation2 + $0x2a0] sm:$0xff]
    %v146 = vld [vmem:[#allocation2 + $0x2a8] sm:$0xff]
    %v147 = vld [vmem:[#allocation2 + $0x2b0] sm:$0xff]
    %v148 = vld [vmem:[#allocation2 + $0x2b8] sm:$0xff]
    %v149 = vld [vmem:[#allocation2 + $0x2c0] sm:$0xff]
    %v150 = vld [vmem:[#allocation2 + $0x2c8] sm:$0xff]
    %v151 = vld [vmem:[#allocation2 + $0x2d0] sm:$0xff]
    %v152 = vld [vmem:[#allocation2 + $0x2d8] sm:$0xff]
    %v153 = vld [vmem:[#allocation2 + $0x2e0] sm:$0xff]
    %v154 = vld [vmem:[#allocation2 + $0x2e8] sm:$0xff]
    %v155 = vld [vmem:[#allocation2 + $0x2f0] sm:$0xff]
    %v156 = vld [vmem:[#allocation2 + $0x2f8] sm:$0xff]
    %v157 = vld [vmem:[#allocation2 + $0x300] sm:$0xff]
    %v158 = vld [vmem:[#allocation2 + $0x308] sm:$0xff]
    %v159 = vld [vmem:[#allocation2 + $0x310] sm:$0xff]
    %v160 = vld [vmem:[#allocation2 + $0x318] sm:$0xff]
    %v161 = vld [vmem:[#allocation2 + $0x320] sm:$0xff]
    %v162 = vld [vmem:[#allocation2 + $0x328] sm:$0xff]
    %v163 = vld [vmem:[#allocation2 + $0x330] sm:$0xff]
    %v164 = vld [vmem:[#allocation2 + $0x338] sm:$0xff]
    %v165 = vld [vmem:[#allocation2 + $0x340] sm:$0xff]
    %v166 = vld [vmem:[#allocation2 + $0x348] sm:$0xff]
    %v167 = vld [vmem:[#allocation2 + $0x350] sm:$0xff]
    %v168 = vld [vmem:[#allocation2 + $0x358] sm:$0xff]
    %v169 = vld [vmem:[#allocation2 + $0x360] sm:$0xff]
    %v170 = vld [vmem:[#allocation2 + $0x368] sm:$0xff]
    %v171 = vld [vmem:[#allocation2 + $0x370] sm:$0xff]
    %v172 = vld [vmem:[#allocation2 + $0x378] sm:$0xff]
    %v173 = vld [vmem:[#allocation2 + $0x380] sm:$0xff]
    %v174 = vld [vmem:[#allocation2 + $0x388] sm:$0xff]
    %v175 = vld [vmem:[#allocation2 + $0x390] sm:$0xff]
    %v176 = vld [vmem:[#allocation2 + $0x398] sm:$0xff]
    %v177 = vld [vmem:[#allocation2 + $0x3a0] sm:$0xff]
    %v178 = vld [vmem:[#allocation2 + $0x3a8] sm:$0xff]
    %v179 = vld [vmem:[#allocation2 + $0x3b0] sm:$0xff]
    %v180 = vld [vmem:[#allocation2 + $0x3b8] sm:$0xff]
    %v181 = vld [vmem:[#allocation2 + $0x3c0] sm:$0xff]
    %v182 = vld [vmem:[#allocation2 + $0x3c8] sm:$0xff]
    %v183 = vld [vmem:[#allocation2 + $0x3d0] sm:$0xff]
    %v184 = vld [vmem:[#allocation2 + $0x3d8] sm:$0xff]
    %v185 = vld [vmem:[#allocation2 + $0x3e0] sm:$0xff]
    %v186 = vld [vmem:[#allocation2 + $0x3e8] sm:$0xff]
    %v187 = vld [vmem:[#allocation2 + $0x3f0] sm:$0xff]
    %v188 = vld [vmem:[#allocation2 + $0x3f8] sm:$0xff]
    %v317 = vunpack.c.l.b16 %v61
    %v318 = vunpack.c.h.b16 %v61
    %v319 = vunpack.c.l.b16 %v62
    %v320 = vunpack.c.h.b16 %v62
    %v321 = vunpack.c.l.b16 %v63
    %v322 = vunpack.c.h.b16 %v63
    %v323 = vunpack.c.l.b16 %v64
    %v324 = vunpack.c.h.b16 %v64
    %v325 = vunpack.c.l.b16 %v65
    %v326 = vunpack.c.h.b16 %v65
    %v327 = vunpack.c.l.b16 %v66
    %v328 = vunpack.c.h.b16 %v66
    %v329 = vunpack.c.l.b16 %v67
    %v330 = vunpack.c.h.b16 %v67
    %v331 = vunpack.c.l.b16 %v68
    %v332 = vunpack.c.h.b16 %v68
    %v333 = vunpack.c.l.b16 %v69
    %v334 = vunpack.c.h.b16 %v69
    %v335 = vunpack.c.l.b16 %v70
    %v336 = vunpack.c.h.b16 %v70
    %v337 = vunpack.c.l.b16 %v71
    %v338 = vunpack.c.h.b16 %v71
    %v339 = vunpack.c.l.b16 %v72
    %v340 = vunpack.c.h.b16 %v72
    %v341 = vunpack.c.l.b16 %v73
    %v342 = vunpack.c.h.b16 %v73
    %v343 = vunpack.c.l.b16 %v74
    %v344 = vunpack.c.h.b16 %v74
    %v345 = vunpack.c.l.b16 %v75
    %v346 = vunpack.c.h.b16 %v75
    %v347 = vunpack.c.l.b16 %v76
    %v348 = vunpack.c.h.b16 %v76
    %v349 = vunpack.c.l.b16 %v77
    %v350 = vunpack.c.h.b16 %v77
    %v351 = vunpack.c.l.b16 %v78
    %v352 = vunpack.c.h.b16 %v78
    %v353 = vunpack.c.l.b16 %v79
    %v354 = vunpack.c.h.b16 %v79
    %v355 = vunpack.c.l.b16 %v80
    %v356 = vunpack.c.h.b16 %v80
    %v357 = vunpack.c.l.b16 %v81
    %v358 = vunpack.c.h.b16 %v81
    %v359 = vunpack.c.l.b16 %v82
    %v360 = vunpack.c.h.b16 %v82
    %v361 = vunpack.c.l.b16 %v83
    %v362 = vunpack.c.h.b16 %v83
    %v363 = vunpack.c.l.b16 %v84
    %v364 = vunpack.c.h.b16 %v84
    %v365 = vunpack.c.l.b16 %v85
    %v366 = vunpack.c.h.b16 %v85
    %v367 = vunpack.c.l.b16 %v86
    %v368 = vunpack.c.h.b16 %v86
    %v369 = vunpack.c.l.b16 %v87
    %v370 = vunpack.c.h.b16 %v87
    %v371 = vunpack.c.l.b16 %v88
    %v372 = vunpack.c.h.b16 %v88
    %v373 = vunpack.c.l.b16 %v89
    %v374 = vunpack.c.h.b16 %v89
    %v375 = vunpack.c.l.b16 %v90
    %v376 = vunpack.c.h.b16 %v90
    %v377 = vunpack.c.l.b16 %v91
    %v378 = vunpack.c.h.b16 %v91
    %v379 = vunpack.c.l.b16 %v92
    %v380 = vunpack.c.h.b16 %v92
    %v381 = vunpack.c.l.b16 %v93
    %v382 = vunpack.c.h.b16 %v93
    %v383 = vunpack.c.l.b16 %v94
    %v384 = vunpack.c.h.b16 %v94
    %v385 = vunpack.c.l.b16 %v95
    %v386 = vunpack.c.h.b16 %v95
    %v387 = vunpack.c.l.b16 %v96
    %v388 = vunpack.c.h.b16 %v96
    %v389 = vunpack.c.l.b16 %v97
    %v390 = vunpack.c.h.b16 %v97
    %v391 = vunpack.c.l.b16 %v98
    %v392 = vunpack.c.h.b16 %v98
    %v393 = vunpack.c.l.b16 %v99
    %v394 = vunpack.c.h.b16 %v99
    %v395 = vunpack.c.l.b16 %v100
    %v396 = vunpack.c.h.b16 %v100
    %v397 = vunpack.c.l.b16 %v101
    %v398 = vunpack.c.h.b16 %v101
    %v399 = vunpack.c.l.b16 %v102
    %v400 = vunpack.c.h.b16 %v102
    %v401 = vunpack.c.l.b16 %v103
    %v402 = vunpack.c.h.b16 %v103
    %v403 = vunpack.c.l.b16 %v104
    %v404 = vunpack.c.h.b16 %v104
    %v405 = vunpack.c.l.b16 %v105
    %v406 = vunpack.c.h.b16 %v105
    %v407 = vunpack.c.l.b16 %v106
    %v408 = vunpack.c.h.b16 %v106
    %v409 = vunpack.c.l.b16 %v107
    %v410 = vunpack.c.h.b16 %v107
    %v411 = vunpack.c.l.b16 %v108
    %v412 = vunpack.c.h.b16 %v108
    %v413 = vunpack.c.l.b16 %v109
    %v414 = vunpack.c.h.b16 %v109
    %v415 = vunpack.c.l.b16 %v110
    %v416 = vunpack.c.h.b16 %v110
    %v417 = vunpack.c.l.b16 %v111
    %v418 = vunpack.c.h.b16 %v111
    %v419 = vunpack.c.l.b16 %v112
    %v420 = vunpack.c.h.b16 %v112
    %v421 = vunpack.c.l.b16 %v113
    %v422 = vunpack.c.h.b16 %v113
    %v423 = vunpack.c.l.b16 %v114
    %v424 = vunpack.c.h.b16 %v114
    %v425 = vunpack.c.l.b16 %v115
    %v426 = vunpack.c.h.b16 %v115
    %v427 = vunpack.c.l.b16 %v116
    %v428 = vunpack.c.h.b16 %v116
    %v429 = vunpack.c.l.b16 %v117
    %v430 = vunpack.c.h.b16 %v117
    %v431 = vunpack.c.l.b16 %v118
    %v432 = vunpack.c.h.b16 %v118
    %v433 = vunpack.c.l.b16 %v119
    %v434 = vunpack.c.h.b16 %v119
    %v435 = vunpack.c.l.b16 %v120
    %v436 = vunpack.c.h.b16 %v120
    %v437 = vunpack.c.l.b16 %v121
    %v438 = vunpack.c.h.b16 %v121
    %v439 = vunpack.c.l.b16 %v122
    %v440 = vunpack.c.h.b16 %v122
    %v441 = vunpack.c.l.b16 %v123
    %v442 = vunpack.c.h.b16 %v123
    %v443 = vunpack.c.l.b16 %v124
    %v444 = vunpack.c.h.b16 %v124
    %v445 = vunpack.c.l.b16 %v125
    %v446 = vunpack.c.h.b16 %v125
    %v447 = vunpack.c.l.b16 %v126
    %v448 = vunpack.c.h.b16 %v126
    %v449 = vunpack.c.l.b16 %v127
    %v450 = vunpack.c.h.b16 %v127
    %v451 = vunpack.c.l.b16 %v128
    %v452 = vunpack.c.h.b16 %v128
    %v453 = vunpack.c.l.b16 %v129
    %v454 = vunpack.c.h.b16 %v129
    %v455 = vunpack.c.l.b16 %v130
    %v456 = vunpack.c.h.b16 %v130
    %v457 = vunpack.c.l.b16 %v131
    %v458 = vunpack.c.h.b16 %v131
    %v459 = vunpack.c.l.b16 %v132
    %v460 = vunpack.c.h.b16 %v132
    %v461 = vunpack.c.l.b16 %v133
    %v462 = vunpack.c.h.b16 %v133
    %v463 = vunpack.c.l.b16 %v134
    %v464 = vunpack.c.h.b16 %v134
    %v465 = vunpack.c.l.b16 %v135
    %v466 = vunpack.c.h.b16 %v135
    %v467 = vunpack.c.l.b16 %v136
    %v468 = vunpack.c.h.b16 %v136
    %v469 = vunpack.c.l.b16 %v137
    %v470 = vunpack.c.h.b16 %v137
    %v471 = vunpack.c.l.b16 %v138
    %v472 = vunpack.c.h.b16 %v138
    %v473 = vunpack.c.l.b16 %v139
    %v474 = vunpack.c.h.b16 %v139
    %v475 = vunpack.c.l.b16 %v140
    %v476 = vunpack.c.h.b16 %v140
    %v477 = vunpack.c.l.b16 %v141
    %v478 = vunpack.c.h.b16 %v141
    %v479 = vunpack.c.l.b16 %v142
    %v480 = vunpack.c.h.b16 %v142
    %v481 = vunpack.c.l.b16 %v143
    %v482 = vunpack.c.h.b16 %v143
    %v483 = vunpack.c.l.b16 %v144
    %v484 = vunpack.c.h.b16 %v144
    %v485 = vunpack.c.l.b16 %v145
    %v486 = vunpack.c.h.b16 %v145
    %v487 = vunpack.c.l.b16 %v146
    %v488 = vunpack.c.h.b16 %v146
    %v489 = vunpack.c.l.b16 %v147
    %v490 = vunpack.c.h.b16 %v147
    %v491 = vunpack.c.l.b16 %v148
    %v492 = vunpack.c.h.b16 %v148
    %v493 = vunpack.c.l.b16 %v149
    %v494 = vunpack.c.h.b16 %v149
    %v495 = vunpack.c.l.b16 %v150
    %v496 = vunpack.c.h.b16 %v150
    %v497 = vunpack.c.l.b16 %v151
    %v498 = vunpack.c.h.b16 %v151
    %v499 = vunpack.c.l.b16 %v152
    %v500 = vunpack.c.h.b16 %v152
    %v501 = vunpack.c.l.b16 %v153
    %v502 = vunpack.c.h.b16 %v153
    %v503 = vunpack.c.l.b16 %v154
    %v504 = vunpack.c.h.b16 %v154
    %v505 = vunpack.c.l.b16 %v155
    %v506 = vunpack.c.h.b16 %v155
    %v507 = vunpack.c.l.b16 %v156
    %v508 = vunpack.c.h.b16 %v156
    %v509 = vunpack.c.l.b16 %v157
    %v510 = vunpack.c.h.b16 %v157
    %v511 = vunpack.c.l.b16 %v158
    %v512 = vunpack.c.h.b16 %v158
    %v513 = vunpack.c.l.b16 %v159
    %v514 = vunpack.c.h.b16 %v159
    %v515 = vunpack.c.l.b16 %v160
    %v516 = vunpack.c.h.b16 %v160
    %v517 = vunpack.c.l.b16 %v161
    %v518 = vunpack.c.h.b16 %v161
    %v519 = vunpack.c.l.b16 %v162
    %v520 = vunpack.c.h.b16 %v162
    %v521 = vunpack.c.l.b16 %v163
    %v522 = vunpack.c.h.b16 %v163
    %v523 = vunpack.c.l.b16 %v164
    %v524 = vunpack.c.h.b16 %v164
    %v525 = vunpack.c.l.b16 %v165
    %v526 = vunpack.c.h.b16 %v165
    %v527 = vunpack.c.l.b16 %v166
    %v528 = vunpack.c.h.b16 %v166
    %v529 = vunpack.c.l.b16 %v167
    %v530 = vunpack.c.h.b16 %v167
    %v531 = vunpack.c.l.b16 %v168
    %v532 = vunpack.c.h.b16 %v168
    %v533 = vunpack.c.l.b16 %v169
    %v534 = vunpack.c.h.b16 %v169
    %v535 = vunpack.c.l.b16 %v170
    %v536 = vunpack.c.h.b16 %v170
    %v537 = vunpack.c.l.b16 %v171
    %v538 = vunpack.c.h.b16 %v171
    %v539 = vunpack.c.l.b16 %v172
    %v540 = vunpack.c.h.b16 %v172
    %v541 = vunpack.c.l.b16 %v173
    %v542 = vunpack.c.h.b16 %v173
    %v543 = vunpack.c.l.b16 %v174
    %v544 = vunpack.c.h.b16 %v174
    %v545 = vunpack.c.l.b16 %v175
    %v546 = vunpack.c.h.b16 %v175
    %v547 = vunpack.c.l.b16 %v176
    %v548 = vunpack.c.h.b16 %v176
    %v549 = vunpack.c.l.b16 %v177
    %v550 = vunpack.c.h.b16 %v177
    %v551 = vunpack.c.l.b16 %v178
    %v552 = vunpack.c.h.b16 %v178
    %v553 = vunpack.c.l.b16 %v179
    %v554 = vunpack.c.h.b16 %v179
    %v555 = vunpack.c.l.b16 %v180
    %v556 = vunpack.c.h.b16 %v180
    %v557 = vunpack.c.l.b16 %v181
    %v558 = vunpack.c.h.b16 %v181
    %v559 = vunpack.c.l.b16 %v182
    %v560 = vunpack.c.h.b16 %v182
    %v561 = vunpack.c.l.b16 %v183
    %v562 = vunpack.c.h.b16 %v183
    %v563 = vunpack.c.l.b16 %v184
    %v564 = vunpack.c.h.b16 %v184
    %v565 = vunpack.c.l.b16 %v185
    %v566 = vunpack.c.h.b16 %v185
    %v567 = vunpack.c.l.b16 %v186
    %v568 = vunpack.c.h.b16 %v186
    %v569 = vunpack.c.l.b16 %v187
    %v570 = vunpack.c.h.b16 %v187
    %v571 = vunpack.c.l.b16 %v188
    %v572 = vunpack.c.h.b16 %v188
    %v573 = vpack.c.b16 %v333, %v317
    %v574 = vpack.c.b16 %v334, %v318
    %v575 = vpack.c.b16 %v335, %v319
    %v576 = vpack.c.b16 %v336, %v320
    %v577 = vpack.c.b16 %v337, %v321
    %v578 = vpack.c.b16 %v338, %v322
    %v579 = vpack.c.b16 %v339, %v323
    %v580 = vpack.c.b16 %v340, %v324
    %v581 = vpack.c.b16 %v341, %v325
    %v582 = vpack.c.b16 %v342, %v326
    %v583 = vpack.c.b16 %v343, %v327
    %v584 = vpack.c.b16 %v344, %v328
    %v585 = vpack.c.b16 %v345, %v329
    %v586 = vpack.c.b16 %v346, %v330
    %v587 = vpack.c.b16 %v347, %v331
    %v588 = vpack.c.b16 %v348, %v332
    %v589 = vpack.c.b16 %v365, %v349
    %v590 = vpack.c.b16 %v366, %v350
    %v591 = vpack.c.b16 %v367, %v351
    %v592 = vpack.c.b16 %v368, %v352
    %v593 = vpack.c.b16 %v369, %v353
    %v594 = vpack.c.b16 %v370, %v354
    %v595 = vpack.c.b16 %v371, %v355
    %v596 = vpack.c.b16 %v372, %v356
    %v597 = vpack.c.b16 %v373, %v357
    %v598 = vpack.c.b16 %v374, %v358
    %v599 = vpack.c.b16 %v375, %v359
    %v600 = vpack.c.b16 %v376, %v360
    %v601 = vpack.c.b16 %v377, %v361
    %v602 = vpack.c.b16 %v378, %v362
    %v603 = vpack.c.b16 %v379, %v363
    %v604 = vpack.c.b16 %v380, %v364
    %v605 = vpack.c.b16 %v397, %v381
    %v606 = vpack.c.b16 %v398, %v382
    %v607 = vpack.c.b16 %v399, %v383
    %v608 = vpack.c.b16 %v400, %v384
    %v609 = vpack.c.b16 %v401, %v385
    %v610 = vpack.c.b16 %v402, %v386
    %v611 = vpack.c.b16 %v403, %v387
    %v612 = vpack.c.b16 %v404, %v388
    %v613 = vpack.c.b16 %v405, %v389
    %v614 = vpack.c.b16 %v406, %v390
    %v615 = vpack.c.b16 %v407, %v391
    %v616 = vpack.c.b16 %v408, %v392
    %v617 = vpack.c.b16 %v409, %v393
    %v618 = vpack.c.b16 %v410, %v394
    %v619 = vpack.c.b16 %v411, %v395
    %v620 = vpack.c.b16 %v412, %v396
    %v621 = vpack.c.b16 %v429, %v413
    %v622 = vpack.c.b16 %v430, %v414
    %v623 = vpack.c.b16 %v431, %v415
    %v624 = vpack.c.b16 %v432, %v416
    %v625 = vpack.c.b16 %v433, %v417
    %v626 = vpack.c.b16 %v434, %v418
    %v627 = vpack.c.b16 %v435, %v419
    %v628 = vpack.c.b16 %v436, %v420
    %v629 = vpack.c.b16 %v437, %v421
    %v630 = vpack.c.b16 %v438, %v422
    %v631 = vpack.c.b16 %v439, %v423
    %v632 = vpack.c.b16 %v440, %v424
    %v633 = vpack.c.b16 %v441, %v425
    %v634 = vpack.c.b16 %v442, %v426
    %v635 = vpack.c.b16 %v443, %v427
    %v636 = vpack.c.b16 %v444, %v428
    %v637 = vpack.c.b16 %v461, %v445
    %v638 = vpack.c.b16 %v462, %v446
    %v639 = vpack.c.b16 %v463, %v447
    %v640 = vpack.c.b16 %v464, %v448
    %v641 = vpack.c.b16 %v465, %v449
    %v642 = vpack.c.b16 %v466, %v450
    %v643 = vpack.c.b16 %v467, %v451
    %v644 = vpack.c.b16 %v468, %v452
    %v645 = vpack.c.b16 %v469, %v453
    %v646 = vpack.c.b16 %v470, %v454
    %v647 = vpack.c.b16 %v471, %v455
    %v648 = vpack.c.b16 %v472, %v456
    %v649 = vpack.c.b16 %v473, %v457
    %v650 = vpack.c.b16 %v474, %v458
    %v651 = vpack.c.b16 %v475, %v459
    %v652 = vpack.c.b16 %v476, %v460
    %v653 = vpack.c.b16 %v493, %v477
    %v654 = vpack.c.b16 %v494, %v478
    %v655 = vpack.c.b16 %v495, %v479
    %v656 = vpack.c.b16 %v496, %v480
    %v657 = vpack.c.b16 %v497, %v481
    %v658 = vpack.c.b16 %v498, %v482
    %v659 = vpack.c.b16 %v499, %v483
    %v660 = vpack.c.b16 %v500, %v484
    %v661 = vpack.c.b16 %v501, %v485
    %v662 = vpack.c.b16 %v502, %v486
    %v663 = vpack.c.b16 %v503, %v487
    %v664 = vpack.c.b16 %v504, %v488
    %v665 = vpack.c.b16 %v505, %v489
    %v666 = vpack.c.b16 %v506, %v490
    %v667 = vpack.c.b16 %v507, %v491
    %v668 = vpack.c.b16 %v508, %v492
    %v669 = vpack.c.b16 %v525, %v509
    %v670 = vpack.c.b16 %v526, %v510
    %v671 = vpack.c.b16 %v527, %v511
    %v672 = vpack.c.b16 %v528, %v512
    %v673 = vpack.c.b16 %v529, %v513
    %v674 = vpack.c.b16 %v530, %v514
    %v675 = vpack.c.b16 %v531, %v515
    %v676 = vpack.c.b16 %v532, %v516
    %v677 = vpack.c.b16 %v533, %v517
    %v678 = vpack.c.b16 %v534, %v518
    %v679 = vpack.c.b16 %v535, %v519
    %v680 = vpack.c.b16 %v536, %v520
    %v681 = vpack.c.b16 %v537, %v521
    %v682 = vpack.c.b16 %v538, %v522
    %v683 = vpack.c.b16 %v539, %v523
    %v684 = vpack.c.b16 %v540, %v524
    %v685 = vpack.c.b16 %v557, %v541
    %v686 = vpack.c.b16 %v558, %v542
    %v687 = vpack.c.b16 %v559, %v543
    %v688 = vpack.c.b16 %v560, %v544
    %v689 = vpack.c.b16 %v561, %v545
    %v690 = vpack.c.b16 %v562, %v546
    %v691 = vpack.c.b16 %v563, %v547
    %v692 = vpack.c.b16 %v564, %v548
    %v693 = vpack.c.b16 %v565, %v549
    %v694 = vpack.c.b16 %v566, %v550
    %v695 = vpack.c.b16 %v567, %v551
    %v696 = vpack.c.b16 %v568, %v552
    %v697 = vpack.c.b16 %v569, %v553
    %v698 = vpack.c.b16 %v570, %v554
    %v699 = vpack.c.b16 %v571, %v555
    %v700 = vpack.c.b16 %v572, %v556
    %829 = vmatpush.bf16.msra.mxu0 %v685
    %830 = vmatpush.bf16.msra.mxu0 %v669
    %831 = vmatpush.bf16.msra.mxu0 %v653
    %832 = vmatpush.bf16.msra.mxu0 %v637
    %833 = vmatpush.bf16.msra.mxu0 %v621
    %834 = vmatpush.bf16.msra.mxu0 %v605
    %835 = vmatpush.bf16.msra.mxu0 %v589
    %836 = vmatpush.bf16.msra.mxu0 %v573
    %837 = vmatmul.bf16.gmra.mxu0 %v60
    %v838 = vpop.f32.mrf.mxu0
    %v839 = vadd.f32 0.0, %v838
    %v840 = vpop.f32.mrf.mxu0
    %841 = vdwg.mxu0
    %842 = vmatpush.bf16.msra.mxu0 %v686
    %843 = vmatpush.bf16.msra.mxu0 %v670
    %844 = vmatpush.bf16.msra.mxu0 %v654
    %845 = vmatpush.bf16.msra.mxu0 %v638
    %846 = vmatpush.bf16.msra.mxu0 %v622
    %847 = vmatpush.bf16.msra.mxu0 %v606
    %848 = vmatpush.bf16.msra.mxu0 %v590
    %849 = vmatpush.bf16.msra.mxu0 %v574
    %850 = vmatmul.bf16.gmra.mxu0 %v60
    %v851 = vpop.f32.mrf.mxu0
    %v852 = vadd.f32 0.0, %v851
    %v853 = vpop.f32.mrf.mxu0
    %854 = vdwg.mxu0
    %855 = vmatpush.bf16.msra.mxu0 %v687
    %856 = vmatpush.bf16.msra.mxu0 %v671
    %857 = vmatpush.bf16.msra.mxu0 %v655
    %858 = vmatpush.bf16.msra.mxu0 %v639
    %859 = vmatpush.bf16.msra.mxu0 %v623
    %860 = vmatpush.bf16.msra.mxu0 %v607
    %861 = vmatpush.bf16.msra.mxu0 %v591
    %862 = vmatpush.bf16.msra.mxu0 %v575
    %863 = vmatmul.bf16.gmra.mxu0 %v60
    %v864 = vpop.f32.mrf.mxu0
    %v865 = vadd.f32 0.0, %v864
    %v866 = vpop.f32.mrf.mxu0
    %867 = vdwg.mxu0
    %868 = vmatpush.bf16.msra.mxu0 %v688
    %869 = vmatpush.bf16.msra.mxu0 %v672
    %870 = vmatpush.bf16.msra.mxu0 %v656
    %871 = vmatpush.bf16.msra.mxu0 %v640
    %872 = vmatpush.bf16.msra.mxu0 %v624
    %873 = vmatpush.bf16.msra.mxu0 %v608
    %874 = vmatpush.bf16.msra.mxu0 %v592
    %875 = vmatpush.bf16.msra.mxu0 %v576
    %876 = vmatmul.bf16.gmra.mxu0 %v60
    %v877 = vpop.f32.mrf.mxu0
    %v878 = vadd.f32 0.0, %v877
    %v879 = vpop.f32.mrf.mxu0
    %880 = vdwg.mxu0
    %881 = vmatpush.bf16.msra.mxu0 %v689
    %882 = vmatpush.bf16.msra.mxu0 %v673
    %883 = vmatpush.bf16.msra.mxu0 %v657
    %884 = vmatpush.bf16.msra.mxu0 %v641
    %885 = vmatpush.bf16.msra.mxu0 %v625
    %886 = vmatpush.bf16.msra.mxu0 %v609
    %887 = vmatpush.bf16.msra.mxu0 %v593
    %888 = vmatpush.bf16.msra.mxu0 %v577
    %889 = vmatmul.bf16.gmra.mxu0 %v60
    %v890 = vpop.f32.mrf.mxu0
    %v891 = vadd.f32 0.0, %v890
    %v892 = vpop.f32.mrf.mxu0
    %893 = vdwg.mxu0
    %894 = vmatpush.bf16.msra.mxu0 %v690
    %895 = vmatpush.bf16.msra.mxu0 %v674
    %896 = vmatpush.bf16.msra.mxu0 %v658
    %897 = vmatpush.bf16.msra.mxu0 %v642
    %898 = vmatpush.bf16.msra.mxu0 %v626
    %899 = vmatpush.bf16.msra.mxu0 %v610
    %900 = vmatpush.bf16.msra.mxu0 %v594
    %901 = vmatpush.bf16.msra.mxu0 %v578
    %902 = vmatmul.bf16.gmra.mxu0 %v60
    %v903 = vpop.f32.mrf.mxu0
    %v904 = vadd.f32 0.0, %v903
    %v905 = vpop.f32.mrf.mxu0
    %906 = vdwg.mxu0
    %907 = vmatpush.bf16.msra.mxu0 %v691
    %908 = vmatpush.bf16.msra.mxu0 %v675
    %909 = vmatpush.bf16.msra.mxu0 %v659
    %910 = vmatpush.bf16.msra.mxu0 %v643
    %911 = vmatpush.bf16.msra.mxu0 %v627
    %912 = vmatpush.bf16.msra.mxu0 %v611
    %913 = vmatpush.bf16.msra.mxu0 %v595
    %914 = vmatpush.bf16.msra.mxu0 %v579
    %915 = vmatmul.bf16.gmra.mxu0 %v60
    %v916 = vpop.f32.mrf.mxu0
    %v917 = vadd.f32 0.0, %v916
    %v918 = vpop.f32.mrf.mxu0
    %919 = vdwg.mxu0
    %920 = vmatpush.bf16.msra.mxu0 %v692
    %921 = vmatpush.bf16.msra.mxu0 %v676
    %922 = vmatpush.bf16.msra.mxu0 %v660
    %923 = vmatpush.bf16.msra.mxu0 %v644
    %924 = vmatpush.bf16.msra.mxu0 %v628
    %925 = vmatpush.bf16.msra.mxu0 %v612
    %926 = vmatpush.bf16.msra.mxu0 %v596
    %927 = vmatpush.bf16.msra.mxu0 %v580
    %928 = vmatmul.bf16.gmra.mxu0 %v60
    %v929 = vpop.f32.mrf.mxu0
    %v930 = vadd.f32 0.0, %v929
    %v931 = vpop.f32.mrf.mxu0
    %932 = vdwg.mxu0
    %933 = vmatpush.bf16.msra.mxu0 %v693
    %934 = vmatpush.bf16.msra.mxu0 %v677
    %935 = vmatpush.bf16.msra.mxu0 %v661
    %936 = vmatpush.bf16.msra.mxu0 %v645
    %937 = vmatpush.bf16.msra.mxu0 %v629
    %938 = vmatpush.bf16.msra.mxu0 %v613
    %939 = vmatpush.bf16.msra.mxu0 %v597
    %940 = vmatpush.bf16.msra.mxu0 %v581
    %941 = vmatmul.bf16.gmra.mxu0 %v60
    %v942 = vpop.f32.mrf.mxu0
    %v943 = vadd.f32 0.0, %v942
    %v944 = vpop.f32.mrf.mxu0
    %945 = vdwg.mxu0
    %946 = vmatpush.bf16.msra.mxu0 %v694
    %947 = vmatpush.bf16.msra.mxu0 %v678
    %948 = vmatpush.bf16.msra.mxu0 %v662
    %949 = vmatpush.bf16.msra.mxu0 %v646
    %950 = vmatpush.bf16.msra.mxu0 %v630
    %951 = vmatpush.bf16.msra.mxu0 %v614
    %952 = vmatpush.bf16.msra.mxu0 %v598
    %953 = vmatpush.bf16.msra.mxu0 %v582
    %954 = vmatmul.bf16.gmra.mxu0 %v60
    %v955 = vpop.f32.mrf.mxu0
    %v956 = vadd.f32 0.0, %v955
    %v957 = vpop.f32.mrf.mxu0
    %958 = vdwg.mxu0
    %959 = vmatpush.bf16.msra.mxu0 %v695
    %960 = vmatpush.bf16.msra.mxu0 %v679
    %961 = vmatpush.bf16.msra.mxu0 %v663
    %962 = vmatpush.bf16.msra.mxu0 %v647
    %963 = vmatpush.bf16.msra.mxu0 %v631
    %964 = vmatpush.bf16.msra.mxu0 %v615
    %965 = vmatpush.bf16.msra.mxu0 %v599
    %966 = vmatpush.bf16.msra.mxu0 %v583
    %967 = vmatmul.bf16.gmra.mxu0 %v60
    %v968 = vpop.f32.mrf.mxu0
    %v969 = vadd.f32 0.0, %v968
    %v970 = vpop.f32.mrf.mxu0
    %971 = vdwg.mxu0
    %972 = vmatpush.bf16.msra.mxu0 %v696
    %973 = vmatpush.bf16.msra.mxu0 %v680
    %974 = vmatpush.bf16.msra.mxu0 %v664
    %975 = vmatpush.bf16.msra.mxu0 %v648
    %976 = vmatpush.bf16.msra.mxu0 %v632
    %977 = vmatpush.bf16.msra.mxu0 %v616
    %978 = vmatpush.bf16.msra.mxu0 %v600
    %979 = vmatpush.bf16.msra.mxu0 %v584
    %980 = vmatmul.bf16.gmra.mxu0 %v60
    %v981 = vpop.f32.mrf.mxu0
    %v982 = vadd.f32 0.0, %v981
    %v983 = vpop.f32.mrf.mxu0
    %984 = vdwg.mxu0
    %985 = vmatpush.bf16.msra.mxu0 %v697
    %986 = vmatpush.bf16.msra.mxu0 %v681
    %987 = vmatpush.bf16.msra.mxu0 %v665
    %988 = vmatpush.bf16.msra.mxu0 %v649
    %989 = vmatpush.bf16.msra.mxu0 %v633
    %990 = vmatpush.bf16.msra.mxu0 %v617
    %991 = vmatpush.bf16.msra.mxu0 %v601
    %992 = vmatpush.bf16.msra.mxu0 %v585
    %993 = vmatmul.bf16.gmra.mxu0 %v60
    %v994 = vpop.f32.mrf.mxu0
    %v995 = vadd.f32 0.0, %v994
    %v996 = vpop.f32.mrf.mxu0
    %997 = vdwg.mxu0
    %998 = vmatpush.bf16.msra.mxu0 %v698
    %999 = vmatpush.bf16.msra.mxu0 %v682
    %1000 = vmatpush.bf16.msra.mxu0 %v666
    %1001 = vmatpush.bf16.msra.mxu0 %v650
    %1002 = vmatpush.bf16.msra.mxu0 %v634
    %1003 = vmatpush.bf16.msra.mxu0 %v618
    %1004 = vmatpush.bf16.msra.mxu0 %v602
    %1005 = vmatpush.bf16.msra.mxu0 %v586
    %1006 = vmatmul.bf16.gmra.mxu0 %v60
    %v1007 = vpop.f32.mrf.mxu0
    %v1008 = vadd.f32 0.0, %v1007
    %v1009 = vpop.f32.mrf.mxu0
    %1010 = vdwg.mxu0
    %1011 = vmatpush.bf16.msra.mxu0 %v699
    %1012 = vmatpush.bf16.msra.mxu0 %v683
    %1013 = vmatpush.bf16.msra.mxu0 %v667
    %1014 = vmatpush.bf16.msra.mxu0 %v651
    %1015 = vmatpush.bf16.msra.mxu0 %v635
    %1016 = vmatpush.bf16.msra.mxu0 %v619
    %1017 = vmatpush.bf16.msra.mxu0 %v603
    %1018 = vmatpush.bf16.msra.mxu0 %v587
    %1019 = vmatmul.bf16.gmra.mxu0 %v60
    %v1020 = vpop.f32.mrf.mxu0
    %v1021 = vadd.f32 0.0, %v1020
    %v1022 = vpop.f32.mrf.mxu0
    %1023 = vdwg.mxu0
    %1024 = vmatpush.bf16.msra.mxu0 %v700
    %1025 = vmatpush.bf16.msra.mxu0 %v684
    %1026 = vmatpush.bf16.msra.mxu0 %v668
    %1027 = vmatpush.bf16.msra.mxu0 %v652
    %1028 = vmatpush.bf16.msra.mxu0 %v636
    %1029 = vmatpush.bf16.msra.mxu0 %v620
    %1030 = vmatpush.bf16.msra.mxu0 %v604
    %1031 = vmatpush.bf16.msra.mxu0 %v588
    %1032 = vmatmul.bf16.gmra.mxu0 %v60
    %v1033 = vpop.f32.mrf.mxu0
    %v1034 = vadd.f32 0.0, %v1033
    %v1035 = vpop.f32.mrf.mxu0
    %1036 = vdwg.mxu0
    %vm1037 = vcmask 1041408
    %v1038 = vsel %vm1037, %v839, 0.0
    %v1039 = vrot.slane %v1038, 4
    %v1040 = vadd.f32 %v1038, %v1039
    %v1041 = vrot.slane %v1040, 2
    %v1042 = vadd.f32 %v1040, %v1041
    %v1043 = vrot.slane %v1042, 1
    %v1044 = vadd.f32 %v1042, %v1043
    %v1045 = vsel %vm1037, %v852, 0.0
    %v1046 = vrot.slane %v1045, 4
    %v1047 = vadd.f32 %v1045, %v1046
    %v1048 = vrot.slane %v1047, 2
    %v1049 = vadd.f32 %v1047, %v1048
    %v1050 = vrot.slane %v1049, 1
    %v1051 = vadd.f32 %v1049, %v1050
    %v1052 = vsel %vm1037, %v865, 0.0
    %v1053 = vrot.slane %v1052, 4
    %v1054 = vadd.f32 %v1052, %v1053
    %v1055 = vrot.slane %v1054, 2
    %v1056 = vadd.f32 %v1054, %v1055
    %v1057 = vrot.slane %v1056, 1
    %v1058 = vadd.f32 %v1056, %v1057
    %v1059 = vsel %vm1037, %v878, 0.0
    %v1060 = vrot.slane %v1059, 4
    %v1061 = vadd.f32 %v1059, %v1060
    %v1062 = vrot.slane %v1061, 2
    %v1063 = vadd.f32 %v1061, %v1062
    %v1064 = vrot.slane %v1063, 1
    %v1065 = vadd.f32 %v1063, %v1064
    %v1066 = vsel %vm1037, %v891, 0.0
    %v1067 = vrot.slane %v1066, 4
    %v1068 = vadd.f32 %v1066, %v1067
    %v1069 = vrot.slane %v1068, 2
    %v1070 = vadd.f32 %v1068, %v1069
    %v1071 = vrot.slane %v1070, 1
    %v1072 = vadd.f32 %v1070, %v1071
    %v1073 = vsel %vm1037, %v904, 0.0
    %v1074 = vrot.slane %v1073, 4
    %v1075 = vadd.f32 %v1073, %v1074
    %v1076 = vrot.slane %v1075, 2
    %v1077 = vadd.f32 %v1075, %v1076
    %v1078 = vrot.slane %v1077, 1
    %v1079 = vadd.f32 %v1077, %v1078
    %v1080 = vsel %vm1037, %v917, 0.0
    %v1081 = vrot.slane %v1080, 4
    %v1082 = vadd.f32 %v1080, %v1081
    %v1083 = vrot.slane %v1082, 2
    %v1084 = vadd.f32 %v1082, %v1083
    %v1085 = vrot.slane %v1084, 1
    %v1086 = vadd.f32 %v1084, %v1085
    %v1087 = vsel %vm1037, %v930, 0.0
    %v1088 = vrot.slane %v1087, 4
    %v1089 = vadd.f32 %v1087, %v1088
    %v1090 = vrot.slane %v1089, 2
    %v1091 = vadd.f32 %v1089, %v1090
    %v1092 = vrot.slane %v1091, 1
    %v1093 = vadd.f32 %v1091, %v1092
    %v1094 = vsel %vm1037, %v943, 0.0
    %v1095 = vrot.slane %v1094, 4
    %v1096 = vadd.f32 %v1094, %v1095
    %v1097 = vrot.slane %v1096, 2
    %v1098 = vadd.f32 %v1096, %v1097
    %v1099 = vrot.slane %v1098, 1
    %v1100 = vadd.f32 %v1098, %v1099
    %v1101 = vsel %vm1037, %v956, 0.0
    %v1102 = vrot.slane %v1101, 4
    %v1103 = vadd.f32 %v1101, %v1102
    %v1104 = vrot.slane %v1103, 2
    %v1105 = vadd.f32 %v1103, %v1104
    %v1106 = vrot.slane %v1105, 1
    %v1107 = vadd.f32 %v1105, %v1106
    %v1108 = vsel %vm1037, %v969, 0.0
    %v1109 = vrot.slane %v1108, 4
    %v1110 = vadd.f32 %v1108, %v1109
    %v1111 = vrot.slane %v1110, 2
    %v1112 = vadd.f32 %v1110, %v1111
    %v1113 = vrot.slane %v1112, 1
    %v1114 = vadd.f32 %v1112, %v1113
    %v1115 = vsel %vm1037, %v982, 0.0
    %v1116 = vrot.slane %v1115, 4
    %v1117 = vadd.f32 %v1115, %v1116
    %v1118 = vrot.slane %v1117, 2
    %v1119 = vadd.f32 %v1117, %v1118
    %v1120 = vrot.slane %v1119, 1
    %v1121 = vadd.f32 %v1119, %v1120
    %v1122 = vsel %vm1037, %v995, 0.0
    %v1123 = vrot.slane %v1122, 4
    %v1124 = vadd.f32 %v1122, %v1123
    %v1125 = vrot.slane %v1124, 2
    %v1126 = vadd.f32 %v1124, %v1125
    %v1127 = vrot.slane %v1126, 1
    %v1128 = vadd.f32 %v1126, %v1127
    %v1129 = vsel %vm1037, %v1008, 0.0
    %v1130 = vrot.slane %v1129, 4
    %v1131 = vadd.f32 %v1129, %v1130
    %v1132 = vrot.slane %v1131, 2
    %v1133 = vadd.f32 %v1131, %v1132
    %v1134 = vrot.slane %v1133, 1
    %v1135 = vadd.f32 %v1133, %v1134
    %v1136 = vsel %vm1037, %v1021, 0.0
    %v1137 = vrot.slane %v1136, 4
    %v1138 = vadd.f32 %v1136, %v1137
    %v1139 = vrot.slane %v1138, 2
    %v1140 = vadd.f32 %v1138, %v1139
    %v1141 = vrot.slane %v1140, 1
    %v1142 = vadd.f32 %v1140, %v1141
    %v1143 = vsel %vm1037, %v1034, 0.0
    %v1144 = vrot.slane %v1143, 4
    %v1145 = vadd.f32 %v1143, %v1144
    %v1146 = vrot.slane %v1145, 2
    %v1147 = vadd.f32 %v1145, %v1146
    %v1148 = vrot.slane %v1147, 1
    %v1149 = vadd.f32 %v1147, %v1148
    %v1150 = vmul.f32 %v839, %v839
    %v1151 = vmul.f32 %v852, %v852
    %v1152 = vmul.f32 %v865, %v865
    %v1153 = vmul.f32 %v878, %v878
    %v1154 = vmul.f32 %v891, %v891
    %v1155 = vmul.f32 %v904, %v904
    %v1156 = vmul.f32 %v917, %v917
    %v1157 = vmul.f32 %v930, %v930
    %v1158 = vmul.f32 %v943, %v943
    %v1159 = vmul.f32 %v956, %v956
    %v1160 = vmul.f32 %v969, %v969
    %v1161 = vmul.f32 %v982, %v982
    %v1162 = vmul.f32 %v995, %v995
    %v1163 = vmul.f32 %v1008, %v1008
    %v1164 = vmul.f32 %v1021, %v1021
    %v1165 = vmul.f32 %v1034, %v1034
    %v1166 = vsel %vm1037, %v1150, 0.0
    %v1167 = vrot.slane %v1166, 4
    %v1168 = vadd.f32 %v1166, %v1167
    %v1169 = vrot.slane %v1168, 2
    %v1170 = vadd.f32 %v1168, %v1169
    %v1171 = vrot.slane %v1170, 1
    %v1172 = vadd.f32 %v1170, %v1171
    %v1173 = vsel %vm1037, %v1151, 0.0
    %v1174 = vrot.slane %v1173, 4
    %v1175 = vadd.f32 %v1173, %v1174
    %v1176 = vrot.slane %v1175, 2
    %v1177 = vadd.f32 %v1175, %v1176
    %v1178 = vrot.slane %v1177, 1
    %v1179 = vadd.f32 %v1177, %v1178
    %v1180 = vsel %vm1037, %v1152, 0.0
    %v1181 = vrot.slane %v1180, 4
    %v1182 = vadd.f32 %v1180, %v1181
    %v1183 = vrot.slane %v1182, 2
    %v1184 = vadd.f32 %v1182, %v1183
    %v1185 = vrot.slane %v1184, 1
    %v1186 = vadd.f32 %v1184, %v1185
    %v1187 = vsel %vm1037, %v1153, 0.0
    %v1188 = vrot.slane %v1187, 4
    %v1189 = vadd.f32 %v1187, %v1188
    %v1190 = vrot.slane %v1189, 2
    %v1191 = vadd.f32 %v1189, %v1190
    %v1192 = vrot.slane %v1191, 1
    %v1193 = vadd.f32 %v1191, %v1192
    %v1194 = vsel %vm1037, %v1154, 0.0
    %v1195 = vrot.slane %v1194, 4
    %v1196 = vadd.f32 %v1194, %v1195
    %v1197 = vrot.slane %v1196, 2
    %v1198 = vadd.f32 %v1196, %v1197
    %v1199 = vrot.slane %v1198, 1
    %v1200 = vadd.f32 %v1198, %v1199
    %v1201 = vsel %vm1037, %v1155, 0.0
    %v1202 = vrot.slane %v1201, 4
    %v1203 = vadd.f32 %v1201, %v1202
    %v1204 = vrot.slane %v1203, 2
    %v1205 = vadd.f32 %v1203, %v1204
    %v1206 = vrot.slane %v1205, 1
    %v1207 = vadd.f32 %v1205, %v1206
    %v1208 = vsel %vm1037, %v1156, 0.0
    %v1209 = vrot.slane %v1208, 4
    %v1210 = vadd.f32 %v1208, %v1209
    %v1211 = vrot.slane %v1210, 2
    %v1212 = vadd.f32 %v1210, %v1211
    %v1213 = vrot.slane %v1212, 1
    %v1214 = vadd.f32 %v1212, %v1213
    %v1215 = vsel %vm1037, %v1157, 0.0
    %v1216 = vrot.slane %v1215, 4
    %v1217 = vadd.f32 %v1215, %v1216
    %v1218 = vrot.slane %v1217, 2
    %v1219 = vadd.f32 %v1217, %v1218
    %v1220 = vrot.slane %v1219, 1
    %v1221 = vadd.f32 %v1219, %v1220
    %v1222 = vsel %vm1037, %v1158, 0.0
    %v1223 = vrot.slane %v1222, 4
    %v1224 = vadd.f32 %v1222, %v1223
    %v1225 = vrot.slane %v1224, 2
    %v1226 = vadd.f32 %v1224, %v1225
    %v1227 = vrot.slane %v1226, 1
    %v1228 = vadd.f32 %v1226, %v1227
    %v1229 = vsel %vm1037, %v1159, 0.0
    %v1230 = vrot.slane %v1229, 4
    %v1231 = vadd.f32 %v1229, %v1230
    %v1232 = vrot.slane %v1231, 2
    %v1233 = vadd.f32 %v1231, %v1232
    %v1234 = vrot.slane %v1233, 1
    %v1235 = vadd.f32 %v1233, %v1234
    %v1236 = vsel %vm1037, %v1160, 0.0
    %v1237 = vrot.slane %v1236, 4
    %v1238 = vadd.f32 %v1236, %v1237
    %v1239 = vrot.slane %v1238, 2
    %v1240 = vadd.f32 %v1238, %v1239
    %v1241 = vrot.slane %v1240, 1
    %v1242 = vadd.f32 %v1240, %v1241
    %v1243 = vsel %vm1037, %v1161, 0.0
    %v1244 = vrot.slane %v1243, 4
    %v1245 = vadd.f32 %v1243, %v1244
    %v1246 = vrot.slane %v1245, 2
    %v1247 = vadd.f32 %v1245, %v1246
    %v1248 = vrot.slane %v1247, 1
    %v1249 = vadd.f32 %v1247, %v1248
    %v1250 = vsel %vm1037, %v1162, 0.0
    %v1251 = vrot.slane %v1250, 4
    %v1252 = vadd.f32 %v1250, %v1251
    %v1253 = vrot.slane %v1252, 2
    %v1254 = vadd.f32 %v1252, %v1253
    %v1255 = vrot.slane %v1254, 1
    %v1256 = vadd.f32 %v1254, %v1255
    %v1257 = vsel %vm1037, %v1163, 0.0
    %v1258 = vrot.slane %v1257, 4
    %v1259 = vadd.f32 %v1257, %v1258
    %v1260 = vrot.slane %v1259, 2
    %v1261 = vadd.f32 %v1259, %v1260
    %v1262 = vrot.slane %v1261, 1
    %v1263 = vadd.f32 %v1261, %v1262
    %v1264 = vsel %vm1037, %v1164, 0.0
    %v1265 = vrot.slane %v1264, 4
    %v1266 = vadd.f32 %v1264, %v1265
    %v1267 = vrot.slane %v1266, 2
    %v1268 = vadd.f32 %v1266, %v1267
    %v1269 = vrot.slane %v1268, 1
    %v1270 = vadd.f32 %v1268, %v1269
    %v1271 = vsel %vm1037, %v1165, 0.0
    %v1272 = vrot.slane %v1271, 4
    %v1273 = vadd.f32 %v1271, %v1272
    %v1274 = vrot.slane %v1273, 2
    %v1275 = vadd.f32 %v1273, %v1274
    %v1276 = vrot.slane %v1275, 1
    %v1277 = vadd.f32 %v1275, %v1276
    %v1278 = vadd.f32 %v1044, %v1051
    %v1279 = vadd.f32 %v1172, %v1179
    %v1280 = vadd.f32 %v1278, %v1058
    %v1281 = vadd.f32 %v1279, %v1186
    %v1282 = vadd.f32 %v1280, %v1065
    %v1283 = vadd.f32 %v1281, %v1193
    %v1284 = vadd.f32 %v1282, %v1072
    %v1285 = vadd.f32 %v1283, %v1200
    %v1286 = vadd.f32 %v1284, %v1079
    %v1287 = vadd.f32 %v1285, %v1207
    %v1288 = vadd.f32 %v1286, %v1086
    %v1289 = vadd.f32 %v1287, %v1214
    %v1290 = vadd.f32 %v1288, %v1093
    %v1291 = vadd.f32 %v1289, %v1221
    %v1292 = vadd.f32 %v1290, %v1100
    %v1293 = vadd.f32 %v1291, %v1228
    %v1294 = vadd.f32 %v1292, %v1107
    %v1295 = vadd.f32 %v1293, %v1235
    %v1296 = vadd.f32 %v1294, %v1114
    %v1297 = vadd.f32 %v1295, %v1242
    %v1298 = vadd.f32 %v1296, %v1121
    %v1299 = vadd.f32 %v1297, %v1249
    %v1300 = vadd.f32 %v1298, %v1128
    %v1301 = vadd.f32 %v1299, %v1256
    %v1302 = vadd.f32 %v1300, %v1135
    %v1303 = vadd.f32 %v1301, %v1263
    %v1304 = vadd.f32 %v1302, %v1142
    %v1305 = vadd.f32 %v1303, %v1270
    %v1306 = vadd.f32 %v1304, %v1149
    %v1307 = vadd.f32 %v1305, %v1277
    %v1308 = vrcp.pop 32.0
    %v1309 = vmul.f32 32.0, %v1308
    %v1310 = vsub.f32 1.0, %v1309
    %v1311 = vmul.f32 %v1308, %v1310
    %v1312 = vadd.f32 %v1308, %v1311
    %vm1313 = vweird.f32 %v1308
    %v1314 = vsel %vm1313, %v1308, %v1312
    %v1315 = vmul.f32 %v1306, %v1314
    %v1316 = vmul.f32 %v1307, %v1314
    %v1317 = vmul.f32 %v1315, %v1315
    %v1318 = vsub.f32 %v1316, %v1317
    %v1319 = vmax.f32 %v1318, 0.0
    %v1320 = vld [vmem:[#allocation4] sm:$0x1]
    %v1321 = vadd.f32 %v1319, 1e-05
    %v1322 = vrsqrt.pop %v1321
    %v1323 = vmul.f32 %v1322, %v1321
    %v1324 = vmul.f32 %v1323, %v1322
    %v1325 = vmul.f32 0.5, %v1324
    %v1326 = vsub.f32 1.5, %v1325
    %v1327 = vmul.f32 %v1322, %v1326
    %vm1328 = vweird.f32 %v1321
    %vm1329 = vweird.f32 %v1322
    %vm1330 = vmor %vm1328, %vm1329
    %v1331 = vsel %vm1330, %v1322, %v1327
    %v1332 = vmul.f32 %v1320, %v1331
    %v1333 = vld [vmem:[#allocation6] sm:$0x1]
    %v1334 = vmul.f32 %v1315, %v1332
    %v1335 = vsub.f32 %v1333, %v1334
    %v1336 = vperm.slane %v1332, 0
    %v1337 = vmul.f32 %v839, %v1336
    %v1338 = vmul.f32 %v852, %v1336
    %v1339 = vmul.f32 %v865, %v1336
    %v1340 = vmul.f32 %v878, %v1336
    %v1341 = vmul.f32 %v891, %v1336
    %v1342 = vmul.f32 %v904, %v1336
    %v1343 = vmul.f32 %v917, %v1336
    %v1344 = vmul.f32 %v930, %v1336
    %v1345 = vmul.f32 %v943, %v1336
    %v1346 = vmul.f32 %v956, %v1336
    %v1347 = vmul.f32 %v969, %v1336
    %v1348 = vmul.f32 %v982, %v1336
    %v1349 = vmul.f32 %v995, %v1336
    %v1350 = vmul.f32 %v1008, %v1336
    %v1351 = vmul.f32 %v1021, %v1336
    %v1352 = vmul.f32 %v1034, %v1336
    %v1353 = vperm.slane %v1335, 0
    %v1354 = vadd.f32 %v1337, %v1353
    %v1355 = vadd.f32 %v1338, %v1353
    %v1356 = vadd.f32 %v1339, %v1353
    %v1357 = vadd.f32 %v1340, %v1353
    %v1358 = vadd.f32 %v1341, %v1353
    %v1359 = vadd.f32 %v1342, %v1353
    %v1360 = vadd.f32 %v1343, %v1353
    %v1361 = vadd.f32 %v1344, %v1353
    %v1362 = vadd.f32 %v1345, %v1353
    %v1363 = vadd.f32 %v1346, %v1353
    %v1364 = vadd.f32 %v1347, %v1353
    %v1365 = vadd.f32 %v1348, %v1353
    %v1366 = vadd.f32 %v1349, %v1353
    %v1367 = vadd.f32 %v1350, %v1353
    %v1368 = vadd.f32 %v1351, %v1353
    %v1369 = vadd.f32 %v1352, %v1353
    %v1370 = vmax.f32 %v1354, 0.0
    %v1371 = vmax.f32 %v1355, 0.0
    %v1372 = vmax.f32 %v1356, 0.0
    %v1373 = vmax.f32 %v1357, 0.0
    %v1374 = vmax.f32 %v1358, 0.0
    %v1375 = vmax.f32 %v1359, 0.0
    %v1376 = vmax.f32 %v1360, 0.0
    %v1377 = vmax.f32 %v1361, 0.0
    %v1378 = vmax.f32 %v1362, 0.0
    %v1379 = vmax.f32 %v1363, 0.0
    %v1380 = vmax.f32 %v1364, 0.0
    %v1381 = vmax.f32 %v1365, 0.0
    %v1382 = vmax.f32 %v1366, 0.0
    %v1383 = vmax.f32 %v1367, 0.0
    %v1384 = vmax.f32 %v1368, 0.0
    %v1385 = vmax.f32 %v1369, 0.0
    %v1386 = vpack.c.bf16 %v1371, %v1370
    %v1387 = vpack.c.bf16 %v1373, %v1372
    %v1388 = vpack.c.bf16 %v1375, %v1374
    %v1389 = vpack.c.bf16 %v1377, %v1376
    %v1390 = vpack.c.bf16 %v1379, %v1378
    %v1391 = vpack.c.bf16 %v1381, %v1380
    %v1392 = vpack.c.bf16 %v1383, %v1382
    %v1393 = vpack.c.bf16 %v1385, %v1384
    %v1402 = vrot.slane %v1386, 3
    %v1403 = vrot.slane %v1387, 6
    %v1404 = vrot.slane %v1387, 1
    %v1405 = vrot.slane %v1388, 4
    %v1406 = vrot.slane %v1388, 7
    %v1407 = vrot.slane %v1389, 2
    %v1408 = vrot.slane %v1389, 5
    %v1409 = vrot.slane %v1390, 3
    %v1410 = vrot.slane %v1391, 6
    %v1411 = vrot.slane %v1391, 1
    %v1412 = vrot.slane %v1392, 4
    %v1413 = vrot.slane %v1392, 7
    %v1414 = vrot.slane %v1393, 2
    %v1415 = vrot.slane %v1393, 5
    %vm1416 = vcmask 1040384
    %v1419 = vsel %vm1416, %v1386, %v1402
    %vm1420 = vcmask 1042434
    %v1423 = vsel %vm1420, %v1403, %v1404
    %v1424 = vsel %vm1037, %v1419, %v1423
    %vm1425 = vcmask 1044484
    %v1428 = vsel %vm1425, %v1405, %v1406
    %vm1429 = vcmask 1046534
    %v1432 = vsel %vm1429, %v1407, %v1408
    %vm1433 = vcmask 1045508
    %v1434 = vsel %vm1433, %v1428, %v1432
    %vm1435 = vcmask 1043456
    %v1436 = vsel %vm1435, %v1424, %v1434
    %v1439 = vsel %vm1416, %v1390, %v1409
    %v1442 = vsel %vm1420, %v1410, %v1411
    %v1443 = vsel %vm1037, %v1439, %v1442
    %v1446 = vsel %vm1425, %v1412, %v1413
    %v1449 = vsel %vm1429, %v1414, %v1415
    %v1450 = vsel %vm1433, %v1446, %v1449
    %v1451 = vsel %vm1435, %v1443, %v1450
    %1454 = vst [vmem:[%s4] sm:$0xff] %v1436
    %1455 = vst [vmem:[%s4 + $0x8] sm:$0xff] %v1451
    // Predicated region
    $region30: #{_generator_forward.4} parent=1 // pred_check
      _
    $region31: #{_generator_forward.4} parent=1 // pred_check_branch
      %1457 = sbr.rel (0) target = $region33
    $region32: #{_generator_forward.4} parent=1 // pred_region
      _
    $region33: #{_generator_forward.4} parent=1 // pred_fallthru
      _
    // Predicated region
    $region34: #{_generator_forward.4} parent=1 // pred_check
      _
    $region35: #{_generator_forward.4} parent=1 // pred_check_branch
      %1459 = sbr.rel (0) target = $region37
    $region36: #{_generator_forward.4} parent=1 // pred_region
      _
    $region37: #{_generator_forward.4} parent=1 // pred_fallthru
      _
    %1460 = vsyncpa [#allocation3], 1
    %1461 = vsyncpa [#allocation5], 1

// kernel: _generator_forward.5
$region0: #{_generator_forward.5}
  #allocation0 [shape = 'u32[]', space=smem, size = 0x4, offset = 0x4, fixed_abs, tag = 'smem constant byte address 0x4 - core index']
  #allocation1 [shape = 'u32[72,128]{1,0:T(1,128)}', space=vmem, size = 0x9000, scoped, tag = 'internal scratch']
  %s0 = inlined_call_operand.vmem [shape: bf16[32,1152], index: 0, kind: input, shape index: {}]
  %s1 = inlined_call_operand.hbm [shape: bf16[1152,256], index: 1, kind: input, shape index: {}]
  %s2 = inlined_call_operand.hbm [shape: f32[1,64], index: 2, kind: input, shape index: {}]
  %s3 = inlined_call_operand.hbm [shape: f32[1,64], index: 3, kind: input, shape index: {}]
  %s4 = inlined_call_operand.vmem [shape: bf16[32,256], index: 4, kind: output, shape index: {}]
  %s5 = sld [smem:[#allocation0]]
  $region38: #{_generator_forward.5} parent=0
    _
  %s7 = ssub.s32 1, %s5
  %s8 = scalar_select 0, %s7, %s5
  $region1: #{_generator_forward.5} parent=0
    #allocation2 [shape = 'u8[589824]{0}', space=vmem, size = 0x90000, scoped, tag = 'input window, operand 1, single buffered']
    #allocation3 [shape = 's32[1]{0}', space=sflag, size = 0x4, scoped, tag = 'scoped memory for _generator_forward.5']
    #allocation4 [shape = 'u8[512]{0}', space=vmem, size = 0x400, scoped, tag = 'input window, operand 2, single buffered']
    #allocation5 [shape = 's32[1]{0}', space=sflag, size = 0x4, scoped, tag = 'scoped memory for _generator_forward.5']
    #allocation6 [shape = 'u8[512]{0}', space=vmem, size = 0x400, scoped, tag = 'input window, operand 3, single buffered']
    %9 = vsyncpa [#allocation3], 0
    %10 = vsyncpa [#allocation5], 0
    // Predicated region
    $region2: #{_generator_forward.5} parent=1 // pred_check
      _
    $region3: #{_generator_forward.5} parent=1 // pred_check_branch
      %12 = sbr.rel (0) target = $region5
    $region4: #{_generator_forward.5} parent=1 // pred_region
      _
    $region5: #{_generator_forward.5} parent=1 // pred_fallthru
      _
    // Predicated region
    $region6: #{_generator_forward.5} parent=1 // pred_check
      _
    $region7: #{_generator_forward.5} parent=1 // pred_check_branch
      %14 = sbr.rel (0) target = $region9
    $region8: #{_generator_forward.5} parent=1 // pred_region
      %16 = vsyncadd [#allocation3], 0
      %s17 = sshll.u32 %s1, 4
      %s18 = int_to_ptr.hbm [resolvable:$true] %s17
      %s19 = sshll.u32 [#allocation2], 4
      %s20 = int_to_ptr.vmem [resolvable:$true] %s19
      %25 = dma.hbm_to_vmem [thread:$0]  %s18, 18432, %s20, [#allocation3], 128, 128, 8
    $region9: #{_generator_forward.5} parent=1 // pred_fallthru
      _
    // Predicated region
    $region10: #{_generator_forward.5} parent=1 // pred_check
      _
    $region11: #{_generator_forward.5} parent=1 // pred_check_branch
      %27 = sbr.rel (0) target = $region13
    $region12: #{_generator_forward.5} parent=1 // pred_region
      %29 = vsyncadd [#allocation5], 0
      %s31 = sshll.u32 %s2, 4
      %s32 = int_to_ptr.hbm [resolvable:$true] %s31
      %s33 = sshll.u32 [#allocation4], 4
      %s34 = int_to_ptr.vmem [resolvable:$true] %s33
      %36 = dma.hbm_to_vmem [thread:$0]  %s32, 16, %s34, [#allocation5]
    $region13: #{_generator_forward.5} parent=1 // pred_fallthru
      _
    // Predicated region
    $region14: #{_generator_forward.5} parent=1 // pred_check
      _
    $region15: #{_generator_forward.5} parent=1 // pred_check_branch
      %38 = sbr.rel (0) target = $region17
    $region16: #{_generator_forward.5} parent=1 // pred_region
      %40 = vsyncadd [#allocation5], 0
      %s42 = sshll.u32 %s3, 4
      %s43 = int_to_ptr.hbm [resolvable:$true] %s42
      %s44 = sshll.u32 [#allocation6], 4
      %s45 = int_to_ptr.vmem [resolvable:$true] %s44
      %47 = dma.hbm_to_vmem [thread:$0]  %s43, 16, %s45, [#allocation5]
    $region17: #{_generator_forward.5} parent=1 // pred_fallthru
      _
    // Predicated region
    $region18: #{_generator_forward.5} parent=1 // pred_check
      _
    $region19: #{_generator_forward.5} parent=1 // pred_check_branch
      %49 = sbr.rel (0) target = $region21
    $region20: #{_generator_forward.5} parent=1 // pred_region
      %51 = dma.done [#allocation3], 18432
    $region21: #{_generator_forward.5} parent=1 // pred_fallthru
      _
    // Predicated region
    $region22: #{_generator_forward.5} parent=1 // pred_check
      _
    $region23: #{_generator_forward.5} parent=1 // pred_check_branch
      %53 = sbr.rel (0) target = $region25
    $region24: #{_generator_forward.5} parent=1 // pred_region
      %55 = dma.done [#allocation5], 16
    $region25: #{_generator_forward.5} parent=1 // pred_fallthru
      _
    // Predicated region
    $region26: #{_generator_forward.5} parent=1 // pred_check
      _
    $region27: #{_generator_forward.5} parent=1 // pred_check_branch
      %57 = sbr.rel (0) target = $region29
    $region28: #{_generator_forward.5} parent=1 // pred_region
      %59 = dma.done [#allocation5], 16
    $region29: #{_generator_forward.5} parent=1 // pred_fallthru
      _
    %v60 = vld [vmem:[%s0] sm:$0xff]
    %v61 = vld [vmem:[%s0 + $0x8] sm:$0xff]
    %v62 = vld [vmem:[%s0 + $0x10] sm:$0xff]
    %v63 = vld [vmem:[%s0 + $0x18] sm:$0xff]
    %v64 = vld [vmem:[%s0 + $0x20] sm:$0xf]
    %v65 = vld [vmem:[%s0 + $0x24] sm:$0xff]
    %v66 = vld [vmem:[%s0 + $0x2c] sm:$0xff]
    %v67 = vld [vmem:[%s0 + $0x34] sm:$0xff]
    %v68 = vld [vmem:[%s0 + $0x3c] sm:$0xff]
    %v69 = vld [vmem:[%s0 + $0x44] sm:$0xf]
    %v70 = vld [vmem:[%s0 + $0x48] sm:$0xff]
    %v71 = vld [vmem:[%s0 + $0x50] sm:$0xff]
    %v72 = vld [vmem:[%s0 + $0x58] sm:$0xff]
    %v73 = vld [vmem:[%s0 + $0x60] sm:$0xff]
    %v74 = vld [vmem:[%s0 + $0x68] sm:$0xf]
    %v75 = vld [vmem:[%s0 + $0x6c] sm:$0xff]
    %v76 = vld [vmem:[%s0 + $0x74] sm:$0xff]
    %v77 = vld [vmem:[%s0 + $0x7c] sm:$0xff]
    %v78 = vld [vmem:[%s0 + $0x84] sm:$0xff]
    %v79 = vld [vmem:[%s0 + $0x8c] sm:$0xf]
    %v80 = vld [vmem:[#allocation2] sm:$0xff]
    %v81 = vld [vmem:[#allocation2 + $0x8] sm:$0xff]
    %v82 = vld [vmem:[#allocation2 + $0x10] sm:$0xff]
    %v83 = vld [vmem:[#allocation2 + $0x18] sm:$0xff]
    %v84 = vld [vmem:[#allocation2 + $0x20] sm:$0xff]
    %v85 = vld [vmem:[#allocation2 + $0x28] sm:$0xff]
    %v86 = vld [vmem:[#allocation2 + $0x30] sm:$0xff]
    %v87 = vld [vmem:[#allocation2 + $0x38] sm:$0xff]
    %v88 = vld [vmem:[#allocation2 + $0x40] sm:$0xff]
    %v89 = vld [vmem:[#allocation2 + $0x48] sm:$0xff]
    %v90 = vld [vmem:[#allocation2 + $0x50] sm:$0xff]
    %v91 = vld [vmem:[#allocation2 + $0x58] sm:$0xff]
    %v92 = vld [vmem:[#allocation2 + $0x60] sm:$0xff]
    %v93 = vld [vmem:[#allocation2 + $0x68] sm:$0xff]
    %v94 = vld [vmem:[#allocation2 + $0x70] sm:$0xff]
    %v95 = vld [vmem:[#allocation2 + $0x78] sm:$0xff]
    %v96 = vld [vmem:[#allocation2 + $0x80] sm:$0xff]
    %v97 = vld [vmem:[#allocation2 + $0x88] sm:$0xff]
    %v98 = vld [vmem:[#allocation2 + $0x90] sm:$0xff]
    %v99 = vld [vmem:[#allocation2 + $0x98] sm:$0xff]
    %v100 = vld [vmem:[#allocation2 + $0xa0] sm:$0xff]
    %v101 = vld [vmem:[#allocation2 + $0xa8] sm:$0xff]
    %v102 = vld [vmem:[#allocation2 + $0xb0] sm:$0xff]
    %v103 = vld [vmem:[#allocation2 + $0xb8] sm:$0xff]
    %v104 = vld [vmem:[#allocation2 + $0xc0] sm:$0xff]
    %v105 = vld [vmem:[#allocation2 + $0xc8] sm:$0xff]
    %v106 = vld [vmem:[#allocation2 + $0xd0] sm:$0xff]
    %v107 = vld [vmem:[#allocation2 + $0xd8] sm:$0xff]
    %v108 = vld [vmem:[#allocation2 + $0xe0] sm:$0xff]
    %v109 = vld [vmem:[#allocation2 + $0xe8] sm:$0xff]
    %v110 = vld [vmem:[#allocation2 + $0xf0] sm:$0xff]
    %v111 = vld [vmem:[#allocation2 + $0xf8] sm:$0xff]
    %v112 = vld [vmem:[#allocation2 + $0x100] sm:$0xff]
    %v113 = vld [vmem:[#allocation2 + $0x108] sm:$0xff]
    %v114 = vld [vmem:[#allocation2 + $0x110] sm:$0xff]
    %v115 = vld [vmem:[#allocation2 + $0x118] sm:$0xff]
    %v116 = vld [vmem:[#allocation2 + $0x120] sm:$0xff]
    %v117 = vld [vmem:[#allocation2 + $0x128] sm:$0xff]
    %v118 = vld [vmem:[#allocation2 + $0x130] sm:$0xff]
    %v119 = vld [vmem:[#allocation2 + $0x138] sm:$0xff]
    %v120 = vld [vmem:[#allocation2 + $0x140] sm:$0xff]
    %v121 = vld [vmem:[#allocation2 + $0x148] sm:$0xff]
    %v122 = vld [vmem:[#allocation2 + $0x150] sm:$0xff]
    %v123 = vld [vmem:[#allocation2 + $0x158] sm:$0xff]
    %v124 = vld [vmem:[#allocation2 + $0x160] sm:$0xff]
    %v125 = vld [vmem:[#allocation2 + $0x168] sm:$0xff]
    %v126 = vld [vmem:[#allocation2 + $0x170] sm:$0xff]
    %v127 = vld [vmem:[#allocation2 + $0x178] sm:$0xff]
    %v128 = vld [vmem:[#allocation2 + $0x180] sm:$0xff]
    %v129 = vld [vmem:[#allocation2 + $0x188] sm:$0xff]
    %v130 = vld [vmem:[#allocation2 + $0x190] sm:$0xff]
    %v131 = vld [vmem:[#allocation2 + $0x198] sm:$0xff]
    %v132 = vld [vmem:[#allocation2 + $0x1a0] sm:$0xff]
    %v133 = vld [vmem:[#allocation2 + $0x1a8] sm:$0xff]
    %v134 = vld [vmem:[#allocation2 + $0x1b0] sm:$0xff]
    %v135 = vld [vmem:[#allocation2 + $0x1b8] sm:$0xff]
    %v136 = vld [vmem:[#allocation2 + $0x1c0] sm:$0xff]
    %v137 = vld [vmem:[#allocation2 + $0x1c8] sm:$0xff]
    %v138 = vld [vmem:[#allocation2 + $0x1d0] sm:$0xff]
    %v139 = vld [vmem:[#allocation2 + $0x1d8] sm:$0xff]
    %v140 = vld [vmem:[#allocation2 + $0x1e0] sm:$0xff]
    %v141 = vld [vmem:[#allocation2 + $0x1e8] sm:$0xff]
    %v142 = vld [vmem:[#allocation2 + $0x1f0] sm:$0xff]
    %v143 = vld [vmem:[#allocation2 + $0x1f8] sm:$0xff]
    %v144 = vld [vmem:[#allocation2 + $0x200] sm:$0xff]
    %v145 = vld [vmem:[#allocation2 + $0x208] sm:$0xff]
    %v146 = vld [vmem:[#allocation2 + $0x210] sm:$0xff]
    %v147 = vld [vmem:[#allocation2 + $0x218] sm:$0xff]
    %v148 = vld [vmem:[#allocation2 + $0x220] sm:$0xff]
    %v149 = vld [vmem:[#allocation2 + $0x228] sm:$0xff]
    %v150 = vld [vmem:[#allocation2 + $0x230] sm:$0xff]
    %v151 = vld [vmem:[#allocation2 + $0x238] sm:$0xff]
    %v152 = vld [vmem:[#allocation2 + $0x240] sm:$0xff]
    %v153 = vld [vmem:[#allocation2 + $0x248] sm:$0xff]
    %v154 = vld [vmem:[#allocation2 + $0x250] sm:$0xff]
    %v155 = vld [vmem:[#allocation2 + $0x258] sm:$0xff]
    %v156 = vld [vmem:[#allocation2 + $0x260] sm:$0xff]
    %v157 = vld [vmem:[#allocation2 + $0x268] sm:$0xff]
    %v158 = vld [vmem:[#allocation2 + $0x270] sm:$0xff]
    %v159 = vld [vmem:[#allocation2 + $0x278] sm:$0xff]
    %v160 = vld [vmem:[#allocation2 + $0x280] sm:$0xff]
    %v161 = vld [vmem:[#allocation2 + $0x288] sm:$0xff]
    %v162 = vld [vmem:[#allocation2 + $0x290] sm:$0xff]
    %v163 = vld [vmem:[#allocation2 + $0x298] sm:$0xff]
    %v164 = vld [vmem:[#allocation2 + $0x2a0] sm:$0xff]
    %v165 = vld [vmem:[#allocation2 + $0x2a8] sm:$0xff]
    %v166 = vld [vmem:[#allocation2 + $0x2b0] sm:$0xff]
    %v167 = vld [vmem:[#allocation2 + $0x2b8] sm:$0xff]
    %v168 = vld [vmem:[#allocation2 + $0x2c0] sm:$0xff]
    %v169 = vld [vmem:[#allocation2 + $0x2c8] sm:$0xff]
    %v170 = vld [vmem:[#allocation2 + $0x2d0] sm:$0xff]
    %v171 = vld [vmem:[#allocation2 + $0x2d8] sm:$0xff]
    %v172 = vld [vmem:[#allocation2 + $0x2e0] sm:$0xff]
    %v173 = vld [vmem:[#allocation2 + $0x2e8] sm:$0xff]
    %v174 = vld [vmem:[#allocation2 + $0x2f0] sm:$0xff]
    %v175 = vld [vmem:[#allocation2 + $0x2f8] sm:$0xff]
    %v176 = vld [vmem:[#allocation2 + $0x300] sm:$0xff]
    %v177 = vld [vmem:[#allocation2 + $0x308] sm:$0xff]
    %v178 = vld [vmem:[#allocation2 + $0x310] sm:$0xff]
    %v179 = vld [vmem:[#allocation2 + $0x318] sm:$0xff]
    %v180 = vld [vmem:[#allocation2 + $0x320] sm:$0xff]
    %v181 = vld [vmem:[#allocation2 + $0x328] sm:$0xff]
    %v182 = vld [vmem:[#allocation2 + $0x330] sm:$0xff]
    %v183 = vld [vmem:[#allocation2 + $0x338] sm:$0xff]
    %v184 = vld [vmem:[#allocation2 + $0x340] sm:$0xff]
    %v185 = vld [vmem:[#allocation2 + $0x348] sm:$0xff]
    %v186 = vld [vmem:[#allocation2 + $0x350] sm:$0xff]
    %v187 = vld [vmem:[#allocation2 + $0x358] sm:$0xff]
    %v188 = vld [vmem:[#allocation2 + $0x360] sm:$0xff]
    %v189 = vld [vmem:[#allocation2 + $0x368] sm:$0xff]
    %v190 = vld [vmem:[#allocation2 + $0x370] sm:$0xff]
    %v191 = vld [vmem:[#allocation2 + $0x378] sm:$0xff]
    %v192 = vld [vmem:[#allocation2 + $0x380] sm:$0xff]
    %v193 = vld [vmem:[#allocation2 + $0x388] sm:$0xff]
    %v194 = vld [vmem:[#allocation2 + $0x390] sm:$0xff]
    %v195 = vld [vmem:[#allocation2 + $0x398] sm:$0xff]
    %v196 = vld [vmem:[#allocation2 + $0x3a0] sm:$0xff]
    %v197 = vld [vmem:[#allocation2 + $0x3a8] sm:$0xff]
    %v198 = vld [vmem:[#allocation2 + $0x3b0] sm:$0xff]
    %v199 = vld [vmem:[#allocation2 + $0x3b8] sm:$0xff]
    %v200 = vld [vmem:[#allocation2 + $0x3c0] sm:$0xff]
    %v201 = vld [vmem:[#allocation2 + $0x3c8] sm:$0xff]
    %v202 = vld [vmem:[#allocation2 + $0x3d0] sm:$0xff]
    %v203 = vld [vmem:[#allocation2 + $0x3d8] sm:$0xff]
    %v204 = vld [vmem:[#allocation2 + $0x3e0] sm:$0xff]
    %v205 = vld [vmem:[#allocation2 + $0x3e8] sm:$0xff]
    %v206 = vld [vmem:[#allocation2 + $0x3f0] sm:$0xff]
    %v207 = vld [vmem:[#allocation2 + $0x3f8] sm:$0xff]
    %v208 = vld [vmem:[#allocation2 + $0x400] sm:$0xff]
    %v209 = vld [vmem:[#allocation2 + $0x408] sm:$0xff]
    %v210 = vld [vmem:[#allocation2 + $0x410] sm:$0xff]
    %v211 = vld [vmem:[#allocation2 + $0x418] sm:$0xff]
    %v212 = vld [vmem:[#allocation2 + $0x420] sm:$0xff]
    %v213 = vld [vmem:[#allocation2 + $0x428] sm:$0xff]
    %v214 = vld [vmem:[#allocation2 + $0x430] sm:$0xff]
    %v215 = vld [vmem:[#allocation2 + $0x438] sm:$0xff]
    %v216 = vld [vmem:[#allocation2 + $0x440] sm:$0xff]
    %v217 = vld [vmem:[#allocation2 + $0x448] sm:$0xff]
    %v218 = vld [vmem:[#allocation2 + $0x450] sm:$0xff]
    %v219 = vld [vmem:[#allocation2 + $0x458] sm:$0xff]
    %v220 = vld [vmem:[#allocation2 + $0x460] sm:$0xff]
    %v221 = vld [vmem:[#allocation2 + $0x468] sm:$0xff]
    %v222 = vld [vmem:[#allocation2 + $0x470] sm:$0xff]
    %v223 = vld [vmem:[#allocation2 + $0x478] sm:$0xff]
    %v244 = vunpack.c.l.b16 %v60
    %v245 = vunpack.c.h.b16 %v60
    %v246 = vunpack.c.l.b16 %v61
    %v247 = vunpack.c.h.b16 %v61
    %v248 = vunpack.c.l.b16 %v62
    %v249 = vunpack.c.h.b16 %v62
    %v250 = vunpack.c.l.b16 %v63
    %v251 = vunpack.c.h.b16 %v63
    %v252 = vunpack.c.l.b16 %v64
    %v253 = vunpack.c.l.b16 %v65
    %v254 = vunpack.c.h.b16 %v65
    %v255 = vunpack.c.l.b16 %v66
    %v256 = vunpack.c.h.b16 %v66
    %v257 = vunpack.c.l.b16 %v67
    %v258 = vunpack.c.h.b16 %v67
    %v259 = vunpack.c.l.b16 %v68
    %v260 = vunpack.c.h.b16 %v68
    %v261 = vunpack.c.l.b16 %v69
    %v262 = vunpack.c.l.b16 %v70
    %v263 = vunpack.c.h.b16 %v70
    %v264 = vunpack.c.l.b16 %v71
    %v265 = vunpack.c.h.b16 %v71
    %v266 = vunpack.c.l.b16 %v72
    %v267 = vunpack.c.h.b16 %v72
    %v268 = vunpack.c.l.b16 %v73
    %v269 = vunpack.c.h.b16 %v73
    %v270 = vunpack.c.l.b16 %v74
    %v271 = vunpack.c.l.b16 %v75
    %v272 = vunpack.c.h.b16 %v75
    %v273 = vunpack.c.l.b16 %v76
    %v274 = vunpack.c.h.b16 %v76
    %v275 = vunpack.c.l.b16 %v77
    %v276 = vunpack.c.h.b16 %v77
    %v277 = vunpack.c.l.b16 %v78
    %v278 = vunpack.c.h.b16 %v78
    %v279 = vunpack.c.l.b16 %v79
    %v280 = vpack.c.b16 %v253, %v244
    %v281 = vpack.c.b16 %v254, %v245
    %v282 = vpack.c.b16 %v255, %v246
    %v283 = vpack.c.b16 %v256, %v247
    %v284 = vpack.c.b16 %v257, %v248
    %v285 = vpack.c.b16 %v258, %v249
    %v286 = vpack.c.b16 %v259, %v250
    %v287 = vpack.c.b16 %v260, %v251
    %v288 = vpack.c.b16 %v261, %v252
    %v289 = vpack.c.b16 %v271, %v262
    %v290 = vpack.c.b16 %v272, %v263
    %v291 = vpack.c.b16 %v273, %v264
    %v292 = vpack.c.b16 %v274, %v265
    %v293 = vpack.c.b16 %v275, %v266
    %v294 = vpack.c.b16 %v276, %v267
    %v295 = vpack.c.b16 %v277, %v268
    %v296 = vpack.c.b16 %v278, %v269
    %v297 = vpack.c.b16 %v279, %v270
    %v460 = vunpack.c.l.b16 %v80
    %v461 = vunpack.c.h.b16 %v80
    %v462 = vunpack.c.l.b16 %v81
    %v463 = vunpack.c.h.b16 %v81
    %v464 = vunpack.c.l.b16 %v82
    %v465 = vunpack.c.h.b16 %v82
    %v466 = vunpack.c.l.b16 %v83
    %v467 = vunpack.c.h.b16 %v83
    %v468 = vunpack.c.l.b16 %v84
    %v469 = vunpack.c.h.b16 %v84
    %v470 = vunpack.c.l.b16 %v85
    %v471 = vunpack.c.h.b16 %v85
    %v472 = vunpack.c.l.b16 %v86
    %v473 = vunpack.c.h.b16 %v86
    %v474 = vunpack.c.l.b16 %v87
    %v475 = vunpack.c.h.b16 %v87
    %v476 = vunpack.c.l.b16 %v88
    %v477 = vunpack.c.h.b16 %v88
    %v478 = vunpack.c.l.b16 %v89
    %v479 = vunpack.c.h.b16 %v89
    %v480 = vunpack.c.l.b16 %v90
    %v481 = vunpack.c.h.b16 %v90
    %v482 = vunpack.c.l.b16 %v91
    %v483 = vunpack.c.h.b16 %v91
    %v484 = vunpack.c.l.b16 %v92
    %v485 = vunpack.c.h.b16 %v92
    %v486 = vunpack.c.l.b16 %v93
    %v487 = vunpack.c.h.b16 %v93
    %v488 = vunpack.c.l.b16 %v94
    %v489 = vunpack.c.h.b16 %v94
    %v490 = vunpack.c.l.b16 %v95
    %v491 = vunpack.c.h.b16 %v95
    %v492 = vunpack.c.l.b16 %v96
    %v493 = vunpack.c.h.b16 %v96
    %v494 = vunpack.c.l.b16 %v97
    %v495 = vunpack.c.h.b16 %v97
    %v496 = vunpack.c.l.b16 %v98
    %v497 = vunpack.c.h.b16 %v98
    %v498 = vunpack.c.l.b16 %v99
    %v499 = vunpack.c.h.b16 %v99
    %v500 = vunpack.c.l.b16 %v100
    %v501 = vunpack.c.h.b16 %v100
    %v502 = vunpack.c.l.b16 %v101
    %v503 = vunpack.c.h.b16 %v101
    %v504 = vunpack.c.l.b16 %v102
    %v505 = vunpack.c.h.b16 %v102
    %v506 = vunpack.c.l.b16 %v103
    %v507 = vunpack.c.h.b16 %v103
    %v508 = vunpack.c.l.b16 %v104
    %v509 = vunpack.c.h.b16 %v104
    %v510 = vunpack.c.l.b16 %v105
    %v511 = vunpack.c.h.b16 %v105
    %v512 = vunpack.c.l.b16 %v106
    %v513 = vunpack.c.h.b16 %v106
    %v514 = vunpack.c.l.b16 %v107
    %v515 = vunpack.c.h.b16 %v107
    %v516 = vunpack.c.l.b16 %v108
    %v517 = vunpack.c.h.b16 %v108
    %v518 = vunpack.c.l.b16 %v109
    %v519 = vunpack.c.h.b16 %v109
    %v520 = vunpack.c.l.b16 %v110
    %v521 = vunpack.c.h.b16 %v110
    %v522 = vunpack.c.l.b16 %v111
    %v523 = vunpack.c.h.b16 %v111
    %v524 = vunpack.c.l.b16 %v112
    %v525 = vunpack.c.h.b16 %v112
    %v526 = vunpack.c.l.b16 %v113
    %v527 = vunpack.c.h.b16 %v113
    %v528 = vunpack.c.l.b16 %v114
    %v529 = vunpack.c.h.b16 %v114
    %v530 = vunpack.c.l.b16 %v115
    %v531 = vunpack.c.h.b16 %v115
    %v532 = vunpack.c.l.b16 %v116
    %v533 = vunpack.c.h.b16 %v116
    %v534 = vunpack.c.l.b16 %v117
    %v535 = vunpack.c.h.b16 %v117
    %v536 = vunpack.c.l.b16 %v118
    %v537 = vunpack.c.h.b16 %v118
    %v538 = vunpack.c.l.b16 %v119
    %v539 = vunpack.c.h.b16 %v119
    %v540 = vunpack.c.l.b16 %v120
    %v541 = vunpack.c.h.b16 %v120
    %v542 = vunpack.c.l.b16 %v121
    %v543 = vunpack.c.h.b16 %v121
    %v544 = vunpack.c.l.b16 %v122
    %v545 = vunpack.c.h.b16 %v122
    %v546 = vunpack.c.l.b16 %v123
    %v547 = vunpack.c.h.b16 %v123
    %v548 = vunpack.c.l.b16 %v124
    %v549 = vunpack.c.h.b16 %v124
    %v550 = vunpack.c.l.b16 %v125
    %v551 = vunpack.c.h.b16 %v125
    %v552 = vunpack.c.l.b16 %v126
    %v553 = vunpack.c.h.b16 %v126
    %v554 = vunpack.c.l.b16 %v127
    %v555 = vunpack.c.h.b16 %v127
    %v556 = vunpack.c.l.b16 %v128
    %v557 = vunpack.c.h.b16 %v128
    %v558 = vunpack.c.l.b16 %v129
    %v559 = vunpack.c.h.b16 %v129
    %v560 = vunpack.c.l.b16 %v130
    %v561 = vunpack.c.h.b16 %v130
    %v562 = vunpack.c.l.b16 %v131
    %v563 = vunpack.c.h.b16 %v131
    %v564 = vunpack.c.l.b16 %v132
    %v565 = vunpack.c.h.b16 %v132
    %v566 = vunpack.c.l.b16 %v133
    %v567 = vunpack.c.h.b16 %v133
    %v568 = vunpack.c.l.b16 %v134
    %v569 = vunpack.c.h.b16 %v134
    %v570 = vunpack.c.l.b16 %v135
    %v571 = vunpack.c.h.b16 %v135
    %v572 = vunpack.c.l.b16 %v136
    %v573 = vunpack.c.h.b16 %v136
    %v574 = vunpack.c.l.b16 %v137
    %v575 = vunpack.c.h.b16 %v137
    %v576 = vunpack.c.l.b16 %v138
    %v577 = vunpack.c.h.b16 %v138
    %v578 = vunpack.c.l.b16 %v139
    %v579 = vunpack.c.h.b16 %v139
    %v580 = vunpack.c.l.b16 %v140
    %v581 = vunpack.c.h.b16 %v140
    %v582 = vunpack.c.l.b16 %v141
    %v583 = vunpack.c.h.b16 %v141
    %v584 = vunpack.c.l.b16 %v142
    %v585 = vunpack.c.h.b16 %v142
    %v586 = vunpack.c.l.b16 %v143
    %v587 = vunpack.c.h.b16 %v143
    %v588 = vunpack.c.l.b16 %v144
    %v589 = vunpack.c.h.b16 %v144
    %v590 = vunpack.c.l.b16 %v145
    %v591 = vunpack.c.h.b16 %v145
    %v592 = vunpack.c.l.b16 %v146
    %v593 = vunpack.c.h.b16 %v146
    %v594 = vunpack.c.l.b16 %v147
    %v595 = vunpack.c.h.b16 %v147
    %v596 = vunpack.c.l.b16 %v148
    %v597 = vunpack.c.h.b16 %v148
    %v598 = vunpack.c.l.b16 %v149
    %v599 = vunpack.c.h.b16 %v149
    %v600 = vunpack.c.l.b16 %v150
    %v601 = vunpack.c.h.b16 %v150
    %v602 = vunpack.c.l.b16 %v151
    %v603 = vunpack.c.h.b16 %v151
    %v604 = vunpack.c.l.b16 %v152
    %v605 = vunpack.c.h.b16 %v152
    %v606 = vunpack.c.l.b16 %v153
    %v607 = vunpack.c.h.b16 %v153
    %v608 = vunpack.c.l.b16 %v154
    %v609 = vunpack.c.h.b16 %v154
    %v610 = vunpack.c.l.b16 %v155
    %v611 = vunpack.c.h.b16 %v155
    %v612 = vunpack.c.l.b16 %v156
    %v613 = vunpack.c.h.b16 %v156
    %v614 = vunpack.c.l.b16 %v157
    %v615 = vunpack.c.h.b16 %v157
    %v616 = vunpack.c.l.b16 %v158
    %v617 = vunpack.c.h.b16 %v158
    %v618 = vunpack.c.l.b16 %v159
    %v619 = vunpack.c.h.b16 %v159
    %v620 = vunpack.c.l.b16 %v160
    %v621 = vunpack.c.h.b16 %v160
    %v622 = vunpack.c.l.b16 %v161
    %v623 = vunpack.c.h.b16 %v161
    %v624 = vunpack.c.l.b16 %v162
    %v625 = vunpack.c.h.b16 %v162
    %v626 = vunpack.c.l.b16 %v163
    %v627 = vunpack.c.h.b16 %v163
    %v628 = vunpack.c.l.b16 %v164
    %v629 = vunpack.c.h.b16 %v164
    %v630 = vunpack.c.l.b16 %v165
    %v631 = vunpack.c.h.b16 %v165
    %v632 = vunpack.c.l.b16 %v166
    %v633 = vunpack.c.h.b16 %v166
    %v634 = vunpack.c.l.b16 %v167
    %v635 = vunpack.c.h.b16 %v167
    %v636 = vunpack.c.l.b16 %v168
    %v637 = vunpack.c.h.b16 %v168
    %v638 = vunpack.c.l.b16 %v169
    %v639 = vunpack.c.h.b16 %v169
    %v640 = vunpack.c.l.b16 %v170
    %v641 = vunpack.c.h.b16 %v170
    %v642 = vunpack.c.l.b16 %v171
    %v643 = vunpack.c.h.b16 %v171
    %v644 = vunpack.c.l.b16 %v172
    %v645 = vunpack.c.h.b16 %v172
    %v646 = vunpack.c.l.b16 %v173
    %v647 = vunpack.c.h.b16 %v173
    %v648 = vunpack.c.l.b16 %v174
    %v649 = vunpack.c.h.b16 %v174
    %v650 = vunpack.c.l.b16 %v175
    %v651 = vunpack.c.h.b16 %v175
    %v652 = vunpack.c.l.b16 %v176
    %v653 = vunpack.c.h.b16 %v176
    %v654 = vunpack.c.l.b16 %v177
    %v655 = vunpack.c.h.b16 %v177
    %v656 = vunpack.c.l.b16 %v178
    %v657 = vunpack.c.h.b16 %v178
    %v658 = vunpack.c.l.b16 %v179
    %v659 = vunpack.c.h.b16 %v179
    %v660 = vunpack.c.l.b16 %v180
    %v661 = vunpack.c.h.b16 %v180
    %v662 = vunpack.c.l.b16 %v181
    %v663 = vunpack.c.h.b16 %v181
    %v664 = vunpack.c.l.b16 %v182
    %v665 = vunpack.c.h.b16 %v182
    %v666 = vunpack.c.l.b16 %v183
    %v667 = vunpack.c.h.b16 %v183
    %v668 = vunpack.c.l.b16 %v184
    %v669 = vunpack.c.h.b16 %v184
    %v670 = vunpack.c.l.b16 %v185
    %v671 = vunpack.c.h.b16 %v185
    %v672 = vunpack.c.l.b16 %v186
    %v673 = vunpack.c.h.b16 %v186
    %v674 = vunpack.c.l.b16 %v187
    %v675 = vunpack.c.h.b16 %v187
    %v676 = vunpack.c.l.b16 %v188
    %v677 = vunpack.c.h.b16 %v188
    %v678 = vunpack.c.l.b16 %v189
    %v679 = vunpack.c.h.b16 %v189
    %v680 = vunpack.c.l.b16 %v190
    %v681 = vunpack.c.h.b16 %v190
    %v682 = vunpack.c.l.b16 %v191
    %v683 = vunpack.c.h.b16 %v191
    %v684 = vunpack.c.l.b16 %v192
    %v685 = vunpack.c.h.b16 %v192
    %v686 = vunpack.c.l.b16 %v193
    %v687 = vunpack.c.h.b16 %v193
    %v688 = vunpack.c.l.b16 %v194
    %v689 = vunpack.c.h.b16 %v194
    %v690 = vunpack.c.l.b16 %v195
    %v691 = vunpack.c.h.b16 %v195
    %v692 = vunpack.c.l.b16 %v196
    %v693 = vunpack.c.h.b16 %v196
    %v694 = vunpack.c.l.b16 %v197
    %v695 = vunpack.c.h.b16 %v197
    %v696 = vunpack.c.l.b16 %v198
    %v697 = vunpack.c.h.b16 %v198
    %v698 = vunpack.c.l.b16 %v199
    %v699 = vunpack.c.h.b16 %v199
    %v700 = vunpack.c.l.b16 %v200
    %v701 = vunpack.c.h.b16 %v200
    %v702 = vunpack.c.l.b16 %v201
    %v703 = vunpack.c.h.b16 %v201
    %v704 = vunpack.c.l.b16 %v202
    %v705 = vunpack.c.h.b16 %v202
    %v706 = vunpack.c.l.b16 %v203
    %v707 = vunpack.c.h.b16 %v203
    %v708 = vunpack.c.l.b16 %v204
    %v709 = vunpack.c.h.b16 %v204
    %v710 = vunpack.c.l.b16 %v205
    %v711 = vunpack.c.h.b16 %v205
    %v712 = vunpack.c.l.b16 %v206
    %v713 = vunpack.c.h.b16 %v206
    %v714 = vunpack.c.l.b16 %v207
    %v715 = vunpack.c.h.b16 %v207
    %v716 = vunpack.c.l.b16 %v208
    %v717 = vunpack.c.h.b16 %v208
    %v718 = vunpack.c.l.b16 %v209
    %v719 = vunpack.c.h.b16 %v209
    %v720 = vunpack.c.l.b16 %v210
    %v721 = vunpack.c.h.b16 %v210
    %v722 = vunpack.c.l.b16 %v211
    %v723 = vunpack.c.h.b16 %v211
    %v724 = vunpack.c.l.b16 %v212
    %v725 = vunpack.c.h.b16 %v212
    %v726 = vunpack.c.l.b16 %v213
    %v727 = vunpack.c.h.b16 %v213
    %v728 = vunpack.c.l.b16 %v214
    %v729 = vunpack.c.h.b16 %v214
    %v730 = vunpack.c.l.b16 %v215
    %v731 = vunpack.c.h.b16 %v215
    %v732 = vunpack.c.l.b16 %v216
    %v733 = vunpack.c.h.b16 %v216
    %v734 = vunpack.c.l.b16 %v217
    %v735 = vunpack.c.h.b16 %v217
    %v736 = vunpack.c.l.b16 %v218
    %v737 = vunpack.c.h.b16 %v218
    %v738 = vunpack.c.l.b16 %v219
    %v739 = vunpack.c.h.b16 %v219
    %v740 = vunpack.c.l.b16 %v220
    %v741 = vunpack.c.h.b16 %v220
    %v742 = vunpack.c.l.b16 %v221
    %v743 = vunpack.c.h.b16 %v221
    %v744 = vunpack.c.l.b16 %v222
    %v745 = vunpack.c.h.b16 %v222
    %v746 = vunpack.c.l.b16 %v223
    %v747 = vunpack.c.h.b16 %v223
    %v748 = vpack.c.b16 %v462, %v460
    %v749 = vpack.c.b16 %v463, %v461
    %v750 = vpack.c.b16 %v466, %v464
    %v751 = vpack.c.b16 %v467, %v465
    %v752 = vpack.c.b16 %v470, %v468
    %v753 = vpack.c.b16 %v471, %v469
    %v754 = vpack.c.b16 %v474, %v472
    %v755 = vpack.c.b16 %v475, %v473
    %v756 = vpack.c.b16 %v478, %v476
    %v757 = vpack.c.b16 %v479, %v477
    %v758 = vpack.c.b16 %v482, %v480
    %v759 = vpack.c.b16 %v483, %v481
    %v760 = vpack.c.b16 %v486, %v484
    %v761 = vpack.c.b16 %v487, %v485
    %v762 = vpack.c.b16 %v490, %v488
    %v763 = vpack.c.b16 %v491, %v489
    %v764 = vpack.c.b16 %v494, %v492
    %v765 = vpack.c.b16 %v495, %v493
    %v766 = vpack.c.b16 %v498, %v496
    %v767 = vpack.c.b16 %v499, %v497
    %v768 = vpack.c.b16 %v502, %v500
    %v769 = vpack.c.b16 %v503, %v501
    %v770 = vpack.c.b16 %v506, %v504
    %v771 = vpack.c.b16 %v507, %v505
    %v772 = vpack.c.b16 %v510, %v508
    %v773 = vpack.c.b16 %v511, %v509
    %v774 = vpack.c.b16 %v514, %v512
    %v775 = vpack.c.b16 %v515, %v513
    %v776 = vpack.c.b16 %v518, %v516
    %v777 = vpack.c.b16 %v519, %v517
    %v778 = vpack.c.b16 %v522, %v520
    %v779 = vpack.c.b16 %v523, %v521
    %v780 = vpack.c.b16 %v526, %v524
    %v781 = vpack.c.b16 %v527, %v525
    %v782 = vpack.c.b16 %v530, %v528
    %v783 = vpack.c.b16 %v531, %v529
    %v784 = vpack.c.b16 %v534, %v532
    %v785 = vpack.c.b16 %v535, %v533
    %v786 = vpack.c.b16 %v538, %v536
    %v787 = vpack.c.b16 %v539, %v537
    %v788 = vpack.c.b16 %v542, %v540
    %v789 = vpack.c.b16 %v543, %v541
    %v790 = vpack.c.b16 %v546, %v544
    %v791 = vpack.c.b16 %v547, %v545
    %v792 = vpack.c.b16 %v550, %v548
    %v793 = vpack.c.b16 %v551, %v549
    %v794 = vpack.c.b16 %v554, %v552
    %v795 = vpack.c.b16 %v555, %v553
    %v796 = vpack.c.b16 %v558, %v556
    %v797 = vpack.c.b16 %v559, %v557
    %v798 = vpack.c.b16 %v562, %v560
    %v799 = vpack.c.b16 %v563, %v561
    %v800 = vpack.c.b16 %v566, %v564
    %v801 = vpack.c.b16 %v567, %v565
    %v802 = vpack.c.b16 %v570, %v568
    %v803 = vpack.c.b16 %v571, %v569
    %v804 = vpack.c.b16 %v574, %v572
    %v805 = vpack.c.b16 %v575, %v573
    %v806 = vpack.c.b16 %v578, %v576
    %v807 = vpack.c.b16 %v579, %v577
    %v808 = vpack.c.b16 %v582, %v580
    %v809 = vpack.c.b16 %v583, %v581
    %v810 = vpack.c.b16 %v586, %v584
    %v811 = vpack.c.b16 %v587, %v585
    %v812 = vpack.c.b16 %v590, %v588
    %v813 = vpack.c.b16 %v591, %v589
    %v814 = vpack.c.b16 %v594, %v592
    %v815 = vpack.c.b16 %v595, %v593
    %v816 = vpack.c.b16 %v598, %v596
    %v817 = vpack.c.b16 %v599, %v597
    %v818 = vpack.c.b16 %v602, %v600
    %v819 = vpack.c.b16 %v603, %v601
    %v820 = vpack.c.b16 %v606, %v604
    %v821 = vpack.c.b16 %v607, %v605
    %v822 = vpack.c.b16 %v610, %v608
    %v823 = vpack.c.b16 %v611, %v609
    %v824 = vpack.c.b16 %v614, %v612
    %v825 = vpack.c.b16 %v615, %v613
    %v826 = vpack.c.b16 %v618, %v616
    %v827 = vpack.c.b16 %v619, %v617
    %v828 = vpack.c.b16 %v622, %v620
    %v829 = vpack.c.b16 %v623, %v621
    %v830 = vpack.c.b16 %v626, %v624
    %v831 = vpack.c.b16 %v627, %v625
    %v832 = vpack.c.b16 %v630, %v628
    %v833 = vpack.c.b16 %v631, %v629
    %v834 = vpack.c.b16 %v634, %v632
    %v835 = vpack.c.b16 %v635, %v633
    %v836 = vpack.c.b16 %v638, %v636
    %v837 = vpack.c.b16 %v639, %v637
    %v838 = vpack.c.b16 %v642, %v640
    %v839 = vpack.c.b16 %v643, %v641
    %v840 = vpack.c.b16 %v646, %v644
    %v841 = vpack.c.b16 %v647, %v645
    %v842 = vpack.c.b16 %v650, %v648
    %v843 = vpack.c.b16 %v651, %v649
    %v844 = vpack.c.b16 %v654, %v652
    %v845 = vpack.c.b16 %v655, %v653
    %v846 = vpack.c.b16 %v658, %v656
    %v847 = vpack.c.b16 %v659, %v657
    %v848 = vpack.c.b16 %v662, %v660
    %v849 = vpack.c.b16 %v663, %v661
    %v850 = vpack.c.b16 %v666, %v664
    %v851 = vpack.c.b16 %v667, %v665
    %v852 = vpack.c.b16 %v670, %v668
    %v853 = vpack.c.b16 %v671, %v669
    %v854 = vpack.c.b16 %v674, %v672
    %v855 = vpack.c.b16 %v675, %v673
    %v856 = vpack.c.b16 %v678, %v676
    %v857 = vpack.c.b16 %v679, %v677
    %v858 = vpack.c.b16 %v682, %v680
    %v859 = vpack.c.b16 %v683, %v681
    %v860 = vpack.c.b16 %v686, %v684
    %v861 = vpack.c.b16 %v687, %v685
    %v862 = vpack.c.b16 %v690, %v688
    %v863 = vpack.c.b16 %v691, %v689
    %v864 = vpack.c.b16 %v694, %v692
    %v865 = vpack.c.b16 %v695, %v693
    %v866 = vpack.c.b16 %v698, %v696
    %v867 = vpack.c.b16 %v699, %v697
    %v868 = vpack.c.b16 %v702, %v700
    %v869 = vpack.c.b16 %v703, %v701
    %v870 = vpack.c.b16 %v706, %v704
    %v871 = vpack.c.b16 %v707, %v705
    %v872 = vpack.c.b16 %v710, %v708
    %v873 = vpack.c.b16 %v711, %v709
    %v874 = vpack.c.b16 %v714, %v712
    %v875 = vpack.c.b16 %v715, %v713
    %v876 = vpack.c.b16 %v718, %v716
    %v877 = vpack.c.b16 %v719, %v717
    %v878 = vpack.c.b16 %v722, %v720
    %v879 = vpack.c.b16 %v723, %v721
    %v880 = vpack.c.b16 %v726, %v724
    %v881 = vpack.c.b16 %v727, %v725
    %v882 = vpack.c.b16 %v730, %v728
    %v883 = vpack.c.b16 %v731, %v729
    %v884 = vpack.c.b16 %v734, %v732
    %v885 = vpack.c.b16 %v735, %v733
    %v886 = vpack.c.b16 %v738, %v736
    %v887 = vpack.c.b16 %v739, %v737
    %v888 = vpack.c.b16 %v742, %v740
    %v889 = vpack.c.b16 %v743, %v741
    %v890 = vpack.c.b16 %v746, %v744
    %v891 = vpack.c.b16 %v747, %v745
    %1036 = vmatpush.bf16.msra.mxu0 %v762
    %1037 = vmatpush.bf16.msra.mxu0 %v760
    %1038 = vmatpush.bf16.msra.mxu0 %v758
    %1039 = vmatpush.bf16.msra.mxu0 %v756
    %1040 = vmatpush.bf16.msra.mxu0 %v754
    %1041 = vmatpush.bf16.msra.mxu0 %v752
    %1042 = vmatpush.bf16.msra.mxu0 %v750
    %1043 = vmatpush.bf16.msra.mxu0 %v748
    %1044 = vmatmul.bf16.gmra.mxu0 %v280
    %v1045 = vpop.f32.mrf.mxu0
    %v1046 = vadd.f32 0.0, %v1045
    %v1047 = vpop.f32.mrf.mxu0
    %v1048 = vadd.f32 0.0, %v1047
    %1049 = vmatmul.bf16.gmra.mxu0 %v289
    %v1050 = vpop.f32.mrf.mxu0
    %v1051 = vadd.f32 0.0, %v1050
    %v1052 = vpop.f32.mrf.mxu0
    %v1053 = vadd.f32 0.0, %v1052
    %1054 = vdwg.mxu0
    %1055 = vmatpush.bf16.msra.mxu0 %v778
    %1056 = vmatpush.bf16.msra.mxu0 %v776
    %1057 = vmatpush.bf16.msra.mxu0 %v774
    %1058 = vmatpush.bf16.msra.mxu0 %v772
    %1059 = vmatpush.bf16.msra.mxu0 %v770
    %1060 = vmatpush.bf16.msra.mxu0 %v768
    %1061 = vmatpush.bf16.msra.mxu0 %v766
    %1062 = vmatpush.bf16.msra.mxu0 %v764
    %1063 = vmatmul.bf16.gmra.mxu0 %v281
    %v1064 = vpop.f32.mrf.mxu0
    %v1065 = vadd.f32 %v1046, %v1064
    %v1066 = vpop.f32.mrf.mxu0
    %v1067 = vadd.f32 %v1048, %v1066
    %1068 = vmatmul.bf16.gmra.mxu0 %v290
    %v1069 = vpop.f32.mrf.mxu0
    %v1070 = vadd.f32 %v1051, %v1069
    %v1071 = vpop.f32.mrf.mxu0
    %v1072 = vadd.f32 %v1053, %v1071
    %1073 = vdwg.mxu0
    %1074 = vmatpush.bf16.msra.mxu0 %v794
    %1075 = vmatpush.bf16.msra.mxu0 %v792
    %1076 = vmatpush.bf16.msra.mxu0 %v790
    %1077 = vmatpush.bf16.msra.mxu0 %v788
    %1078 = vmatpush.bf16.msra.mxu0 %v786
    %1079 = vmatpush.bf16.msra.mxu0 %v784
    %1080 = vmatpush.bf16.msra.mxu0 %v782
    %1081 = vmatpush.bf16.msra.mxu0 %v780
    %1082 = vmatmul.bf16.gmra.mxu0 %v282
    %v1083 = vpop.f32.mrf.mxu0
    %v1084 = vadd.f32 %v1065, %v1083
    %v1085 = vpop.f32.mrf.mxu0
    %v1086 = vadd.f32 %v1067, %v1085
    %1087 = vmatmul.bf16.gmra.mxu0 %v291
    %v1088 = vpop.f32.mrf.mxu0
    %v1089 = vadd.f32 %v1070, %v1088
    %v1090 = vpop.f32.mrf.mxu0
    %v1091 = vadd.f32 %v1072, %v1090
    %1092 = vdwg.mxu0
    %1093 = vmatpush.bf16.msra.mxu0 %v810
    %1094 = vmatpush.bf16.msra.mxu0 %v808
    %1095 = vmatpush.bf16.msra.mxu0 %v806
    %1096 = vmatpush.bf16.msra.mxu0 %v804
    %1097 = vmatpush.bf16.msra.mxu0 %v802
    %1098 = vmatpush.bf16.msra.mxu0 %v800
    %1099 = vmatpush.bf16.msra.mxu0 %v798
    %1100 = vmatpush.bf16.msra.mxu0 %v796
    %1101 = vmatmul.bf16.gmra.mxu0 %v283
    %v1102 = vpop.f32.mrf.mxu0
    %v1103 = vadd.f32 %v1084, %v1102
    %v1104 = vpop.f32.mrf.mxu0
    %v1105 = vadd.f32 %v1086, %v1104
    %1106 = vmatmul.bf16.gmra.mxu0 %v292
    %v1107 = vpop.f32.mrf.mxu0
    %v1108 = vadd.f32 %v1089, %v1107
    %v1109 = vpop.f32.mrf.mxu0
    %v1110 = vadd.f32 %v1091, %v1109
    %1111 = vdwg.mxu0
    %1112 = vmatpush.bf16.msra.mxu0 %v826
    %1113 = vmatpush.bf16.msra.mxu0 %v824
    %1114 = vmatpush.bf16.msra.mxu0 %v822
    %1115 = vmatpush.bf16.msra.mxu0 %v820
    %1116 = vmatpush.bf16.msra.mxu0 %v818
    %1117 = vmatpush.bf16.msra.mxu0 %v816
    %1118 = vmatpush.bf16.msra.mxu0 %v814
    %1119 = vmatpush.bf16.msra.mxu0 %v812
    %1120 = vmatmul.bf16.gmra.mxu0 %v284
    %v1121 = vpop.f32.mrf.mxu0
    %v1122 = vadd.f32 %v1103, %v1121
    %v1123 = vpop.f32.mrf.mxu0
    %v1124 = vadd.f32 %v1105, %v1123
    %1125 = vmatmul.bf16.gmra.mxu0 %v293
    %v1126 = vpop.f32.mrf.mxu0
    %v1127 = vadd.f32 %v1108, %v1126
    %v1128 = vpop.f32.mrf.mxu0
    %v1129 = vadd.f32 %v1110, %v1128
    %1130 = vdwg.mxu0
    %1131 = vmatpush.bf16.msra.mxu0 %v842
    %1132 = vmatpush.bf16.msra.mxu0 %v840
    %1133 = vmatpush.bf16.msra.mxu0 %v838
    %1134 = vmatpush.bf16.msra.mxu0 %v836
    %1135 = vmatpush.bf16.msra.mxu0 %v834
    %1136 = vmatpush.bf16.msra.mxu0 %v832
    %1137 = vmatpush.bf16.msra.mxu0 %v830
    %1138 = vmatpush.bf16.msra.mxu0 %v828
    %1139 = vmatmul.bf16.gmra.mxu0 %v285
    %v1140 = vpop.f32.mrf.mxu0
    %v1141 = vadd.f32 %v1122, %v1140
    %v1142 = vpop.f32.mrf.mxu0
    %v1143 = vadd.f32 %v1124, %v1142
    %1144 = vmatmul.bf16.gmra.mxu0 %v294
    %v1145 = vpop.f32.mrf.mxu0
    %v1146 = vadd.f32 %v1127, %v1145
    %v1147 = vpop.f32.mrf.mxu0
    %v1148 = vadd.f32 %v1129, %v1147
    %1149 = vdwg.mxu0
    %1150 = vmatpush.bf16.msra.mxu0 %v858
    %1151 = vmatpush.bf16.msra.mxu0 %v856
    %1152 = vmatpush.bf16.msra.mxu0 %v854
    %1153 = vmatpush.bf16.msra.mxu0 %v852
    %1154 = vmatpush.bf16.msra.mxu0 %v850
    %1155 = vmatpush.bf16.msra.mxu0 %v848
    %1156 = vmatpush.bf16.msra.mxu0 %v846
    %1157 = vmatpush.bf16.msra.mxu0 %v844
    %1158 = vmatmul.bf16.gmra.mxu0 %v286
    %v1159 = vpop.f32.mrf.mxu0
    %v1160 = vadd.f32 %v1141, %v1159
    %v1161 = vpop.f32.mrf.mxu0
    %v1162 = vadd.f32 %v1143, %v1161
    %1163 = vmatmul.bf16.gmra.mxu0 %v295
    %v1164 = vpop.f32.mrf.mxu0
    %v1165 = vadd.f32 %v1146, %v1164
    %v1166 = vpop.f32.mrf.mxu0
    %v1167 = vadd.f32 %v1148, %v1166
    %1168 = vdwg.mxu0
    %1169 = vmatpush.bf16.msra.mxu0 %v874
    %1170 = vmatpush.bf16.msra.mxu0 %v872
    %1171 = vmatpush.bf16.msra.mxu0 %v870
    %1172 = vmatpush.bf16.msra.mxu0 %v868
    %1173 = vmatpush.bf16.msra.mxu0 %v866
    %1174 = vmatpush.bf16.msra.mxu0 %v864
    %1175 = vmatpush.bf16.msra.mxu0 %v862
    %1176 = vmatpush.bf16.msra.mxu0 %v860
    %1177 = vmatmul.bf16.gmra.mxu0 %v287
    %v1178 = vpop.f32.mrf.mxu0
    %v1179 = vadd.f32 %v1160, %v1178
    %v1180 = vpop.f32.mrf.mxu0
    %v1181 = vadd.f32 %v1162, %v1180
    %1182 = vmatmul.bf16.gmra.mxu0 %v296
    %v1183 = vpop.f32.mrf.mxu0
    %v1184 = vadd.f32 %v1165, %v1183
    %v1185 = vpop.f32.mrf.mxu0
    %v1186 = vadd.f32 %v1167, %v1185
    %1187 = vdwg.mxu0
    %1188 = vmatpush.bf16.msra.mxu0 %v890
    %1189 = vmatpush.bf16.msra.mxu0 %v888
    %1190 = vmatpush.bf16.msra.mxu0 %v886
    %1191 = vmatpush.bf16.msra.mxu0 %v884
    %1192 = vmatpush.bf16.msra.mxu0 %v882
    %1193 = vmatpush.bf16.msra.mxu0 %v880
    %1194 = vmatpush.bf16.msra.mxu0 %v878
    %1195 = vmatpush.bf16.msra.mxu0 %v876
    %1196 = vmatmul.bf16.gmra.mxu0 %v288
    %v1197 = vpop.f32.mrf.mxu0
    %v1198 = vadd.f32 %v1179, %v1197
    %v1199 = vpop.f32.mrf.mxu0
    %v1200 = vadd.f32 %v1181, %v1199
    %1201 = vmatmul.bf16.gmra.mxu0 %v297
    %v1202 = vpop.f32.mrf.mxu0
    %v1203 = vadd.f32 %v1184, %v1202
    %v1204 = vpop.f32.mrf.mxu0
    %v1205 = vadd.f32 %v1186, %v1204
    %1206 = vdwg.mxu0
    %1207 = vmatpush.bf16.msra.mxu0 %v763
    %1208 = vmatpush.bf16.msra.mxu0 %v761
    %1209 = vmatpush.bf16.msra.mxu0 %v759
    %1210 = vmatpush.bf16.msra.mxu0 %v757
    %1211 = vmatpush.bf16.msra.mxu0 %v755
    %1212 = vmatpush.bf16.msra.mxu0 %v753
    %1213 = vmatpush.bf16.msra.mxu0 %v751
    %1214 = vmatpush.bf16.msra.mxu0 %v749
    %1215 = vmatmul.bf16.gmra.mxu0 %v280
    %v1216 = vpop.f32.mrf.mxu0
    %v1217 = vadd.f32 0.0, %v1216
    %v1218 = vpop.f32.mrf.mxu0
    %v1219 = vadd.f32 0.0, %v1218
    %1220 = vmatmul.bf16.gmra.mxu0 %v289
    %v1221 = vpop.f32.mrf.mxu0
    %v1222 = vadd.f32 0.0, %v1221
    %v1223 = vpop.f32.mrf.mxu0
    %v1224 = vadd.f32 0.0, %v1223
    %1225 = vdwg.mxu0
    %1226 = vmatpush.bf16.msra.mxu0 %v779
    %1227 = vmatpush.bf16.msra.mxu0 %v777
    %1228 = vmatpush.bf16.msra.mxu0 %v775
    %1229 = vmatpush.bf16.msra.mxu0 %v773
    %1230 = vmatpush.bf16.msra.mxu0 %v771
    %1231 = vmatpush.bf16.msra.mxu0 %v769
    %1232 = vmatpush.bf16.msra.mxu0 %v767
    %1233 = vmatpush.bf16.msra.mxu0 %v765
    %1234 = vmatmul.bf16.gmra.mxu0 %v281
    %v1235 = vpop.f32.mrf.mxu0
    %v1236 = vadd.f32 %v1217, %v1235
    %v1237 = vpop.f32.mrf.mxu0
    %v1238 = vadd.f32 %v1219, %v1237
    %1239 = vmatmul.bf16.gmra.mxu0 %v290
    %v1240 = vpop.f32.mrf.mxu0
    %v1241 = vadd.f32 %v1222, %v1240
    %v1242 = vpop.f32.mrf.mxu0
    %v1243 = vadd.f32 %v1224, %v1242
    %1244 = vdwg.mxu0
    %1245 = vmatpush.bf16.msra.mxu0 %v795
    %1246 = vmatpush.bf16.msra.mxu0 %v793
    %1247 = vmatpush.bf16.msra.mxu0 %v791
    %1248 = vmatpush.bf16.msra.mxu0 %v789
    %1249 = vmatpush.bf16.msra.mxu0 %v787
    %1250 = vmatpush.bf16.msra.mxu0 %v785
    %1251 = vmatpush.bf16.msra.mxu0 %v783
    %1252 = vmatpush.bf16.msra.mxu0 %v781
    %1253 = vmatmul.bf16.gmra.mxu0 %v282
    %v1254 = vpop.f32.mrf.mxu0
    %v1255 = vadd.f32 %v1236, %v1254
    %v1256 = vpop.f32.mrf.mxu0
    %v1257 = vadd.f32 %v1238, %v1256
    %1258 = vmatmul.bf16.gmra.mxu0 %v291
    %v1259 = vpop.f32.mrf.mxu0
    %v1260 = vadd.f32 %v1241, %v1259
    %v1261 = vpop.f32.mrf.mxu0
    %v1262 = vadd.f32 %v1243, %v1261
    %1263 = vdwg.mxu0
    %1264 = vmatpush.bf16.msra.mxu0 %v811
    %1265 = vmatpush.bf16.msra.mxu0 %v809
    %1266 = vmatpush.bf16.msra.mxu0 %v807
    %1267 = vmatpush.bf16.msra.mxu0 %v805
    %1268 = vmatpush.bf16.msra.mxu0 %v803
    %1269 = vmatpush.bf16.msra.mxu0 %v801
    %1270 = vmatpush.bf16.msra.mxu0 %v799
    %1271 = vmatpush.bf16.msra.mxu0 %v797
    %1272 = vmatmul.bf16.gmra.mxu0 %v283
    %v1273 = vpop.f32.mrf.mxu0
    %v1274 = vadd.f32 %v1255, %v1273
    %v1275 = vpop.f32.mrf.mxu0
    %v1276 = vadd.f32 %v1257, %v1275
    %1277 = vmatmul.bf16.gmra.mxu0 %v292
    %v1278 = vpop.f32.mrf.mxu0
    %v1279 = vadd.f32 %v1260, %v1278
    %v1280 = vpop.f32.mrf.mxu0
    %v1281 = vadd.f32 %v1262, %v1280
    %1282 = vdwg.mxu0
    %1283 = vmatpush.bf16.msra.mxu0 %v827
    %1284 = vmatpush.bf16.msra.mxu0 %v825
    %1285 = vmatpush.bf16.msra.mxu0 %v823
    %1286 = vmatpush.bf16.msra.mxu0 %v821
    %1287 = vmatpush.bf16.msra.mxu0 %v819
    %1288 = vmatpush.bf16.msra.mxu0 %v817
    %1289 = vmatpush.bf16.msra.mxu0 %v815
    %1290 = vmatpush.bf16.msra.mxu0 %v813
    %1291 = vmatmul.bf16.gmra.mxu0 %v284
    %v1292 = vpop.f32.mrf.mxu0
    %v1293 = vadd.f32 %v1274, %v1292
    %v1294 = vpop.f32.mrf.mxu0
    %v1295 = vadd.f32 %v1276, %v1294
    %1296 = vmatmul.bf16.gmra.mxu0 %v293
    %v1297 = vpop.f32.mrf.mxu0
    %v1298 = vadd.f32 %v1279, %v1297
    %v1299 = vpop.f32.mrf.mxu0
    %v1300 = vadd.f32 %v1281, %v1299
    %1301 = vdwg.mxu0
    %1302 = vmatpush.bf16.msra.mxu0 %v843
    %1303 = vmatpush.bf16.msra.mxu0 %v841
    %1304 = vmatpush.bf16.msra.mxu0 %v839
    %1305 = vmatpush.bf16.msra.mxu0 %v837
    %1306 = vmatpush.bf16.msra.mxu0 %v835
    %1307 = vmatpush.bf16.msra.mxu0 %v833
    %1308 = vmatpush.bf16.msra.mxu0 %v831
    %1309 = vmatpush.bf16.msra.mxu0 %v829
    %1310 = vmatmul.bf16.gmra.mxu0 %v285
    %v1311 = vpop.f32.mrf.mxu0
    %v1312 = vadd.f32 %v1293, %v1311
    %v1313 = vpop.f32.mrf.mxu0
    %v1314 = vadd.f32 %v1295, %v1313
    %1315 = vmatmul.bf16.gmra.mxu0 %v294
    %v1316 = vpop.f32.mrf.mxu0
    %v1317 = vadd.f32 %v1298, %v1316
    %v1318 = vpop.f32.mrf.mxu0
    %v1319 = vadd.f32 %v1300, %v1318
    %1320 = vdwg.mxu0
    %1321 = vmatpush.bf16.msra.mxu0 %v859
    %1322 = vmatpush.bf16.msra.mxu0 %v857
    %1323 = vmatpush.bf16.msra.mxu0 %v855
    %1324 = vmatpush.bf16.msra.mxu0 %v853
    %1325 = vmatpush.bf16.msra.mxu0 %v851
    %1326 = vmatpush.bf16.msra.mxu0 %v849
    %1327 = vmatpush.bf16.msra.mxu0 %v847
    %1328 = vmatpush.bf16.msra.mxu0 %v845
    %1329 = vmatmul.bf16.gmra.mxu0 %v286
    %v1330 = vpop.f32.mrf.mxu0
    %v1331 = vadd.f32 %v1312, %v1330
    %v1332 = vpop.f32.mrf.mxu0
    %v1333 = vadd.f32 %v1314, %v1332
    %1334 = vmatmul.bf16.gmra.mxu0 %v295
    %v1335 = vpop.f32.mrf.mxu0
    %v1336 = vadd.f32 %v1317, %v1335
    %v1337 = vpop.f32.mrf.mxu0
    %v1338 = vadd.f32 %v1319, %v1337
    %1339 = vdwg.mxu0
    %1340 = vmatpush.bf16.msra.mxu0 %v875
    %1341 = vmatpush.bf16.msra.mxu0 %v873
    %1342 = vmatpush.bf16.msra.mxu0 %v871
    %1343 = vmatpush.bf16.msra.mxu0 %v869
    %1344 = vmatpush.bf16.msra.mxu0 %v867
    %1345 = vmatpush.bf16.msra.mxu0 %v865
    %1346 = vmatpush.bf16.msra.mxu0 %v863
    %1347 = vmatpush.bf16.msra.mxu0 %v861
    %1348 = vmatmul.bf16.gmra.mxu0 %v287
    %v1349 = vpop.f32.mrf.mxu0
    %v1350 = vadd.f32 %v1331, %v1349
    %v1351 = vpop.f32.mrf.mxu0
    %v1352 = vadd.f32 %v1333, %v1351
    %1353 = vmatmul.bf16.gmra.mxu0 %v296
    %v1354 = vpop.f32.mrf.mxu0
    %v1355 = vadd.f32 %v1336, %v1354
    %v1356 = vpop.f32.mrf.mxu0
    %v1357 = vadd.f32 %v1338, %v1356
    %1358 = vdwg.mxu0
    %1359 = vmatpush.bf16.msra.mxu0 %v891
    %1360 = vmatpush.bf16.msra.mxu0 %v889
    %1361 = vmatpush.bf16.msra.mxu0 %v887
    %1362 = vmatpush.bf16.msra.mxu0 %v885
    %1363 = vmatpush.bf16.msra.mxu0 %v883
    %1364 = vmatpush.bf16.msra.mxu0 %v881
    %1365 = vmatpush.bf16.msra.mxu0 %v879
    %1366 = vmatpush.bf16.msra.mxu0 %v877
    %1367 = vmatmul.bf16.gmra.mxu0 %v288
    %v1368 = vpop.f32.mrf.mxu0
    %v1369 = vadd.f32 %v1350, %v1368
    %v1370 = vpop.f32.mrf.mxu0
    %v1371 = vadd.f32 %v1352, %v1370
    %1372 = vmatmul.bf16.gmra.mxu0 %v297
    %v1373 = vpop.f32.mrf.mxu0
    %v1374 = vadd.f32 %v1355, %v1373
    %v1375 = vpop.f32.mrf.mxu0
    %v1376 = vadd.f32 %v1357, %v1375
    %1377 = vdwg.mxu0
    %v1378 = vadd.f32 %v1198, %v1200
    %v1379 = vadd.f32 %v1378, %v1203
    %v1380 = vadd.f32 %v1379, %v1205
    %v1381 = vrot.slane %v1380, 4
    %v1382 = vadd.f32 %v1380, %v1381
    %v1383 = vrot.slane %v1382, 2
    %v1384 = vadd.f32 %v1382, %v1383
    %v1385 = vrot.slane %v1384, 1
    %v1386 = vadd.f32 %v1384, %v1385
    %v1387 = vadd.f32 %v1369, %v1371
    %v1388 = vadd.f32 %v1387, %v1374
    %v1389 = vadd.f32 %v1388, %v1376
    %v1390 = vrot.slane %v1389, 4
    %v1391 = vadd.f32 %v1389, %v1390
    %v1392 = vrot.slane %v1391, 2
    %v1393 = vadd.f32 %v1391, %v1392
    %v1394 = vrot.slane %v1393, 1
    %v1395 = vadd.f32 %v1393, %v1394
    %v1396 = vmul.f32 %v1198, %v1198
    %v1397 = vmul.f32 %v1369, %v1369
    %v1398 = vmul.f32 %v1200, %v1200
    %v1399 = vmul.f32 %v1371, %v1371
    %v1400 = vmul.f32 %v1203, %v1203
    %v1401 = vmul.f32 %v1374, %v1374
    %v1402 = vmul.f32 %v1205, %v1205
    %v1403 = vmul.f32 %v1376, %v1376
    %v1404 = vadd.f32 %v1396, %v1398
    %v1405 = vadd.f32 %v1404, %v1400
    %v1406 = vadd.f32 %v1405, %v1402
    %v1407 = vrot.slane %v1406, 4
    %v1408 = vadd.f32 %v1406, %v1407
    %v1409 = vrot.slane %v1408, 2
    %v1410 = vadd.f32 %v1408, %v1409
    %v1411 = vrot.slane %v1410, 1
    %v1412 = vadd.f32 %v1410, %v1411
    %v1413 = vadd.f32 %v1397, %v1399
    %v1414 = vadd.f32 %v1413, %v1401
    %v1415 = vadd.f32 %v1414, %v1403
    %v1416 = vrot.slane %v1415, 4
    %v1417 = vadd.f32 %v1415, %v1416
    %v1418 = vrot.slane %v1417, 2
    %v1419 = vadd.f32 %v1417, %v1418
    %v1420 = vrot.slane %v1419, 1
    %v1421 = vadd.f32 %v1419, %v1420
    %1423 = vrot.lane.b32.xlu0 %v1386, 64
    %v1424 = vpop.permute.xlu0 %1423
    %v1426 = vadd.f32 %v1386, %v1424
    %1428 = vrot.lane.b32.xlu0 %v1412, 64
    %v1429 = vpop.permute.xlu0 %1428
    %v1431 = vadd.f32 %v1412, %v1429
    %v1432 = vadd.f32 %v1426, %v1395
    %v1433 = vadd.f32 %v1431, %v1421
    %1435 = vrot.lane.b32.xlu0 %v1395, 64
    %v1436 = vpop.permute.xlu0 %1435
    %v1438 = vadd.f32 %v1432, %v1436
    %1440 = vrot.lane.b32.xlu0 %v1421, 64
    %v1441 = vpop.permute.xlu0 %1440
    %v1443 = vadd.f32 %v1433, %v1441
    %v1444 = vrcp.pop 128.0
    %v1445 = vmul.f32 128.0, %v1444
    %v1446 = vsub.f32 1.0, %v1445
    %v1447 = vmul.f32 %v1444, %v1446
    %v1448 = vadd.f32 %v1444, %v1447
    %vm1449 = vweird.f32 %v1444
    %v1450 = vsel %vm1449, %v1444, %v1448
    %v1451 = vmul.f32 %v1438, %v1450
    %v1452 = vmul.f32 %v1443, %v1450
    %v1453 = vmul.f32 %v1451, %v1451
    %v1454 = vsub.f32 %v1452, %v1453
    %v1455 = vmax.f32 %v1454, 0.0
    %v1456 = vld [vmem:[#allocation4] sm:$0x1]
    %v1457 = vadd.f32 %v1455, 1e-05
    %v1458 = vrsqrt.pop %v1457
    %v1459 = vmul.f32 %v1458, %v1457
    %v1460 = vmul.f32 %v1459, %v1458
    %v1461 = vmul.f32 0.5, %v1460
    %v1462 = vsub.f32 1.5, %v1461
    %v1463 = vmul.f32 %v1458, %v1462
    %vm1464 = vweird.f32 %v1457
    %vm1465 = vweird.f32 %v1458
    %vm1466 = vmor %vm1464, %vm1465
    %v1467 = vsel %vm1466, %v1458, %v1463
    %v1468 = vmul.f32 %v1456, %v1467
    %v1469 = vld [vmem:[#allocation6] sm:$0x1]
    %v1470 = vmul.f32 %v1451, %v1468
    %v1471 = vsub.f32 %v1469, %v1470
    %v1473 = vperm.slane %v1468, 0
    %1474 = vrot.lane.b32.xlu0 %v1473, 64
    %v1475 = vpop.permute.xlu0 %1474
    %vm1477 = vcmask 523264
    %v1478 = vsel %vm1477, %v1468, %v1475
    %v1480 = vperm.slane %v1471, 0
    %1481 = vrot.lane.b32.xlu0 %v1480, 64
    %v1482 = vpop.permute.xlu0 %1481
    %v1484 = vsel %vm1477, %v1471, %v1482
    %v1485 = vperm.slane %v1478, 0
    %v1486 = vmul.f32 %v1198, %v1485
    %v1487 = vmul.f32 %v1369, %v1485
    %v1488 = vmul.f32 %v1200, %v1485
    %v1489 = vmul.f32 %v1371, %v1485
    %v1490 = vmul.f32 %v1203, %v1485
    %v1491 = vmul.f32 %v1374, %v1485
    %v1492 = vmul.f32 %v1205, %v1485
    %v1493 = vmul.f32 %v1376, %v1485
    %v1494 = vperm.slane %v1484, 0
    %v1495 = vadd.f32 %v1486, %v1494
    %v1496 = vadd.f32 %v1487, %v1494
    %v1497 = vadd.f32 %v1488, %v1494
    %v1498 = vadd.f32 %v1489, %v1494
    %v1499 = vadd.f32 %v1490, %v1494
    %v1500 = vadd.f32 %v1491, %v1494
    %v1501 = vadd.f32 %v1492, %v1494
    %v1502 = vadd.f32 %v1493, %v1494
    %v1503 = vmax.f32 %v1495, 0.0
    %v1504 = vmax.f32 %v1496, 0.0
    %v1505 = vmax.f32 %v1497, 0.0
    %v1506 = vmax.f32 %v1498, 0.0
    %v1507 = vmax.f32 %v1499, 0.0
    %v1508 = vmax.f32 %v1500, 0.0
    %v1509 = vmax.f32 %v1501, 0.0
    %v1510 = vmax.f32 %v1502, 0.0
    %v1511 = vpack.c.bf16 %v1504, %v1503
    %v1512 = vpack.c.bf16 %v1506, %v1505
    %v1513 = vpack.c.bf16 %v1508, %v1507
    %v1514 = vpack.c.bf16 %v1510, %v1509
    %1515 = vst [vmem:[%s4] sm:$0xff] %v1511
    %1516 = vst [vmem:[%s4 + $0x8] sm:$0xff] %v1512
    %1517 = vst [vmem:[%s4 + $0x10] sm:$0xff] %v1513
    %1518 = vst [vmem:[%s4 + $0x18] sm:$0xff] %v1514
    // Predicated region
    $region30: #{_generator_forward.5} parent=1 // pred_check
      _
    $region31: #{_generator_forward.5} parent=1 // pred_check_branch
      %1520 = sbr.rel (0) target = $region33
    $region32: #{_generator_forward.5} parent=1 // pred_region
      _
    $region33: #{_generator_forward.5} parent=1 // pred_fallthru
      _
    // Predicated region
    $region34: #{_generator_forward.5} parent=1 // pred_check
      _
    $region35: #{_generator_forward.5} parent=1 // pred_check_branch
      %1522 = sbr.rel (0) target = $region37
    $region36: #{_generator_forward.5} parent=1 // pred_region
      _
    $region37: #{_generator_forward.5} parent=1 // pred_fallthru
      _
    %1523 = vsyncpa [#allocation3], 1
    %1524 = vsyncpa [#allocation5], 1

// kernel: _generator_forward.6
$region0: #{_generator_forward.6}
  #allocation0 [shape = 'u32[]', space=smem, size = 0x4, offset = 0x4, fixed_abs, tag = 'smem constant byte address 0x4 - core index']
  #allocation1 [shape = 'u32[72,128]{1,0:T(1,128)}', space=vmem, size = 0x9000, scoped, tag = 'internal scratch']
  %s0 = inlined_call_operand.vmem [shape: bf16[128,576], index: 0, kind: input, shape index: {}]
  %s1 = inlined_call_operand.vmem [shape: bf16[576,128], index: 1, kind: input, shape index: {}]
  %s2 = inlined_call_operand.vmem [shape: f32[1,32], index: 2, kind: input, shape index: {}]
  %s3 = inlined_call_operand.vmem [shape: f32[1,32], index: 3, kind: input, shape index: {}]
  %s4 = inlined_call_operand.vmem [shape: bf16[128,128], index: 4, kind: output, shape index: {}]
  %s5 = sld [smem:[#allocation0]]
  $region26: #{_generator_forward.6} parent=0
    _
  %s7 = ssub.s32 1, %s5
  %s8 = scalar_select 0, %s7, %s5
  // Predicated region
  $region2: #{_generator_forward.6} parent=0 // pred_check
    _
  $region3: #{_generator_forward.6} parent=0 // pred_check_branch
    %10 = sbr.rel (0) target = $region5
  $region4: #{_generator_forward.6} parent=0 // pred_region
    _
  $region5: #{_generator_forward.6} parent=0 // pred_fallthru
    _
  // Predicated region
  $region6: #{_generator_forward.6} parent=0 // pred_check
    _
  $region7: #{_generator_forward.6} parent=0 // pred_check_branch
    %12 = sbr.rel (0) target = $region9
  $region8: #{_generator_forward.6} parent=0 // pred_region
    _
  $region9: #{_generator_forward.6} parent=0 // pred_fallthru
    _
  // Predicated region
  $region10: #{_generator_forward.6} parent=0 // pred_check
    _
  $region11: #{_generator_forward.6} parent=0 // pred_check_branch
    %14 = sbr.rel (0) target = $region13
  $region12: #{_generator_forward.6} parent=0 // pred_region
    _
  $region13: #{_generator_forward.6} parent=0 // pred_fallthru
    _
  // Predicated region
  $region14: #{_generator_forward.6} parent=0 // pred_check
    _
  $region15: #{_generator_forward.6} parent=0 // pred_check_branch
    %16 = sbr.rel (0) target = $region17
  $region16: #{_generator_forward.6} parent=0 // pred_region
    _
  $region17: #{_generator_forward.6} parent=0 // pred_fallthru
    _
  %v18 = vld [vmem:[%s0] sm:$0xff]
  %v19 = vld [vmem:[%s0 + $0x8] sm:$0xff]
  %v20 = vld [vmem:[%s0 + $0x10] sm:$0xf]
  %v21 = vld [vmem:[%s0 + $0x14] sm:$0xff]
  %v22 = vld [vmem:[%s0 + $0x1c] sm:$0xff]
  %v23 = vld [vmem:[%s0 + $0x24] sm:$0xf]
  %v24 = vld [vmem:[%s0 + $0x28] sm:$0xff]
  %v25 = vld [vmem:[%s0 + $0x30] sm:$0xff]
  %v26 = vld [vmem:[%s0 + $0x38] sm:$0xf]
  %v27 = vld [vmem:[%s0 + $0x3c] sm:$0xff]
  %v28 = vld [vmem:[%s0 + $0x44] sm:$0xff]
  %v29 = vld [vmem:[%s0 + $0x4c] sm:$0xf]
  %v30 = vld [vmem:[%s0 + $0x50] sm:$0xff]
  %v31 = vld [vmem:[%s0 + $0x58] sm:$0xff]
  %v32 = vld [vmem:[%s0 + $0x60] sm:$0xf]
  %v33 = vld [vmem:[%s0 + $0x64] sm:$0xff]
  %v34 = vld [vmem:[%s0 + $0x6c] sm:$0xff]
  %v35 = vld [vmem:[%s0 + $0x74] sm:$0xf]
  %v36 = vld [vmem:[%s0 + $0x78] sm:$0xff]
  %v37 = vld [vmem:[%s0 + $0x80] sm:$0xff]
  %v38 = vld [vmem:[%s0 + $0x88] sm:$0xf]
  %v39 = vld [vmem:[%s0 + $0x8c] sm:$0xff]
  %v40 = vld [vmem:[%s0 + $0x94] sm:$0xff]
  %v41 = vld [vmem:[%s0 + $0x9c] sm:$0xf]
  %v42 = vld [vmem:[%s0 + $0xa0] sm:$0xff]
  %v43 = vld [vmem:[%s0 + $0xa8] sm:$0xff]
  %v44 = vld [vmem:[%s0 + $0xb0] sm:$0xf]
  %v45 = vld [vmem:[%s0 + $0xb4] sm:$0xff]
  %v46 = vld [vmem:[%s0 + $0xbc] sm:$0xff]
  %v47 = vld [vmem:[%s0 + $0xc4] sm:$0xf]
  %v48 = vld [vmem:[%s0 + $0xc8] sm:$0xff]
  %v49 = vld [vmem:[%s0 + $0xd0] sm:$0xff]
  %v50 = vld [vmem:[%s0 + $0xd8] sm:$0xf]
  %v51 = vld [vmem:[%s0 + $0xdc] sm:$0xff]
  %v52 = vld [vmem:[%s0 + $0xe4] sm:$0xff]
  %v53 = vld [vmem:[%s0 + $0xec] sm:$0xf]
  %v54 = vld [vmem:[%s0 + $0xf0] sm:$0xff]
  %v55 = vld [vmem:[%s0 + $0xf8] sm:$0xff]
  %v56 = vld [vmem:[%s0 + $0x100] sm:$0xf]
  %v57 = vld [vmem:[%s0 + $0x104] sm:$0xff]
  %v58 = vld [vmem:[%s0 + $0x10c] sm:$0xff]
  %v59 = vld [vmem:[%s0 + $0x114] sm:$0xf]
  %v60 = vld [vmem:[%s0 + $0x118] sm:$0xff]
  %v61 = vld [vmem:[%s0 + $0x120] sm:$0xff]
  %v62 = vld [vmem:[%s0 + $0x128] sm:$0xf]
  %v63 = vld [vmem:[%s0 + $0x12c] sm:$0xff]
  %v64 = vld [vmem:[%s0 + $0x134] sm:$0xff]
  %v65 = vld [vmem:[%s0 + $0x13c] sm:$0xf]
  %v66 = vld [vmem:[%s1] sm:$0xf]
  %v67 = vld [vmem:[%s1 + $0x4] sm:$0xf]
  %v68 = vld [vmem:[%s1 + $0x8] sm:$0xf]
  %v69 = vld [vmem:[%s1 + $0xc] sm:$0xf]
  %v70 = vld [vmem:[%s1 + $0x10] sm:$0xf]
  %v71 = vld [vmem:[%s1 + $0x14] sm:$0xf]
  %v72 = vld [vmem:[%s1 + $0x18] sm:$0xf]
  %v73 = vld [vmem:[%s1 + $0x1c] sm:$0xf]
  %v74 = vld [vmem:[%s1 + $0x20] sm:$0xf]
  %v75 = vld [vmem:[%s1 + $0x24] sm:$0xf]
  %v76 = vld [vmem:[%s1 + $0x28] sm:$0xf]
  %v77 = vld [vmem:[%s1 + $0x2c] sm:$0xf]
  %v78 = vld [vmem:[%s1 + $0x30] sm:$0xf]
  %v79 = vld [vmem:[%s1 + $0x34] sm:$0xf]
  %v80 = vld [vmem:[%s1 + $0x38] sm:$0xf]
  %v81 = vld [vmem:[%s1 + $0x3c] sm:$0xf]
  %v82 = vld [vmem:[%s1 + $0x40] sm:$0xf]
  %v83 = vld [vmem:[%s1 + $0x44] sm:$0xf]
  %v84 = vld [vmem:[%s1 + $0x48] sm:$0xf]
  %v85 = vld [vmem:[%s1 + $0x4c] sm:$0xf]
  %v86 = vld [vmem:[%s1 + $0x50] sm:$0xf]
  %v87 = vld [vmem:[%s1 + $0x54] sm:$0xf]
  %v88 = vld [vmem:[%s1 + $0x58] sm:$0xf]
  %v89 = vld [vmem:[%s1 + $0x5c] sm:$0xf]
  %v90 = vld [vmem:[%s1 + $0x60] sm:$0xf]
  %v91 = vld [vmem:[%s1 + $0x64] sm:$0xf]
  %v92 = vld [vmem:[%s1 + $0x68] sm:$0xf]
  %v93 = vld [vmem:[%s1 + $0x6c] sm:$0xf]
  %v94 = vld [vmem:[%s1 + $0x70] sm:$0xf]
  %v95 = vld [vmem:[%s1 + $0x74] sm:$0xf]
  %v96 = vld [vmem:[%s1 + $0x78] sm:$0xf]
  %v97 = vld [vmem:[%s1 + $0x7c] sm:$0xf]
  %v98 = vld [vmem:[%s1 + $0x80] sm:$0xf]
  %v99 = vld [vmem:[%s1 + $0x84] sm:$0xf]
  %v100 = vld [vmem:[%s1 + $0x88] sm:$0xf]
  %v101 = vld [vmem:[%s1 + $0x8c] sm:$0xf]
  %v102 = vld [vmem:[%s1 + $0x90] sm:$0xf]
  %v103 = vld [vmem:[%s1 + $0x94] sm:$0xf]
  %v104 = vld [vmem:[%s1 + $0x98] sm:$0xf]
  %v105 = vld [vmem:[%s1 + $0x9c] sm:$0xf]
  %v106 = vld [vmem:[%s1 + $0xa0] sm:$0xf]
  %v107 = vld [vmem:[%s1 + $0xa4] sm:$0xf]
  %v108 = vld [vmem:[%s1 + $0xa8] sm:$0xf]
  %v109 = vld [vmem:[%s1 + $0xac] sm:$0xf]
  %v110 = vld [vmem:[%s1 + $0xb0] sm:$0xf]
  %v111 = vld [vmem:[%s1 + $0xb4] sm:$0xf]
  %v112 = vld [vmem:[%s1 + $0xb8] sm:$0xf]
  %v113 = vld [vmem:[%s1 + $0xbc] sm:$0xf]
  %v114 = vld [vmem:[%s1 + $0xc0] sm:$0xf]
  %v115 = vld [vmem:[%s1 + $0xc4] sm:$0xf]
  %v116 = vld [vmem:[%s1 + $0xc8] sm:$0xf]
  %v117 = vld [vmem:[%s1 + $0xcc] sm:$0xf]
  %v118 = vld [vmem:[%s1 + $0xd0] sm:$0xf]
  %v119 = vld [vmem:[%s1 + $0xd4] sm:$0xf]
  %v120 = vld [vmem:[%s1 + $0xd8] sm:$0xf]
  %v121 = vld [vmem:[%s1 + $0xdc] sm:$0xf]
  %v122 = vld [vmem:[%s1 + $0xe0] sm:$0xf]
  %v123 = vld [vmem:[%s1 + $0xe4] sm:$0xf]
  %v124 = vld [vmem:[%s1 + $0xe8] sm:$0xf]
  %v125 = vld [vmem:[%s1 + $0xec] sm:$0xf]
  %v126 = vld [vmem:[%s1 + $0xf0] sm:$0xf]
  %v127 = vld [vmem:[%s1 + $0xf4] sm:$0xf]
  %v128 = vld [vmem:[%s1 + $0xf8] sm:$0xf]
  %v129 = vld [vmem:[%s1 + $0xfc] sm:$0xf]
  %v130 = vld [vmem:[%s1 + $0x100] sm:$0xf]
  %v131 = vld [vmem:[%s1 + $0x104] sm:$0xf]
  %v132 = vld [vmem:[%s1 + $0x108] sm:$0xf]
  %v133 = vld [vmem:[%s1 + $0x10c] sm:$0xf]
  %v134 = vld [vmem:[%s1 + $0x110] sm:$0xf]
  %v135 = vld [vmem:[%s1 + $0x114] sm:$0xf]
  %v136 = vld [vmem:[%s1 + $0x118] sm:$0xf]
  %v137 = vld [vmem:[%s1 + $0x11c] sm:$0xf]
  %v186 = vunpack.c.l.b16 %v18
  %v187 = vunpack.c.h.b16 %v18
  %v188 = vunpack.c.l.b16 %v19
  %v189 = vunpack.c.h.b16 %v19
  %v190 = vunpack.c.l.b16 %v20
  %v191 = vunpack.c.l.b16 %v21
  %v192 = vunpack.c.h.b16 %v21
  %v193 = vunpack.c.l.b16 %v22
  %v194 = vunpack.c.h.b16 %v22
  %v195 = vunpack.c.l.b16 %v23
  %v196 = vunpack.c.l.b16 %v24
  %v197 = vunpack.c.h.b16 %v24
  %v198 = vunpack.c.l.b16 %v25
  %v199 = vunpack.c.h.b16 %v25
  %v200 = vunpack.c.l.b16 %v26
  %v201 = vunpack.c.l.b16 %v27
  %v202 = vunpack.c.h.b16 %v27
  %v203 = vunpack.c.l.b16 %v28
  %v204 = vunpack.c.h.b16 %v28
  %v205 = vunpack.c.l.b16 %v29
  %v206 = vunpack.c.l.b16 %v30
  %v207 = vunpack.c.h.b16 %v30
  %v208 = vunpack.c.l.b16 %v31
  %v209 = vunpack.c.h.b16 %v31
  %v210 = vunpack.c.l.b16 %v32
  %v211 = vunpack.c.l.b16 %v33
  %v212 = vunpack.c.h.b16 %v33
  %v213 = vunpack.c.l.b16 %v34
  %v214 = vunpack.c.h.b16 %v34
  %v215 = vunpack.c.l.b16 %v35
  %v216 = vunpack.c.l.b16 %v36
  %v217 = vunpack.c.h.b16 %v36
  %v218 = vunpack.c.l.b16 %v37
  %v219 = vunpack.c.h.b16 %v37
  %v220 = vunpack.c.l.b16 %v38
  %v221 = vunpack.c.l.b16 %v39
  %v222 = vunpack.c.h.b16 %v39
  %v223 = vunpack.c.l.b16 %v40
  %v224 = vunpack.c.h.b16 %v40
  %v225 = vunpack.c.l.b16 %v41
  %v226 = vunpack.c.l.b16 %v42
  %v227 = vunpack.c.h.b16 %v42
  %v228 = vunpack.c.l.b16 %v43
  %v229 = vunpack.c.h.b16 %v43
  %v230 = vunpack.c.l.b16 %v44
  %v231 = vunpack.c.l.b16 %v45
  %v232 = vunpack.c.h.b16 %v45
  %v233 = vunpack.c.l.b16 %v46
  %v234 = vunpack.c.h.b16 %v46
  %v235 = vunpack.c.l.b16 %v47
  %v236 = vunpack.c.l.b16 %v48
  %v237 = vunpack.c.h.b16 %v48
  %v238 = vunpack.c.l.b16 %v49
  %v239 = vunpack.c.h.b16 %v49
  %v240 = vunpack.c.l.b16 %v50
  %v241 = vunpack.c.l.b16 %v51
  %v242 = vunpack.c.h.b16 %v51
  %v243 = vunpack.c.l.b16 %v52
  %v244 = vunpack.c.h.b16 %v52
  %v245 = vunpack.c.l.b16 %v53
  %v246 = vunpack.c.l.b16 %v54
  %v247 = vunpack.c.h.b16 %v54
  %v248 = vunpack.c.l.b16 %v55
  %v249 = vunpack.c.h.b16 %v55
  %v250 = vunpack.c.l.b16 %v56
  %v251 = vunpack.c.l.b16 %v57
  %v252 = vunpack.c.h.b16 %v57
  %v253 = vunpack.c.l.b16 %v58
  %v254 = vunpack.c.h.b16 %v58
  %v255 = vunpack.c.l.b16 %v59
  %v256 = vunpack.c.l.b16 %v60
  %v257 = vunpack.c.h.b16 %v60
  %v258 = vunpack.c.l.b16 %v61
  %v259 = vunpack.c.h.b16 %v61
  %v260 = vunpack.c.l.b16 %v62
  %v261 = vunpack.c.l.b16 %v63
  %v262 = vunpack.c.h.b16 %v63
  %v263 = vunpack.c.l.b16 %v64
  %v264 = vunpack.c.h.b16 %v64
  %v265 = vunpack.c.l.b16 %v65
  %v266 = vpack.c.b16 %v191, %v186
  %v267 = vpack.c.b16 %v192, %v187
  %v268 = vpack.c.b16 %v193, %v188
  %v269 = vpack.c.b16 %v194, %v189
  %v270 = vpack.c.b16 %v195, %v190
  %v271 = vpack.c.b16 %v201, %v196
  %v272 = vpack.c.b16 %v202, %v197
  %v273 = vpack.c.b16 %v203, %v198
  %v274 = vpack.c.b16 %v204, %v199
  %v275 = vpack.c.b16 %v205, %v200
  %v276 = vpack.c.b16 %v211, %v206
  %v277 = vpack.c.b16 %v212, %v207
  %v278 = vpack.c.b16 %v213, %v208
  %v279 = vpack.c.b16 %v214, %v209
  %v280 = vpack.c.b16 %v215, %v210
  %v281 = vpack.c.b16 %v221, %v216
  %v282 = vpack.c.b16 %v222, %v217
  %v283 = vpack.c.b16 %v223, %v218
  %v284 = vpack.c.b16 %v224, %v219
  %v285 = vpack.c.b16 %v225, %v220
  %v286 = vpack.c.b16 %v231, %v226
  %v287 = vpack.c.b16 %v232, %v227
  %v288 = vpack.c.b16 %v233, %v228
  %v289 = vpack.c.b16 %v234, %v229
  %v290 = vpack.c.b16 %v235, %v230
  %v291 = vpack.c.b16 %v241, %v236
  %v292 = vpack.c.b16 %v242, %v237
  %v293 = vpack.c.b16 %v243, %v238
  %v294 = vpack.c.b16 %v244, %v239
  %v295 = vpack.c.b16 %v245, %v240
  %v296 = vpack.c.b16 %v251, %v246
  %v297 = vpack.c.b16 %v252, %v247
  %v298 = vpack.c.b16 %v253, %v248
  %v299 = vpack.c.b16 %v254, %v249
  %v300 = vpack.c.b16 %v255, %v250
  %v301 = vpack.c.b16 %v261, %v256
  %v302 = vpack.c.b16 %v262, %v257
  %v303 = vpack.c.b16 %v263, %v258
  %v304 = vpack.c.b16 %v264, %v259
  %v305 = vpack.c.b16 %v265, %v260
  %v410 = vunpack.c.l.b16 %v66
  %v411 = vunpack.c.l.b16 %v67
  %v412 = vunpack.c.l.b16 %v68
  %v413 = vunpack.c.l.b16 %v69
  %v414 = vunpack.c.l.b16 %v70
  %v415 = vunpack.c.l.b16 %v71
  %v416 = vunpack.c.l.b16 %v72
  %v417 = vunpack.c.l.b16 %v73
  %v418 = vunpack.c.l.b16 %v74
  %v419 = vunpack.c.l.b16 %v75
  %v420 = vunpack.c.l.b16 %v76
  %v421 = vunpack.c.l.b16 %v77
  %v422 = vunpack.c.l.b16 %v78
  %v423 = vunpack.c.l.b16 %v79
  %v424 = vunpack.c.l.b16 %v80
  %v425 = vunpack.c.l.b16 %v81
  %v426 = vunpack.c.l.b16 %v82
  %v427 = vunpack.c.l.b16 %v83
  %v428 = vunpack.c.l.b16 %v84
  %v429 = vunpack.c.l.b16 %v85
  %v430 = vunpack.c.l.b16 %v86
  %v431 = vunpack.c.l.b16 %v87
  %v432 = vunpack.c.l.b16 %v88
  %v433 = vunpack.c.l.b16 %v89
  %v434 = vunpack.c.l.b16 %v90
  %v435 = vunpack.c.l.b16 %v91
  %v436 = vunpack.c.l.b16 %v92
  %v437 = vunpack.c.l.b16 %v93
  %v438 = vunpack.c.l.b16 %v94
  %v439 = vunpack.c.l.b16 %v95
  %v440 = vunpack.c.l.b16 %v96
  %v441 = vunpack.c.l.b16 %v97
  %v442 = vunpack.c.l.b16 %v98
  %v443 = vunpack.c.l.b16 %v99
  %v444 = vunpack.c.l.b16 %v100
  %v445 = vunpack.c.l.b16 %v101
  %v446 = vunpack.c.l.b16 %v102
  %v447 = vunpack.c.l.b16 %v103
  %v448 = vunpack.c.l.b16 %v104
  %v449 = vunpack.c.l.b16 %v105
  %v450 = vunpack.c.l.b16 %v106
  %v451 = vunpack.c.l.b16 %v107
  %v452 = vunpack.c.l.b16 %v108
  %v453 = vunpack.c.l.b16 %v109
  %v454 = vunpack.c.l.b16 %v110
  %v455 = vunpack.c.l.b16 %v111
  %v456 = vunpack.c.l.b16 %v112
  %v457 = vunpack.c.l.b16 %v113
  %v458 = vunpack.c.l.b16 %v114
  %v459 = vunpack.c.l.b16 %v115
  %v460 = vunpack.c.l.b16 %v116
  %v461 = vunpack.c.l.b16 %v117
  %v462 = vunpack.c.l.b16 %v118
  %v463 = vunpack.c.l.b16 %v119
  %v464 = vunpack.c.l.b16 %v120
  %v465 = vunpack.c.l.b16 %v121
  %v466 = vunpack.c.l.b16 %v122
  %v467 = vunpack.c.l.b16 %v123
  %v468 = vunpack.c.l.b16 %v124
  %v469 = vunpack.c.l.b16 %v125
  %v470 = vunpack.c.l.b16 %v126
  %v471 = vunpack.c.l.b16 %v127
  %v472 = vunpack.c.l.b16 %v128
  %v473 = vunpack.c.l.b16 %v129
  %v474 = vunpack.c.l.b16 %v130
  %v475 = vunpack.c.l.b16 %v131
  %v476 = vunpack.c.l.b16 %v132
  %v477 = vunpack.c.l.b16 %v133
  %v478 = vunpack.c.l.b16 %v134
  %v479 = vunpack.c.l.b16 %v135
  %v480 = vunpack.c.l.b16 %v136
  %v481 = vunpack.c.l.b16 %v137
  %v482 = vpack.c.b16 %v411, %v410
  %v483 = vpack.c.b16 %v413, %v412
  %v484 = vpack.c.b16 %v415, %v414
  %v485 = vpack.c.b16 %v417, %v416
  %v486 = vpack.c.b16 %v419, %v418
  %v487 = vpack.c.b16 %v421, %v420
  %v488 = vpack.c.b16 %v423, %v422
  %v489 = vpack.c.b16 %v425, %v424
  %v490 = vpack.c.b16 %v427, %v426
  %v491 = vpack.c.b16 %v429, %v428
  %v492 = vpack.c.b16 %v431, %v430
  %v493 = vpack.c.b16 %v433, %v432
  %v494 = vpack.c.b16 %v435, %v434
  %v495 = vpack.c.b16 %v437, %v436
  %v496 = vpack.c.b16 %v439, %v438
  %v497 = vpack.c.b16 %v441, %v440
  %v498 = vpack.c.b16 %v443, %v442
  %v499 = vpack.c.b16 %v445, %v444
  %v500 = vpack.c.b16 %v447, %v446
  %v501 = vpack.c.b16 %v449, %v448
  %v502 = vpack.c.b16 %v451, %v450
  %v503 = vpack.c.b16 %v453, %v452
  %v504 = vpack.c.b16 %v455, %v454
  %v505 = vpack.c.b16 %v457, %v456
  %v506 = vpack.c.b16 %v459, %v458
  %v507 = vpack.c.b16 %v461, %v460
  %v508 = vpack.c.b16 %v463, %v462
  %v509 = vpack.c.b16 %v465, %v464
  %v510 = vpack.c.b16 %v467, %v466
  %v511 = vpack.c.b16 %v469, %v468
  %v512 = vpack.c.b16 %v471, %v470
  %v513 = vpack.c.b16 %v473, %v472
  %v514 = vpack.c.b16 %v475, %v474
  %v515 = vpack.c.b16 %v477, %v476
  %v516 = vpack.c.b16 %v479, %v478
  %v517 = vpack.c.b16 %v481, %v480
  %vm554 = vcmask 523264
  %v556 = vsel %vm554, %v270, 0
  %v559 = vsel %vm554, %v275, 0
  %v562 = vsel %vm554, %v280, 0
  %v565 = vsel %vm554, %v285, 0
  %v568 = vsel %vm554, %v290, 0
  %v571 = vsel %vm554, %v295, 0
  %v574 = vsel %vm554, %v300, 0
  %v577 = vsel %vm554, %v305, 0
  %579 = vmatpush.bf16.msra.mxu0 %v489
  %580 = vmatpush.bf16.msra.mxu0 %v488
  %581 = vmatpush.bf16.msra.mxu0 %v487
  %582 = vmatpush.bf16.msra.mxu0 %v486
  %583 = vmatpush.bf16.msra.mxu0 %v485
  %584 = vmatpush.bf16.msra.mxu0 %v484
  %585 = vmatpush.bf16.msra.mxu0 %v483
  %586 = vmatpush.bf16.msra.mxu0 %v482
  %587 = vmatmul.bf16.gmra.mxu0 %v266
  %v588 = vpop.f32.mrf.mxu0
  %v589 = vadd.f32 0.0, %v588
  %v590 = vpop.f32.mrf.mxu0
  %v591 = vadd.f32 0.0, %v590
  %592 = vmatmul.bf16.gmra.mxu0 %v271
  %v593 = vpop.f32.mrf.mxu0
  %v594 = vadd.f32 0.0, %v593
  %v595 = vpop.f32.mrf.mxu0
  %v596 = vadd.f32 0.0, %v595
  %597 = vmatmul.bf16.gmra.mxu0 %v276
  %v598 = vpop.f32.mrf.mxu0
  %v599 = vadd.f32 0.0, %v598
  %v600 = vpop.f32.mrf.mxu0
  %v601 = vadd.f32 0.0, %v600
  %602 = vmatmul.bf16.gmra.mxu0 %v281
  %v603 = vpop.f32.mrf.mxu0
  %v604 = vadd.f32 0.0, %v603
  %v605 = vpop.f32.mrf.mxu0
  %v606 = vadd.f32 0.0, %v605
  %607 = vmatmul.bf16.gmra.mxu0 %v286
  %v608 = vpop.f32.mrf.mxu0
  %v609 = vadd.f32 0.0, %v608
  %v610 = vpop.f32.mrf.mxu0
  %v611 = vadd.f32 0.0, %v610
  %612 = vmatmul.bf16.gmra.mxu0 %v291
  %v613 = vpop.f32.mrf.mxu0
  %v614 = vadd.f32 0.0, %v613
  %v615 = vpop.f32.mrf.mxu0
  %v616 = vadd.f32 0.0, %v615
  %617 = vmatmul.bf16.gmra.mxu0 %v296
  %v618 = vpop.f32.mrf.mxu0
  %v619 = vadd.f32 0.0, %v618
  %v620 = vpop.f32.mrf.mxu0
  %v621 = vadd.f32 0.0, %v620
  %622 = vmatmul.bf16.gmra.mxu0 %v301
  %v623 = vpop.f32.mrf.mxu0
  %v624 = vadd.f32 0.0, %v623
  %v625 = vpop.f32.mrf.mxu0
  %v626 = vadd.f32 0.0, %v625
  %627 = vdwg.mxu0
  %628 = vmatpush.bf16.msra.mxu0 %v497
  %629 = vmatpush.bf16.msra.mxu0 %v496
  %630 = vmatpush.bf16.msra.mxu0 %v495
  %631 = vmatpush.bf16.msra.mxu0 %v494
  %632 = vmatpush.bf16.msra.mxu0 %v493
  %633 = vmatpush.bf16.msra.mxu0 %v492
  %634 = vmatpush.bf16.msra.mxu0 %v491
  %635 = vmatpush.bf16.msra.mxu0 %v490
  %636 = vmatmul.bf16.gmra.mxu0 %v267
  %v637 = vpop.f32.mrf.mxu0
  %v638 = vadd.f32 %v589, %v637
  %v639 = vpop.f32.mrf.mxu0
  %v640 = vadd.f32 %v591, %v639
  %641 = vmatmul.bf16.gmra.mxu0 %v272
  %v642 = vpop.f32.mrf.mxu0
  %v643 = vadd.f32 %v594, %v642
  %v644 = vpop.f32.mrf.mxu0
  %v645 = vadd.f32 %v596, %v644
  %646 = vmatmul.bf16.gmra.mxu0 %v277
  %v647 = vpop.f32.mrf.mxu0
  %v648 = vadd.f32 %v599, %v647
  %v649 = vpop.f32.mrf.mxu0
  %v650 = vadd.f32 %v601, %v649
  %651 = vmatmul.bf16.gmra.mxu0 %v282
  %v652 = vpop.f32.mrf.mxu0
  %v653 = vadd.f32 %v604, %v652
  %v654 = vpop.f32.mrf.mxu0
  %v655 = vadd.f32 %v606, %v654
  %656 = vmatmul.bf16.gmra.mxu0 %v287
  %v657 = vpop.f32.mrf.mxu0
  %v658 = vadd.f32 %v609, %v657
  %v659 = vpop.f32.mrf.mxu0
  %v660 = vadd.f32 %v611, %v659
  %661 = vmatmul.bf16.gmra.mxu0 %v292
  %v662 = vpop.f32.mrf.mxu0
  %v663 = vadd.f32 %v614, %v662
  %v664 = vpop.f32.mrf.mxu0
  %v665 = vadd.f32 %v616, %v664
  %666 = vmatmul.bf16.gmra.mxu0 %v297
  %v667 = vpop.f32.mrf.mxu0
  %v668 = vadd.f32 %v619, %v667
  %v669 = vpop.f32.mrf.mxu0
  %v670 = vadd.f32 %v621, %v669
  %671 = vmatmul.bf16.gmra.mxu0 %v302
  %v672 = vpop.f32.mrf.mxu0
  %v673 = vadd.f32 %v624, %v672
  %v674 = vpop.f32.mrf.mxu0
  %v675 = vadd.f32 %v626, %v674
  %676 = vdwg.mxu0
  %677 = vmatpush.bf16.msra.mxu0 %v505
  %678 = vmatpush.bf16.msra.mxu0 %v504
  %679 = vmatpush.bf16.msra.mxu0 %v503
  %680 = vmatpush.bf16.msra.mxu0 %v502
  %681 = vmatpush.bf16.msra.mxu0 %v501
  %682 = vmatpush.bf16.msra.mxu0 %v500
  %683 = vmatpush.bf16.msra.mxu0 %v499
  %684 = vmatpush.bf16.msra.mxu0 %v498
  %685 = vmatmul.bf16.gmra.mxu0 %v268
  %v686 = vpop.f32.mrf.mxu0
  %v687 = vadd.f32 %v638, %v686
  %v688 = vpop.f32.mrf.mxu0
  %v689 = vadd.f32 %v640, %v688
  %690 = vmatmul.bf16.gmra.mxu0 %v273
  %v691 = vpop.f32.mrf.mxu0
  %v692 = vadd.f32 %v643, %v691
  %v693 = vpop.f32.mrf.mxu0
  %v694 = vadd.f32 %v645, %v693
  %695 = vmatmul.bf16.gmra.mxu0 %v278
  %v696 = vpop.f32.mrf.mxu0
  %v697 = vadd.f32 %v648, %v696
  %v698 = vpop.f32.mrf.mxu0
  %v699 = vadd.f32 %v650, %v698
  %700 = vmatmul.bf16.gmra.mxu0 %v283
  %v701 = vpop.f32.mrf.mxu0
  %v702 = vadd.f32 %v653, %v701
  %v703 = vpop.f32.mrf.mxu0
  %v704 = vadd.f32 %v655, %v703
  %705 = vmatmul.bf16.gmra.mxu0 %v288
  %v706 = vpop.f32.mrf.mxu0
  %v707 = vadd.f32 %v658, %v706
  %v708 = vpop.f32.mrf.mxu0
  %v709 = vadd.f32 %v660, %v708
  %710 = vmatmul.bf16.gmra.mxu0 %v293
  %v711 = vpop.f32.mrf.mxu0
  %v712 = vadd.f32 %v663, %v711
  %v713 = vpop.f32.mrf.mxu0
  %v714 = vadd.f32 %v665, %v713
  %715 = vmatmul.bf16.gmra.mxu0 %v298
  %v716 = vpop.f32.mrf.mxu0
  %v717 = vadd.f32 %v668, %v716
  %v718 = vpop.f32.mrf.mxu0
  %v719 = vadd.f32 %v670, %v718
  %720 = vmatmul.bf16.gmra.mxu0 %v303
  %v721 = vpop.f32.mrf.mxu0
  %v722 = vadd.f32 %v673, %v721
  %v723 = vpop.f32.mrf.mxu0
  %v724 = vadd.f32 %v675, %v723
  %725 = vdwg.mxu0
  %726 = vmatpush.bf16.msra.mxu0 %v513
  %727 = vmatpush.bf16.msra.mxu0 %v512
  %728 = vmatpush.bf16.msra.mxu0 %v511
  %729 = vmatpush.bf16.msra.mxu0 %v510
  %730 = vmatpush.bf16.msra.mxu0 %v509
  %731 = vmatpush.bf16.msra.mxu0 %v508
  %732 = vmatpush.bf16.msra.mxu0 %v507
  %733 = vmatpush.bf16.msra.mxu0 %v506
  %734 = vmatmul.bf16.gmra.mxu0 %v269
  %v735 = vpop.f32.mrf.mxu0
  %v736 = vadd.f32 %v687, %v735
  %v737 = vpop.f32.mrf.mxu0
  %v738 = vadd.f32 %v689, %v737
  %739 = vmatmul.bf16.gmra.mxu0 %v274
  %v740 = vpop.f32.mrf.mxu0
  %v741 = vadd.f32 %v692, %v740
  %v742 = vpop.f32.mrf.mxu0
  %v743 = vadd.f32 %v694, %v742
  %744 = vmatmul.bf16.gmra.mxu0 %v279
  %v745 = vpop.f32.mrf.mxu0
  %v746 = vadd.f32 %v697, %v745
  %v747 = vpop.f32.mrf.mxu0
  %v748 = vadd.f32 %v699, %v747
  %749 = vmatmul.bf16.gmra.mxu0 %v284
  %v750 = vpop.f32.mrf.mxu0
  %v751 = vadd.f32 %v702, %v750
  %v752 = vpop.f32.mrf.mxu0
  %v753 = vadd.f32 %v704, %v752
  %754 = vmatmul.bf16.gmra.mxu0 %v289
  %v755 = vpop.f32.mrf.mxu0
  %v756 = vadd.f32 %v707, %v755
  %v757 = vpop.f32.mrf.mxu0
  %v758 = vadd.f32 %v709, %v757
  %759 = vmatmul.bf16.gmra.mxu0 %v294
  %v760 = vpop.f32.mrf.mxu0
  %v761 = vadd.f32 %v712, %v760
  %v762 = vpop.f32.mrf.mxu0
  %v763 = vadd.f32 %v714, %v762
  %764 = vmatmul.bf16.gmra.mxu0 %v299
  %v765 = vpop.f32.mrf.mxu0
  %v766 = vadd.f32 %v717, %v765
  %v767 = vpop.f32.mrf.mxu0
  %v768 = vadd.f32 %v719, %v767
  %769 = vmatmul.bf16.gmra.mxu0 %v304
  %v770 = vpop.f32.mrf.mxu0
  %v771 = vadd.f32 %v722, %v770
  %v772 = vpop.f32.mrf.mxu0
  %v773 = vadd.f32 %v724, %v772
  %774 = vdwg.mxu0
  %775 = vmatpush.bf16.msra.mxu0 0
  %776 = vmatpush.bf16.msra.mxu0 0
  %777 = vmatpush.bf16.msra.mxu0 0
  %778 = vmatpush.bf16.msra.mxu0 0
  %779 = vmatpush.bf16.msra.mxu0 %v517
  %780 = vmatpush.bf16.msra.mxu0 %v516
  %781 = vmatpush.bf16.msra.mxu0 %v515
  %782 = vmatpush.bf16.msra.mxu0 %v514
  %783 = vmatmul.bf16.gmra.mxu0 %v556
  %v784 = vpop.f32.mrf.mxu0
  %v785 = vadd.f32 %v736, %v784
  %v786 = vpop.f32.mrf.mxu0
  %v787 = vadd.f32 %v738, %v786
  %788 = vmatmul.bf16.gmra.mxu0 %v559
  %v789 = vpop.f32.mrf.mxu0
  %v790 = vadd.f32 %v741, %v789
  %v791 = vpop.f32.mrf.mxu0
  %v792 = vadd.f32 %v743, %v791
  %793 = vmatmul.bf16.gmra.mxu0 %v562
  %v794 = vpop.f32.mrf.mxu0
  %v795 = vadd.f32 %v746, %v794
  %v796 = vpop.f32.mrf.mxu0
  %v797 = vadd.f32 %v748, %v796
  %798 = vmatmul.bf16.gmra.mxu0 %v565
  %v799 = vpop.f32.mrf.mxu0
  %v800 = vadd.f32 %v751, %v799
  %v801 = vpop.f32.mrf.mxu0
  %v802 = vadd.f32 %v753, %v801
  %803 = vmatmul.bf16.gmra.mxu0 %v568
  %v804 = vpop.f32.mrf.mxu0
  %v805 = vadd.f32 %v756, %v804
  %v806 = vpop.f32.mrf.mxu0
  %v807 = vadd.f32 %v758, %v806
  %808 = vmatmul.bf16.gmra.mxu0 %v571
  %v809 = vpop.f32.mrf.mxu0
  %v810 = vadd.f32 %v761, %v809
  %v811 = vpop.f32.mrf.mxu0
  %v812 = vadd.f32 %v763, %v811
  %813 = vmatmul.bf16.gmra.mxu0 %v574
  %v814 = vpop.f32.mrf.mxu0
  %v815 = vadd.f32 %v766, %v814
  %v816 = vpop.f32.mrf.mxu0
  %v817 = vadd.f32 %v768, %v816
  %818 = vmatmul.bf16.gmra.mxu0 %v577
  %v819 = vpop.f32.mrf.mxu0
  %v820 = vadd.f32 %v771, %v819
  %v821 = vpop.f32.mrf.mxu0
  %v822 = vadd.f32 %v773, %v821
  %823 = vdwg.mxu0
  %v824 = vadd.f32 %v785, %v787
  %v825 = vadd.f32 %v824, %v790
  %v826 = vadd.f32 %v825, %v792
  %v827 = vadd.f32 %v826, %v795
  %v828 = vadd.f32 %v827, %v797
  %v829 = vadd.f32 %v828, %v800
  %v830 = vadd.f32 %v829, %v802
  %v831 = vadd.f32 %v830, %v805
  %v832 = vadd.f32 %v831, %v807
  %v833 = vadd.f32 %v832, %v810
  %v834 = vadd.f32 %v833, %v812
  %v835 = vadd.f32 %v834, %v815
  %v836 = vadd.f32 %v835, %v817
  %v837 = vadd.f32 %v836, %v820
  %v838 = vadd.f32 %v837, %v822
  %v839 = vrot.slane %v838, 4
  %v840 = vadd.f32 %v838, %v839
  %v841 = vrot.slane %v840, 2
  %v842 = vadd.f32 %v840, %v841
  %v843 = vrot.slane %v842, 1
  %v844 = vadd.f32 %v842, %v843
  %v845 = vmul.f32 %v785, %v785
  %v846 = vmul.f32 %v787, %v787
  %v847 = vmul.f32 %v790, %v790
  %v848 = vmul.f32 %v792, %v792
  %v849 = vmul.f32 %v795, %v795
  %v850 = vmul.f32 %v797, %v797
  %v851 = vmul.f32 %v800, %v800
  %v852 = vmul.f32 %v802, %v802
  %v853 = vmul.f32 %v805, %v805
  %v854 = vmul.f32 %v807, %v807
  %v855 = vmul.f32 %v810, %v810
  %v856 = vmul.f32 %v812, %v812
  %v857 = vmul.f32 %v815, %v815
  %v858 = vmul.f32 %v817, %v817
  %v859 = vmul.f32 %v820, %v820
  %v860 = vmul.f32 %v822, %v822
  %v861 = vadd.f32 %v845, %v846
  %v862 = vadd.f32 %v861, %v847
  %v863 = vadd.f32 %v862, %v848
  %v864 = vadd.f32 %v863, %v849
  %v865 = vadd.f32 %v864, %v850
  %v866 = vadd.f32 %v865, %v851
  %v867 = vadd.f32 %v866, %v852
  %v868 = vadd.f32 %v867, %v853
  %v869 = vadd.f32 %v868, %v854
  %v870 = vadd.f32 %v869, %v855
  %v871 = vadd.f32 %v870, %v856
  %v872 = vadd.f32 %v871, %v857
  %v873 = vadd.f32 %v872, %v858
  %v874 = vadd.f32 %v873, %v859
  %v875 = vadd.f32 %v874, %v860
  %v876 = vrot.slane %v875, 4
  %v877 = vadd.f32 %v875, %v876
  %v878 = vrot.slane %v877, 2
  %v879 = vadd.f32 %v877, %v878
  %v880 = vrot.slane %v879, 1
  %v881 = vadd.f32 %v879, %v880
  %883 = vrot.lane.b32.xlu0 %v844, 96
  %v884 = vpop.permute.xlu0 %883
  %v886 = vadd.f32 %v844, %v884
  %888 = vrot.lane.b32.xlu0 %v881, 96
  %v889 = vpop.permute.xlu0 %888
  %v891 = vadd.f32 %v881, %v889
  %892 = vrot.lane.b32.xlu0 %v844, 64
  %v893 = vpop.permute.xlu0 %892
  %v895 = vadd.f32 %v886, %v893
  %896 = vrot.lane.b32.xlu0 %v881, 64
  %v897 = vpop.permute.xlu0 %896
  %v899 = vadd.f32 %v891, %v897
  %900 = vrot.lane.b32.xlu0 %v844, 32
  %v901 = vpop.permute.xlu0 %900
  %v903 = vadd.f32 %v895, %v901
  %904 = vrot.lane.b32.xlu0 %v881, 32
  %v905 = vpop.permute.xlu0 %904
  %v907 = vadd.f32 %v899, %v905
  %v908 = vrcp.pop 512.0
  %v909 = vmul.f32 512.0, %v908
  %v910 = vsub.f32 1.0, %v909
  %v911 = vmul.f32 %v908, %v910
  %v912 = vadd.f32 %v908, %v911
  %vm913 = vweird.f32 %v908
  %v914 = vsel %vm913, %v908, %v912
  %v915 = vmul.f32 %v903, %v914
  %v916 = vmul.f32 %v907, %v914
  %v917 = vmul.f32 %v915, %v915
  %v918 = vsub.f32 %v916, %v917
  %v919 = vmax.f32 %v918, 0.0
  %v920 = vld [vmem:[%s2] sm:$0x1]
  %v921 = vadd.f32 %v919, 1e-05
  %v922 = vrsqrt.pop %v921
  %v923 = vmul.f32 %v922, %v921
  %v924 = vmul.f32 %v923, %v922
  %v925 = vmul.f32 0.5, %v924
  %v926 = vsub.f32 1.5, %v925
  %v927 = vmul.f32 %v922, %v926
  %vm928 = vweird.f32 %v921
  %vm929 = vweird.f32 %v922
  %vm930 = vmor %vm928, %vm929
  %v931 = vsel %vm930, %v922, %v927
  %v932 = vmul.f32 %v920, %v931
  %v933 = vld [vmem:[%s3] sm:$0x1]
  %v934 = vmul.f32 %v915, %v932
  %v935 = vsub.f32 %v933, %v934
  %v937 = vperm.slane %v932, 0
  %938 = vrot.lane.b32.xlu0 %v937, 32
  %v939 = vpop.permute.xlu0 %938
  %941 = vrot.lane.b32.xlu0 %v937, 64
  %v942 = vpop.permute.xlu0 %941
  %944 = vrot.lane.b32.xlu0 %v937, 96
  %v945 = vpop.permute.xlu0 %944
  %vm947 = vcmask 261120
  %v948 = vsel %vm947, %v932, %v939
  %v949 = vsel %vm554, %v948, %v942
  %vm950 = vcmask 785408
  %v951 = vsel %vm950, %v949, %v945
  %v953 = vperm.slane %v935, 0
  %954 = vrot.lane.b32.xlu0 %v953, 32
  %v955 = vpop.permute.xlu0 %954
  %957 = vrot.lane.b32.xlu0 %v953, 64
  %v958 = vpop.permute.xlu0 %957
  %960 = vrot.lane.b32.xlu0 %v953, 96
  %v961 = vpop.permute.xlu0 %960
  %v963 = vsel %vm947, %v935, %v955
  %v964 = vsel %vm554, %v963, %v958
  %v965 = vsel %vm950, %v964, %v961
  %v966 = vperm.slane %v951, 0
  %v967 = vmul.f32 %v785, %v966
  %v968 = vmul.f32 %v787, %v966
  %v969 = vmul.f32 %v790, %v966
  %v970 = vmul.f32 %v792, %v966
  %v971 = vmul.f32 %v795, %v966
  %v972 = vmul.f32 %v797, %v966
  %v973 = vmul.f32 %v800, %v966
  %v974 = vmul.f32 %v802, %v966
  %v975 = vmul.f32 %v805, %v966
  %v976 = vmul.f32 %v807, %v966
  %v977 = vmul.f32 %v810, %v966
  %v978 = vmul.f32 %v812, %v966
  %v979 = vmul.f32 %v815, %v966
  %v980 = vmul.f32 %v817, %v966
  %v981 = vmul.f32 %v820, %v966
  %v982 = vmul.f32 %v822, %v966
  %v983 = vperm.slane %v965, 0
  %v984 = vadd.f32 %v967, %v983
  %v985 = vadd.f32 %v968, %v983
  %v986 = vadd.f32 %v969, %v983
  %v987 = vadd.f32 %v970, %v983
  %v988 = vadd.f32 %v971, %v983
  %v989 = vadd.f32 %v972, %v983
  %v990 = vadd.f32 %v973, %v983
  %v991 = vadd.f32 %v974, %v983
  %v992 = vadd.f32 %v975, %v983
  %v993 = vadd.f32 %v976, %v983
  %v994 = vadd.f32 %v977, %v983
  %v995 = vadd.f32 %v978, %v983
  %v996 = vadd.f32 %v979, %v983
  %v997 = vadd.f32 %v980, %v983
  %v998 = vadd.f32 %v981, %v983
  %v999 = vadd.f32 %v982, %v983
  %v1000 = vmax.f32 %v984, 0.0
  %v1001 = vmax.f32 %v985, 0.0
  %v1002 = vmax.f32 %v986, 0.0
  %v1003 = vmax.f32 %v987, 0.0
  %v1004 = vmax.f32 %v988, 0.0
  %v1005 = vmax.f32 %v989, 0.0
  %v1006 = vmax.f32 %v990, 0.0
  %v1007 = vmax.f32 %v991, 0.0
  %v1008 = vmax.f32 %v992, 0.0
  %v1009 = vmax.f32 %v993, 0.0
  %v1010 = vmax.f32 %v994, 0.0
  %v1011 = vmax.f32 %v995, 0.0
  %v1012 = vmax.f32 %v996, 0.0
  %v1013 = vmax.f32 %v997, 0.0
  %v1014 = vmax.f32 %v998, 0.0
  %v1015 = vmax.f32 %v999, 0.0
  %v1016 = vpack.c.bf16 %v1000, %v1000
  %v1017 = vpack.c.bf16 %v1001, %v1001
  %v1018 = vpack.c.bf16 %v1002, %v1002
  %v1019 = vpack.c.bf16 %v1003, %v1003
  %v1020 = vpack.c.bf16 %v1004, %v1004
  %v1021 = vpack.c.bf16 %v1005, %v1005
  %v1022 = vpack.c.bf16 %v1006, %v1006
  %v1023 = vpack.c.bf16 %v1007, %v1007
  %v1024 = vpack.c.bf16 %v1008, %v1008
  %v1025 = vpack.c.bf16 %v1009, %v1009
  %v1026 = vpack.c.bf16 %v1010, %v1010
  %v1027 = vpack.c.bf16 %v1011, %v1011
  %v1028 = vpack.c.bf16 %v1012, %v1012
  %v1029 = vpack.c.bf16 %v1013, %v1013
  %v1030 = vpack.c.bf16 %v1014, %v1014
  %v1031 = vpack.c.bf16 %v1015, %v1015
  %1032 = vst [vmem:[%s4] sm:$0xf] %v1016
  %1033 = vst [vmem:[%s4 + $0x4] sm:$0xf] %v1017
  %1034 = vst [vmem:[%s4 + $0x8] sm:$0xf] %v1018
  %1035 = vst [vmem:[%s4 + $0xc] sm:$0xf] %v1019
  %1036 = vst [vmem:[%s4 + $0x10] sm:$0xf] %v1020
  %1037 = vst [vmem:[%s4 + $0x14] sm:$0xf] %v1021
  %1038 = vst [vmem:[%s4 + $0x18] sm:$0xf] %v1022
  %1039 = vst [vmem:[%s4 + $0x1c] sm:$0xf] %v1023
  %1040 = vst [vmem:[%s4 + $0x20] sm:$0xf] %v1024
  %1041 = vst [vmem:[%s4 + $0x24] sm:$0xf] %v1025
  %1042 = vst [vmem:[%s4 + $0x28] sm:$0xf] %v1026
  %1043 = vst [vmem:[%s4 + $0x2c] sm:$0xf] %v1027
  %1044 = vst [vmem:[%s4 + $0x30] sm:$0xf] %v1028
  %1045 = vst [vmem:[%s4 + $0x34] sm:$0xf] %v1029
  %1046 = vst [vmem:[%s4 + $0x38] sm:$0xf] %v1030
  %1047 = vst [vmem:[%s4 + $0x3c] sm:$0xf] %v1031
  // Predicated region
  $region18: #{_generator_forward.6} parent=0 // pred_check
    _
  $region19: #{_generator_forward.6} parent=0 // pred_check_branch
    %1049 = sbr.rel (0) target = $region21
  $region20: #{_generator_forward.6} parent=0 // pred_region
    _
  $region21: #{_generator_forward.6} parent=0 // pred_fallthru
    _
  // Predicated region
  $region22: #{_generator_forward.6} parent=0 // pred_check
    _
  $region23: #{_generator_forward.6} parent=0 // pred_check_branch
    %1051 = sbr.rel (0) target = $region25
  $region24: #{_generator_forward.6} parent=0 // pred_region
    _
  $region25: #{_generator_forward.6} parent=0 // pred_fallthru
    _

// kernel: _generator_forward.7
$region0: #{_generator_forward.7}
  #allocation0 [shape = 'u32[]', space=smem, size = 0x4, offset = 0x4, fixed_abs, tag = 'smem constant byte address 0x4 - core index']
  #allocation1 [shape = 'u32[72,128]{1,0:T(1,128)}', space=vmem, size = 0x9000, scoped, tag = 'internal scratch']
  #allocation2 [shape = 'f32[1,1]{1,0:T(1,128)S(1)}', space=vmem, size = 0x200, scoped, tag = 'scoped memory for _generator_forward.7']
  %s0 = inlined_call_operand.vmem [shape: bf16[4,288], index: 0, kind: input, shape index: {}]
  %s1 = inlined_call_operand.<no memory space> [shape: f32[1,1], index: 1, kind: input, shape index: {}]
  %s2 = inlined_call_operand.vmem [shape: bf16[288,512], index: 2, kind: input, shape index: {}]
  %s3 = inlined_call_operand.vmem [shape: f32[4,512], index: 3, kind: output, shape index: {}]
  %s4 = sld [smem:[#allocation0]]
  $region83: #{_generator_forward.7} parent=0
    _
  %s6 = ssub.s32 1, %s4
  %s7 = scalar_select 0, %s6, %s4
  %v8 = vstv %s1
  %9 = vst [vmem:[#allocation2] sm:$0x1] %v8
  $region1: #{_generator_forward.7} parent=0
    #allocation3 [shape = 'u8[294912]{0}', space=vmem, size = 0x48000, scoped, tag = 'input window, operand 2']
    loop: start=0, step=1, limit=4
    $region2: #{_generator_forward.7} parent=1 // loop_pre_header
      _
    $region3: #{_generator_forward.7} parent=1 // loop_header
      %s11 = sphi 0, %s15
      %p12 = scmp.ge.s32.totalorder %s11, 4
      %s19 = sphi 0, %s19
      %s21 = sphi 0, %s19
      %s22 = sphi 0, %s21
      %s36 = sphi 0, %s22
      %s40 = sphi 0, %s40
      %s42 = sphi 0, %s40
      %s43 = sphi 0, %s42
      %s57 = sphi 0, %s43
      %s63 = sphi 0, %s65
      %s66 = sphi 0, %s63
      %s67 = sphi 0, %s66
      %s83 = sphi 0, %s67
      %s89 = sphi 0, %s91
      %s92 = sphi 0, %s89
      %s93 = sphi 0, %s92
      %s109 = sphi 0, %s93
    $region4: #{_generator_forward.7} parent=1 // loop_header_branch
      %14 = sbr.rel (%p12) target = $region8
    $region5: #{_generator_forward.7} parent=1 // loop_body
      %s16 = ssub.s32 %s11, 1
      %s17 = ssub.s32 %s11, 2
      %s18 = sadd.s32 %s11, 1
      %s20 = sadd.s32 %s19, 1
      %p23 = scmp.eq.s32.totalorder %s11, 1
      %p24 = scmp.ne.s32.totalorder %s19, %s21
      %p25 = scmp.eq.s32.totalorder %s11, 0
      %p26 = por %p24, %p25
      %p27 = scmp.ne.s32.totalorder %s19, %s21
      %p28 = scmp.eq.s32.totalorder %s16, 1
      %p29 = por %p27, %p28
      %p30 = scmp.ne.s32.totalorder %s21, %s22
      %p31 = scmp.eq.s32.totalorder %s16, 0
      %p32 = por %p30, %p31
      %p33 = scmp.ne.s32.totalorder %s21, %s22
      %p34 = scmp.eq.s32.totalorder %s17, 1
      %p35 = por %p33, %p34
      %p37 = scmp.ne.s32.totalorder %s22, %s36
      %p38 = scmp.eq.s32.totalorder %s17, 0
      %p39 = por %p37, %p38
      %s41 = sadd.s32 %s40, 1
      %p44 = scmp.eq.s32.totalorder %s11, 1
      %p45 = scmp.ne.s32.totalorder %s40, %s42
      %p46 = scmp.eq.s32.totalorder %s11, 0
      %p47 = por %p45, %p46
      %p48 = scmp.ne.s32.totalorder %s40, %s42
      %p49 = scmp.eq.s32.totalorder %s16, 1
      %p50 = por %p48, %p49
      %p51 = scmp.ne.s32.totalorder %s42, %s43
      %p52 = scmp.eq.s32.totalorder %s16, 0
      %p53 = por %p51, %p52
      %p54 = scmp.ne.s32.totalorder %s42, %s43
      %p55 = scmp.eq.s32.totalorder %s17, 1
      %p56 = por %p54, %p55
      %p58 = scmp.ne.s32.totalorder %s43, %s57
      %p59 = scmp.eq.s32.totalorder %s17, 0
      %p60 = por %p58, %p59
      %s61 = ssub.s32 %s11, %s18
      %p62 = scmp.eq.s32.totalorder %s61, 0
      %s64 = sadd.s32 %s63, 1
      %s65 = scalar_select %p62, %s63, %s64
      %p68 = pneg %p62
      %p69 = scmp.eq.s32.totalorder %s11, 1
      %p70 = por %p68, %p69
      %p71 = scmp.ne.s32.totalorder %s63, %s66
      %p72 = scmp.eq.s32.totalorder %s11, 0
      %p73 = por %p71, %p72
      %p74 = scmp.ne.s32.totalorder %s63, %s66
      %p75 = scmp.eq.s32.totalorder %s16, 1
      %p76 = por %p74, %p75
      %p77 = scmp.ne.s32.totalorder %s66, %s67
      %p78 = scmp.eq.s32.totalorder %s16, 0
      %p79 = por %p77, %p78
      %p80 = scmp.ne.s32.totalorder %s66, %s67
      %p81 = scmp.eq.s32.totalorder %s17, 1
      %p82 = por %p80, %p81
      %p84 = scmp.ne.s32.totalorder %s67, %s83
      %p85 = scmp.eq.s32.totalorder %s17, 0
      %p86 = por %p84, %p85
      %s87 = ssub.s32 %s11, %s18
      %p88 = scmp.eq.s32.totalorder %s87, 0
      %s90 = sadd.s32 %s89, 1
      %s91 = scalar_select %p88, %s89, %s90
      %p94 = pneg %p88
      %p95 = scmp.eq.s32.totalorder %s11, 1
      %p96 = por %p94, %p95
      %p97 = scmp.ne.s32.totalorder %s89, %s92
      %p98 = scmp.eq.s32.totalorder %s11, 0
      %p99 = por %p97, %p98
      %p100 = scmp.ne.s32.totalorder %s89, %s92
      %p101 = scmp.eq.s32.totalorder %s16, 1
      %p102 = por %p100, %p101
      %p103 = scmp.ne.s32.totalorder %s92, %s93
      %p104 = scmp.eq.s32.totalorder %s16, 0
      %p105 = por %p103, %p104
      %p106 = scmp.ne.s32.totalorder %s92, %s93
      %p107 = scmp.eq.s32.totalorder %s17, 1
      %p108 = por %p106, %p107
      %p110 = scmp.ne.s32.totalorder %s93, %s109
      %p111 = scmp.eq.s32.totalorder %s17, 0
      %p112 = por %p110, %p111
      %p113 = scmp.le.s32.totalorder 1, %s11
      %p114 = scmp.lt.s32.totalorder %s11, 3
      %p115 = pnand %p113, %p114
      %p116 = pneg %p115
      // Predicated region
      $region9: #{_generator_forward.7} parent=5 // pred_check
        _
      $region10: #{_generator_forward.7} parent=5 // pred_check_branch
        %118 = sbr.rel (%p115) target = $region12
      $region11: #{_generator_forward.7} parent=5 // pred_region
        %s119 = ssub.s32 %s11, 1
        // Predicated region
        $region13: #{_generator_forward.7} parent=11 // pred_check
          %p120 = pneg %p32
        $region14: #{_generator_forward.7} parent=11 // pred_check_branch
          %122 = sbr.rel (%p120) target = $region16
        $region15: #{_generator_forward.7} parent=11 // pred_region
          _
        $region16: #{_generator_forward.7} parent=11 // pred_fallthru
          _
        // Predicated region
        $region17: #{_generator_forward.7} parent=11 // pred_check
          %p123 = pneg %p53
        $region18: #{_generator_forward.7} parent=11 // pred_check_branch
          %125 = sbr.rel (%p123) target = $region20
        $region19: #{_generator_forward.7} parent=11 // pred_region
          _
        $region20: #{_generator_forward.7} parent=11 // pred_fallthru
          _
      $region12: #{_generator_forward.7} parent=5 // pred_fallthru
        _
      %p126 = scmp.lt.s32.totalorder %s11, 2
      // Predicated region
      $region21: #{_generator_forward.7} parent=5 // pred_check
        %p127 = pneg %p126
      $region22: #{_generator_forward.7} parent=5 // pred_check_branch
        %129 = sbr.rel (%p127) target = $region24
      $region23: #{_generator_forward.7} parent=5 // pred_region
        // Predicated region
        $region25: #{_generator_forward.7} parent=23 // pred_check
          %p130 = pneg %p73
        $region26: #{_generator_forward.7} parent=23 // pred_check_branch
          %132 = sbr.rel (%p130) target = $region28
        $region27: #{_generator_forward.7} parent=23 // pred_region
          %s133 = sand.u32 %s63, 1
          %s134 = sand.u32 %s63, 1
          %s135 = smul.addr %s134, 288
          %s136 = scalar_lea.vmem [#allocation3], %s135
          %s137 = smul.u32 2, %s11
          %s138 = smul.addr %s137, 4
          %s139 = scalar_lea.vmem %s2, %s138
          // Predicated region
          $region29: #{_generator_forward.7} parent=27 // pred_check
            _
          $region30: #{_generator_forward.7} parent=27 // pred_check_branch
            %141 = sbr.rel (0) target = $region32
          $region31: #{_generator_forward.7} parent=27 // pred_region
            // Predicated region
            $region33: #{_generator_forward.7} parent=31 // pred_check
              _
            $region34: #{_generator_forward.7} parent=31 // pred_check_branch
              %143 = sbr.rel (0) target = $region36
            $region35: #{_generator_forward.7} parent=31 // pred_region
              // Predicated region
              $region48: #{_generator_forward.7} parent=35 // pred_check
                _
              $region49: #{_generator_forward.7} parent=35 // pred_check_branch
                %229 = sbr.rel (0) target = $region51
              $region50: #{_generator_forward.7} parent=35 // pred_region
                loop: start=0, step=1, limit=1
                $region52: #{_generator_forward.7} parent=50 // loop_pre_header
                  _
                $region53: #{_generator_forward.7} parent=50 // loop_header
                  %s231 = sphi 0, %s235
                  %p232 = scmp.ge.s32.totalorder %s231, 1
                  %s236 = sphi %s139, %s139
                  %s237 = sphi %s136, %s136
                $region54: #{_generator_forward.7} parent=50 // loop_header_branch
                  %234 = sbr.rel (%p232) target = $region58
                $region55: #{_generator_forward.7} parent=50 // loop_body
                  %v238 = vld [vmem:[%s236] sm:$0xff]
                  %239 = vst [vmem:[%s237] sm:$0xff] %v238
                  %v240 = vld [vmem:[%s236 + $0x10] sm:$0xff]
                  %241 = vst [vmem:[%s237 + $0x8] sm:$0xff] %v240
                  %v242 = vld [vmem:[%s236 + $0x20] sm:$0xff]
                  %243 = vst [vmem:[%s237 + $0x10] sm:$0xff] %v242
                  %v244 = vld [vmem:[%s236 + $0x30] sm:$0xff]
                  %245 = vst [vmem:[%s237 + $0x18] sm:$0xff] %v244
                  %v246 = vld [vmem:[%s236 + $0x40] sm:$0xff]
                  %247 = vst [vmem:[%s237 + $0x20] sm:$0xff] %v246
                  %v248 = vld [vmem:[%s236 + $0x50] sm:$0xff]
                  %249 = vst [vmem:[%s237 + $0x28] sm:$0xff] %v248
                  %v250 = vld [vmem:[%s236 + $0x60] sm:$0xff]
                  %251 = vst [vmem:[%s237 + $0x30] sm:$0xff] %v250
                  %v252 = vld [vmem:[%s236 + $0x70] sm:$0xff]
                  %253 = vst [vmem:[%s237 + $0x38] sm:$0xff] %v252
                  %v254 = vld [vmem:[%s236 + $0x80] sm:$0xff]
                  %255 = vst [vmem:[%s237 + $0x40] sm:$0xff] %v254
                  %v256 = vld [vmem:[%s236 + $0x90] sm:$0xff]
                  %257 = vst [vmem:[%s237 + $0x48] sm:$0xff] %v256
                  %v258 = vld [vmem:[%s236 + $0xa0] sm:$0xff]
                  %259 = vst [vmem:[%s237 + $0x50] sm:$0xff] %v258
                  %v260 = vld [vmem:[%s236 + $0xb0] sm:$0xff]
                  %261 = vst [vmem:[%s237 + $0x58] sm:$0xff] %v260
                  %v262 = vld [vmem:[%s236 + $0xc0] sm:$0xff]
                  %263 = vst [vmem:[%s237 + $0x60] sm:$0xff] %v262
                  %v264 = vld [vmem:[%s236 + $0xd0] sm:$0xff]
                  %265 = vst [vmem:[%s237 + $0x68] sm:$0xff] %v264
                  %v266 = vld [vmem:[%s236 + $0xe0] sm:$0xff]
                  %267 = vst [vmem:[%s237 + $0x70] sm:$0xff] %v266
                  %v268 = vld [vmem:[%s236 + $0xf0] sm:$0xff]
                  %269 = vst [vmem:[%s237 + $0x78] sm:$0xff] %v268
                  %v270 = vld [vmem:[%s236 + $0x100] sm:$0xff]
                  %271 = vst [vmem:[%s237 + $0x80] sm:$0xff] %v270
                  %v272 = vld [vmem:[%s236 + $0x110] sm:$0xff]
                  %273 = vst [vmem:[%s237 + $0x88] sm:$0xff] %v272
                  %v274 = vld [vmem:[%s236 + $0x120] sm:$0xff]
                  %275 = vst [vmem:[%s237 + $0x90] sm:$0xff] %v274
                  %v276 = vld [vmem:[%s236 + $0x130] sm:$0xff]
                  %277 = vst [vmem:[%s237 + $0x98] sm:$0xff] %v276
                  %v278 = vld [vmem:[%s236 + $0x140] sm:$0xff]
                  %279 = vst [vmem:[%s237 + $0xa0] sm:$0xff] %v278
                  %v280 = vld [vmem:[%s236 + $0x150] sm:$0xff]
                  %281 = vst [vmem:[%s237 + $0xa8] sm:$0xff] %v280
                  %v282 = vld [vmem:[%s236 + $0x160] sm:$0xff]
                  %283 = vst [vmem:[%s237 + $0xb0] sm:$0xff] %v282
                  %v284 = vld [vmem:[%s236 + $0x170] sm:$0xff]
                  %285 = vst [vmem:[%s237 + $0xb8] sm:$0xff] %v284
                  %v286 = vld [vmem:[%s236 + $0x180] sm:$0xff]
                  %287 = vst [vmem:[%s237 + $0xc0] sm:$0xff] %v286
                  %v288 = vld [vmem:[%s236 + $0x190] sm:$0xff]
                  %289 = vst [vmem:[%s237 + $0xc8] sm:$0xff] %v288
                  %v290 = vld [vmem:[%s236 + $0x1a0] sm:$0xff]
                  %291 = vst [vmem:[%s237 + $0xd0] sm:$0xff] %v290
                  %v292 = vld [vmem:[%s236 + $0x1b0] sm:$0xff]
                  %293 = vst [vmem:[%s237 + $0xd8] sm:$0xff] %v292
                  %v294 = vld [vmem:[%s236 + $0x1c0] sm:$0xff]
                  %295 = vst [vmem:[%s237 + $0xe0] sm:$0xff] %v294
                  %v296 = vld [vmem:[%s236 + $0x1d0] sm:$0xff]
                  %297 = vst [vmem:[%s237 + $0xe8] sm:$0xff] %v296
                  %v298 = vld [vmem:[%s236 + $0x1e0] sm:$0xff]
                  %299 = vst [vmem:[%s237 + $0xf0] sm:$0xff] %v298
                  %v300 = vld [vmem:[%s236 + $0x1f0] sm:$0xff]
                  %301 = vst [vmem:[%s237 + $0xf8] sm:$0xff] %v300
                  %v302 = vld [vmem:[%s236 + $0x200] sm:$0xff]
                  %303 = vst [vmem:[%s237 + $0x100] sm:$0xff] %v302
                  %v304 = vld [vmem:[%s236 + $0x210] sm:$0xff]
                  %305 = vst [vmem:[%s237 + $0x108] sm:$0xff] %v304
                  %v306 = vld [vmem:[%s236 + $0x220] sm:$0xff]
                  %307 = vst [vmem:[%s237 + $0x110] sm:$0xff] %v306
                  %v308 = vld [vmem:[%s236 + $0x230] sm:$0xff]
                  %309 = vst [vmem:[%s237 + $0x118] sm:$0xff] %v308
                $region56: #{_generator_forward.7} parent=50 // loop_footer
                  %s235 = sadd.s32 1, %s231
                $region57: #{_generator_forward.7} parent=50 // loop_footer_branch
                  %230 = sbr.rel target = $region53
                $region58: #{_generator_forward.7} parent=50 // loop_exit
                  _
              $region51: #{_generator_forward.7} parent=35 // pred_fallthru
                _
              // Predicated region
              $region59: #{_generator_forward.7} parent=35 // pred_check
                _
              $region60: #{_generator_forward.7} parent=35 // pred_check_branch
                %311 = sbr.rel target = $region62
              $region61: #{_generator_forward.7} parent=35 // pred_region
                _
              $region62: #{_generator_forward.7} parent=35 // pred_fallthru
                _
            $region36: #{_generator_forward.7} parent=31 // pred_fallthru
              _
            // Predicated region
            $region37: #{_generator_forward.7} parent=31 // pred_check
              _
            $region38: #{_generator_forward.7} parent=31 // pred_check_branch
              %145 = sbr.rel target = $region40
            $region39: #{_generator_forward.7} parent=31 // pred_region
              %s147 = ssub.s32 256, 1
              loop: start=0, step=1, limit=1
              $region41: #{_generator_forward.7} parent=39 // loop_pre_header
                _
              $region42: #{_generator_forward.7} parent=39 // loop_header
                %s149 = sphi 0, %s153
                %p150 = scmp.ge.s32.totalorder %s149, 1
                %s154 = sphi %s139, %s139
                %s155 = sphi %s136, %s136
              $region43: #{_generator_forward.7} parent=39 // loop_header_branch
                %152 = sbr.rel (%p150) target = $region47
              $region44: #{_generator_forward.7} parent=39 // loop_body
                %v156 = vld [vmem:[%s154] sm:%s147]
                %157 = vst [vmem:[%s155] sm:%s147] %v156
                %v158 = vld [vmem:[%s154 + $0x10] sm:%s147]
                %159 = vst [vmem:[%s155 + $0x8] sm:%s147] %v158
                %v160 = vld [vmem:[%s154 + $0x20] sm:%s147]
                %161 = vst [vmem:[%s155 + $0x10] sm:%s147] %v160
                %v162 = vld [vmem:[%s154 + $0x30] sm:%s147]
                %163 = vst [vmem:[%s155 + $0x18] sm:%s147] %v162
                %v164 = vld [vmem:[%s154 + $0x40] sm:%s147]
                %165 = vst [vmem:[%s155 + $0x20] sm:%s147] %v164
                %v166 = vld [vmem:[%s154 + $0x50] sm:%s147]
                %167 = vst [vmem:[%s155 + $0x28] sm:%s147] %v166
                %v168 = vld [vmem:[%s154 + $0x60] sm:%s147]
                %169 = vst [vmem:[%s155 + $0x30] sm:%s147] %v168
                %v170 = vld [vmem:[%s154 + $0x70] sm:%s147]
                %171 = vst [vmem:[%s155 + $0x38] sm:%s147] %v170
                %v172 = vld [vmem:[%s154 + $0x80] sm:%s147]
                %173 = vst [vmem:[%s155 + $0x40] sm:%s147] %v172
                %v174 = vld [vmem:[%s154 + $0x90] sm:%s147]
                %175 = vst [vmem:[%s155 + $0x48] sm:%s147] %v174
                %v176 = vld [vmem:[%s154 + $0xa0] sm:%s147]
                %177 = vst [vmem:[%s155 + $0x50] sm:%s147] %v176
                %v178 = vld [vmem:[%s154 + $0xb0] sm:%s147]
                %179 = vst [vmem:[%s155 + $0x58] sm:%s147] %v178
                %v180 = vld [vmem:[%s154 + $0xc0] sm:%s147]
                %181 = vst [vmem:[%s155 + $0x60] sm:%s147] %v180
                %v182 = vld [vmem:[%s154 + $0xd0] sm:%s147]
                %183 = vst [vmem:[%s155 + $0x68] sm:%s147] %v182
                %v184 = vld [vmem:[%s154 + $0xe0] sm:%s147]
                %185 = vst [vmem:[%s155 + $0x70] sm:%s147] %v184
                %v186 = vld [vmem:[%s154 + $0xf0] sm:%s147]
                %187 = vst [vmem:[%s155 + $0x78] sm:%s147] %v186
                %v188 = vld [vmem:[%s154 + $0x100] sm:%s147]
                %189 = vst [vmem:[%s155 + $0x80] sm:%s147] %v188
                %v190 = vld [vmem:[%s154 + $0x110] sm:%s147]
                %191 = vst [vmem:[%s155 + $0x88] sm:%s147] %v190
                %v192 = vld [vmem:[%s154 + $0x120] sm:%s147]
                %193 = vst [vmem:[%s155 + $0x90] sm:%s147] %v192
                %v194 = vld [vmem:[%s154 + $0x130] sm:%s147]
                %195 = vst [vmem:[%s155 + $0x98] sm:%s147] %v194
                %v196 = vld [vmem:[%s154 + $0x140] sm:%s147]
                %197 = vst [vmem:[%s155 + $0xa0] sm:%s147] %v196
                %v198 = vld [vmem:[%s154 + $0x150] sm:%s147]
                %199 = vst [vmem:[%s155 + $0xa8] sm:%s147] %v198
                %v200 = vld [vmem:[%s154 + $0x160] sm:%s147]
                %201 = vst [vmem:[%s155 + $0xb0] sm:%s147] %v200
                %v202 = vld [vmem:[%s154 + $0x170] sm:%s147]
                %203 = vst [vmem:[%s155 + $0xb8] sm:%s147] %v202
                %v204 = vld [vmem:[%s154 + $0x180] sm:%s147]
                %205 = vst [vmem:[%s155 + $0xc0] sm:%s147] %v204
                %v206 = vld [vmem:[%s154 + $0x190] sm:%s147]
                %207 = vst [vmem:[%s155 + $0xc8] sm:%s147] %v206
                %v208 = vld [vmem:[%s154 + $0x1a0] sm:%s147]
                %209 = vst [vmem:[%s155 + $0xd0] sm:%s147] %v208
                %v210 = vld [vmem:[%s154 + $0x1b0] sm:%s147]
                %211 = vst [vmem:[%s155 + $0xd8] sm:%s147] %v210
                %v212 = vld [vmem:[%s154 + $0x1c0] sm:%s147]
                %213 = vst [vmem:[%s155 + $0xe0] sm:%s147] %v212
                %v214 = vld [vmem:[%s154 + $0x1d0] sm:%s147]
                %215 = vst [vmem:[%s155 + $0xe8] sm:%s147] %v214
                %v216 = vld [vmem:[%s154 + $0x1e0] sm:%s147]
                %217 = vst [vmem:[%s155 + $0xf0] sm:%s147] %v216
                %v218 = vld [vmem:[%s154 + $0x1f0] sm:%s147]
                %219 = vst [vmem:[%s155 + $0xf8] sm:%s147] %v218
                %v220 = vld [vmem:[%s154 + $0x200] sm:%s147]
                %221 = vst [vmem:[%s155 + $0x100] sm:%s147] %v220
                %v222 = vld [vmem:[%s154 + $0x210] sm:%s147]
                %223 = vst [vmem:[%s155 + $0x108] sm:%s147] %v222
                %v224 = vld [vmem:[%s154 + $0x220] sm:%s147]
                %225 = vst [vmem:[%s155 + $0x110] sm:%s147] %v224
                %v226 = vld [vmem:[%s154 + $0x230] sm:%s147]
                %227 = vst [vmem:[%s155 + $0x118] sm:%s147] %v226
              $region45: #{_generator_forward.7} parent=39 // loop_footer
                %s153 = sadd.s32 1, %s149
              $region46: #{_generator_forward.7} parent=39 // loop_footer_branch
                %148 = sbr.rel target = $region42
              $region47: #{_generator_forward.7} parent=39 // loop_exit
                _
            $region40: #{_generator_forward.7} parent=31 // pred_fallthru
              _
          $region32: #{_generator_forward.7} parent=27 // pred_fallthru
            _
          %312 = vnop
        $region28: #{_generator_forward.7} parent=23 // pred_fallthru
          _
      $region24: #{_generator_forward.7} parent=5 // pred_fallthru
        _
      %p313 = scmp.le.s32.totalorder 1, %s11
      %p314 = scmp.lt.s32.totalorder %s11, 3
      %p315 = pnand %p313, %p314
      %p316 = pneg %p315
      // Predicated region
      $region63: #{_generator_forward.7} parent=5 // pred_check
        _
      $region64: #{_generator_forward.7} parent=5 // pred_check_branch
        %318 = sbr.rel (%p315) target = $region66
      $region65: #{_generator_forward.7} parent=5 // pred_region
        %s319 = ssub.s32 %s11, 1
        %s320 = sand.u32 %s66, 1
        %s321 = sand.u32 %s66, 1
        %s322 = smul.addr %s321, 288
        %s323 = scalar_lea.vmem [#allocation3], %s322
        // Predicated region
        $region67: #{_generator_forward.7} parent=65 // pred_check
          %p324 = pneg %p79
        $region68: #{_generator_forward.7} parent=65 // pred_check_branch
          %326 = sbr.rel (%p324) target = $region70
        $region69: #{_generator_forward.7} parent=65 // pred_region
          _
        $region70: #{_generator_forward.7} parent=65 // pred_fallthru
          _
        %p327 = pneg %p32
        %p328 = pneg %p29
        %p329 = pneg %p53
        %p330 = pneg %p50
        %s331 = sand.u32 %s66, 1
        %s332 = sand.u32 %s66, 1
        %s333 = smul.addr %s332, 288
        %s334 = scalar_lea.vmem [#allocation3], %s333
        %p335 = pneg %p79
        %p336 = pneg %p76
        %p337 = pneg %p105
        %p338 = pneg %p102
        %s339 = smul.u32 2, %s16
        %p340 = scmp.lt.s32.totalorder %s339, 3
        %s341 = scalar_select %p340, %s339, 3
        %s342 = smul.addr %s341, 4
        %s343 = scalar_lea.vmem %s3, %s342
        %s344 = smul.u32 2, %s16
        %s345 = smul.u32 2, %s16
        %p346 = scmp.lt.s32.totalorder %s345, 3
        %s347 = scalar_select %p346, %s345, 3
        %s348 = smul.addr %s347, 4
        %s349 = scalar_lea.vmem %s3, %s348
        %s350 = smul.u32 2, %s16
        %v352 = vld [vmem:[%s0] sm:$0x3f]
        %v353 = vld [vmem:[%s323] sm:$0xff]
        %v354 = vld [vmem:[%s323 + $0x8] sm:$0xff]
        %v355 = vld [vmem:[%s323 + $0x10] sm:$0xff]
        %v356 = vld [vmem:[%s323 + $0x18] sm:$0xff]
        %v357 = vld [vmem:[%s323 + $0x20] sm:$0xff]
        %v358 = vld [vmem:[%s323 + $0x28] sm:$0xff]
        %v359 = vld [vmem:[%s323 + $0x30] sm:$0xff]
        %v360 = vld [vmem:[%s323 + $0x38] sm:$0xff]
        %v361 = vld [vmem:[%s323 + $0x40] sm:$0xff]
        %v362 = vld [vmem:[%s323 + $0x48] sm:$0xff]
        %v363 = vld [vmem:[%s323 + $0x50] sm:$0xff]
        %v364 = vld [vmem:[%s323 + $0x58] sm:$0xff]
        %v365 = vld [vmem:[%s323 + $0x60] sm:$0xff]
        %v366 = vld [vmem:[%s323 + $0x68] sm:$0xff]
        %v367 = vld [vmem:[%s323 + $0x70] sm:$0xff]
        %v368 = vld [vmem:[%s323 + $0x78] sm:$0xff]
        %v369 = vld [vmem:[%s323 + $0x80] sm:$0xff]
        %v370 = vld [vmem:[%s323 + $0x88] sm:$0xff]
        %v371 = vld [vmem:[%s323 + $0x90] sm:$0xff]
        %v372 = vld [vmem:[%s323 + $0x98] sm:$0xff]
        %v373 = vld [vmem:[%s323 + $0xa0] sm:$0xff]
        %v374 = vld [vmem:[%s323 + $0xa8] sm:$0xff]
        %v375 = vld [vmem:[%s323 + $0xb0] sm:$0xff]
        %v376 = vld [vmem:[%s323 + $0xb8] sm:$0xff]
        %v377 = vld [vmem:[%s323 + $0xc0] sm:$0xff]
        %v378 = vld [vmem:[%s323 + $0xc8] sm:$0xff]
        %v379 = vld [vmem:[%s323 + $0xd0] sm:$0xff]
        %v380 = vld [vmem:[%s323 + $0xd8] sm:$0xff]
        %v381 = vld [vmem:[%s323 + $0xe0] sm:$0xff]
        %v382 = vld [vmem:[%s323 + $0xe8] sm:$0xff]
        %v383 = vld [vmem:[%s323 + $0xf0] sm:$0xff]
        %v384 = vld [vmem:[%s323 + $0xf8] sm:$0xff]
        %v385 = vld [vmem:[%s323 + $0x100] sm:$0xff]
        %v386 = vld [vmem:[%s323 + $0x108] sm:$0xff]
        %v387 = vld [vmem:[%s323 + $0x110] sm:$0xff]
        %v388 = vld [vmem:[%s323 + $0x118] sm:$0xff]
        %v389 = vld [vmem:[#allocation2] sm:$0x1]
        %v391 = vperm.slane %v389, 0
        %392 = vset.pattern.permute.xlu0 0
        %393 = vperm.xlu0 %392, %v391
        %v394 = vpop.permute.xlu0 %393
        %397 = vst [vmem:[#allocation1] ss:$4 sm:$0xff] %v352
        %v398 = vld.sshfl [vmem:[#allocation1] sm:$0xff pattern:$0x73625140]
        %v399 = vld.sshfl [vmem:[#allocation1 + $0x8] sm:$0xff pattern:$0x73625140]
        %v400 = vld.sshfl [vmem:[#allocation1 + $0x10] sm:$0xff pattern:$0x73625140]
        %v439 = vunpack.c.l.b16 %v353
        %v440 = vunpack.c.h.b16 %v353
        %v441 = vunpack.c.l.b16 %v354
        %v442 = vunpack.c.h.b16 %v354
        %v443 = vunpack.c.l.b16 %v355
        %v444 = vunpack.c.h.b16 %v355
        %v445 = vunpack.c.l.b16 %v356
        %v446 = vunpack.c.h.b16 %v356
        %v447 = vunpack.c.l.b16 %v357
        %v448 = vunpack.c.h.b16 %v357
        %v449 = vunpack.c.l.b16 %v358
        %v450 = vunpack.c.h.b16 %v358
        %v451 = vunpack.c.l.b16 %v359
        %v452 = vunpack.c.h.b16 %v359
        %v453 = vunpack.c.l.b16 %v360
        %v454 = vunpack.c.h.b16 %v360
        %v455 = vunpack.c.l.b16 %v361
        %v456 = vunpack.c.h.b16 %v361
        %v457 = vunpack.c.l.b16 %v362
        %v458 = vunpack.c.h.b16 %v362
        %v459 = vunpack.c.l.b16 %v363
        %v460 = vunpack.c.h.b16 %v363
        %v461 = vunpack.c.l.b16 %v364
        %v462 = vunpack.c.h.b16 %v364
        %v463 = vunpack.c.l.b16 %v365
        %v464 = vunpack.c.h.b16 %v365
        %v465 = vunpack.c.l.b16 %v366
        %v466 = vunpack.c.h.b16 %v366
        %v467 = vunpack.c.l.b16 %v367
        %v468 = vunpack.c.h.b16 %v367
        %v469 = vunpack.c.l.b16 %v368
        %v470 = vunpack.c.h.b16 %v368
        %v471 = vunpack.c.l.b16 %v369
        %v472 = vunpack.c.h.b16 %v369
        %v473 = vunpack.c.l.b16 %v370
        %v474 = vunpack.c.h.b16 %v370
        %v475 = vunpack.c.l.b16 %v371
        %v476 = vunpack.c.h.b16 %v371
        %v477 = vunpack.c.l.b16 %v372
        %v478 = vunpack.c.h.b16 %v372
        %v479 = vunpack.c.l.b16 %v373
        %v480 = vunpack.c.h.b16 %v373
        %v481 = vunpack.c.l.b16 %v374
        %v482 = vunpack.c.h.b16 %v374
        %v483 = vunpack.c.l.b16 %v375
        %v484 = vunpack.c.h.b16 %v375
        %v485 = vunpack.c.l.b16 %v376
        %v486 = vunpack.c.h.b16 %v376
        %v487 = vunpack.c.l.b16 %v377
        %v488 = vunpack.c.h.b16 %v377
        %v489 = vunpack.c.l.b16 %v378
        %v490 = vunpack.c.h.b16 %v378
        %v491 = vunpack.c.l.b16 %v379
        %v492 = vunpack.c.h.b16 %v379
        %v493 = vunpack.c.l.b16 %v380
        %v494 = vunpack.c.h.b16 %v380
        %v495 = vunpack.c.l.b16 %v381
        %v496 = vunpack.c.h.b16 %v381
        %v497 = vunpack.c.l.b16 %v382
        %v498 = vunpack.c.h.b16 %v382
        %v499 = vunpack.c.l.b16 %v383
        %v500 = vunpack.c.h.b16 %v383
        %v501 = vunpack.c.l.b16 %v384
        %v502 = vunpack.c.h.b16 %v384
        %v503 = vunpack.c.l.b16 %v385
        %v504 = vunpack.c.h.b16 %v385
        %v505 = vunpack.c.l.b16 %v386
        %v506 = vunpack.c.h.b16 %v386
        %v507 = vunpack.c.l.b16 %v387
        %v508 = vunpack.c.h.b16 %v387
        %v509 = vunpack.c.l.b16 %v388
        %v510 = vunpack.c.h.b16 %v388
        %v511 = vpack.c.b16 %v441, %v439
        %v512 = vpack.c.b16 %v442, %v440
        %v513 = vpack.c.b16 %v445, %v443
        %v514 = vpack.c.b16 %v446, %v444
        %v515 = vpack.c.b16 %v449, %v447
        %v516 = vpack.c.b16 %v450, %v448
        %v517 = vpack.c.b16 %v453, %v451
        %v518 = vpack.c.b16 %v454, %v452
        %v519 = vpack.c.b16 %v457, %v455
        %v520 = vpack.c.b16 %v458, %v456
        %v521 = vpack.c.b16 %v461, %v459
        %v522 = vpack.c.b16 %v462, %v460
        %v523 = vpack.c.b16 %v465, %v463
        %v524 = vpack.c.b16 %v466, %v464
        %v525 = vpack.c.b16 %v469, %v467
        %v526 = vpack.c.b16 %v470, %v468
        %v527 = vpack.c.b16 %v473, %v471
        %v528 = vpack.c.b16 %v474, %v472
        %v529 = vpack.c.b16 %v477, %v475
        %v530 = vpack.c.b16 %v478, %v476
        %v531 = vpack.c.b16 %v481, %v479
        %v532 = vpack.c.b16 %v482, %v480
        %v533 = vpack.c.b16 %v485, %v483
        %v534 = vpack.c.b16 %v486, %v484
        %v535 = vpack.c.b16 %v489, %v487
        %v536 = vpack.c.b16 %v490, %v488
        %v537 = vpack.c.b16 %v493, %v491
        %v538 = vpack.c.b16 %v494, %v492
        %v539 = vpack.c.b16 %v497, %v495
        %v540 = vpack.c.b16 %v498, %v496
        %v541 = vpack.c.b16 %v501, %v499
        %v542 = vpack.c.b16 %v502, %v500
        %v543 = vpack.c.b16 %v505, %v503
        %v544 = vpack.c.b16 %v506, %v504
        %v545 = vpack.c.b16 %v509, %v507
        %v546 = vpack.c.b16 %v510, %v508
        %vm583 = vcmask 261120
        %v584 = vsel %vm583, %v400, 0
        %586 = vmatpush.bf16.msra.mxu0 %v525
        %587 = vmatpush.bf16.msra.mxu0 %v523
        %588 = vmatpush.bf16.msra.mxu0 %v521
        %589 = vmatpush.bf16.msra.mxu0 %v519
        %590 = vmatpush.bf16.msra.mxu0 %v517
        %591 = vmatpush.bf16.msra.mxu0 %v515
        %592 = vmatpush.bf16.msra.mxu0 %v513
        %593 = vmatpush.bf16.msra.mxu0 %v511
        %594 = vmatmul.bf16.gmra.mxu0 %v398
        %v595 = vpop.f32.mrf.mxu0
        %v596 = vadd.f32 %v394, %v595
        %v597 = vpop.f32.mrf.mxu0
        %598 = vdwg.mxu0
        %599 = vmatpush.bf16.msra.mxu0 %v541
        %600 = vmatpush.bf16.msra.mxu0 %v539
        %601 = vmatpush.bf16.msra.mxu0 %v537
        %602 = vmatpush.bf16.msra.mxu0 %v535
        %603 = vmatpush.bf16.msra.mxu0 %v533
        %604 = vmatpush.bf16.msra.mxu0 %v531
        %605 = vmatpush.bf16.msra.mxu0 %v529
        %606 = vmatpush.bf16.msra.mxu0 %v527
        %607 = vmatmul.bf16.gmra.mxu0 %v399
        %v608 = vpop.f32.mrf.mxu0
        %v609 = vadd.f32 %v596, %v608
        %v610 = vpop.f32.mrf.mxu0
        %611 = vdwg.mxu0
        %612 = vmatpush.bf16.msra.mxu0 0
        %613 = vmatpush.bf16.msra.mxu0 0
        %614 = vmatpush.bf16.msra.mxu0 0
        %615 = vmatpush.bf16.msra.mxu0 0
        %616 = vmatpush.bf16.msra.mxu0 0
        %617 = vmatpush.bf16.msra.mxu0 0
        %618 = vmatpush.bf16.msra.mxu0 %v545
        %619 = vmatpush.bf16.msra.mxu0 %v543
        %620 = vmatmul.bf16.gmra.mxu0 %v584
        %v621 = vpop.f32.mrf.mxu0
        %v622 = vadd.f32 %v609, %v621
        %v623 = vpop.f32.mrf.mxu0
        %624 = vdwg.mxu0
        %625 = vmatpush.bf16.msra.mxu0 %v526
        %626 = vmatpush.bf16.msra.mxu0 %v524
        %627 = vmatpush.bf16.msra.mxu0 %v522
        %628 = vmatpush.bf16.msra.mxu0 %v520
        %629 = vmatpush.bf16.msra.mxu0 %v518
        %630 = vmatpush.bf16.msra.mxu0 %v516
        %631 = vmatpush.bf16.msra.mxu0 %v514
        %632 = vmatpush.bf16.msra.mxu0 %v512
        %633 = vmatmul.bf16.gmra.mxu0 %v398
        %v634 = vpop.f32.mrf.mxu0
        %v635 = vadd.f32 %v394, %v634
        %v636 = vpop.f32.mrf.mxu0
        %637 = vdwg.mxu0
        %638 = vmatpush.bf16.msra.mxu0 %v542
        %639 = vmatpush.bf16.msra.mxu0 %v540
        %640 = vmatpush.bf16.msra.mxu0 %v538
        %641 = vmatpush.bf16.msra.mxu0 %v536
        %642 = vmatpush.bf16.msra.mxu0 %v534
        %643 = vmatpush.bf16.msra.mxu0 %v532
        %644 = vmatpush.bf16.msra.mxu0 %v530
        %645 = vmatpush.bf16.msra.mxu0 %v528
        %646 = vmatmul.bf16.gmra.mxu0 %v399
        %v647 = vpop.f32.mrf.mxu0
        %v648 = vadd.f32 %v635, %v647
        %v649 = vpop.f32.mrf.mxu0
        %650 = vdwg.mxu0
        %651 = vmatpush.bf16.msra.mxu0 0
        %652 = vmatpush.bf16.msra.mxu0 0
        %653 = vmatpush.bf16.msra.mxu0 0
        %654 = vmatpush.bf16.msra.mxu0 0
        %655 = vmatpush.bf16.msra.mxu0 0
        %656 = vmatpush.bf16.msra.mxu0 0
        %657 = vmatpush.bf16.msra.mxu0 %v546
        %658 = vmatpush.bf16.msra.mxu0 %v544
        %659 = vmatmul.bf16.gmra.mxu0 %v584
        %v660 = vpop.f32.mrf.mxu0
        %v661 = vadd.f32 %v648, %v660
        %v662 = vpop.f32.mrf.mxu0
        %663 = vdwg.mxu0
        %v664 = vtanh.pop %v622
        %v665 = vtanh.pop %v661
        %v668 = vrot.slane %v665, 4
        %vm669 = vcmask 1043456
        %v670 = vsel %vm669, %v664, %v668
        %672 = vst [vmem:[%s349] sm:$0xff] %v670
        %s673 = smul.u32 2, %s16
        %p674 = scmp.lt.s32.totalorder %s673, 3
        %s675 = scalar_select %p674, %s673, 3
        %s676 = smul.addr %s675, 4
        %s677 = scalar_lea.vmem %s3, %s676
        // Predicated region
        $region71: #{_generator_forward.7} parent=65 // pred_check
          %p678 = pneg %p102
        $region72: #{_generator_forward.7} parent=65 // pred_check_branch
          %680 = sbr.rel (%p678) target = $region74
        $region73: #{_generator_forward.7} parent=65 // pred_region
          %s681 = smul.u32 2, %s16
        $region74: #{_generator_forward.7} parent=65 // pred_fallthru
          _
      $region66: #{_generator_forward.7} parent=5 // pred_fallthru
        _
      %p682 = scmp.le.s32.totalorder 2, %s11
      // Predicated region
      $region75: #{_generator_forward.7} parent=5 // pred_check
        %p683 = pneg %p682
      $region76: #{_generator_forward.7} parent=5 // pred_check_branch
        %685 = sbr.rel (%p683) target = $region78
      $region77: #{_generator_forward.7} parent=5 // pred_region
        %s686 = ssub.s32 %s11, 2
        // Predicated region
        $region79: #{_generator_forward.7} parent=77 // pred_check
          %p687 = pneg %p108
        $region80: #{_generator_forward.7} parent=77 // pred_check_branch
          %689 = sbr.rel (%p687) target = $region82
        $region81: #{_generator_forward.7} parent=77 // pred_region
          %s690 = smul.u32 2, %s17
          %p691 = scmp.lt.s32.totalorder %s690, 3
          %s692 = scalar_select %p691, %s690, 3
          %s693 = smul.addr %s692, 4
          %s694 = scalar_lea.vmem %s3, %s693
        $region82: #{_generator_forward.7} parent=77 // pred_fallthru
          _
      $region78: #{_generator_forward.7} parent=5 // pred_fallthru
        _
    $region6: #{_generator_forward.7} parent=1 // loop_footer
      %s15 = sadd.s32 1, %s11
    $region7: #{_generator_forward.7} parent=1 // loop_footer_branch
      %10 = sbr.rel target = $region3
    $region8: #{_generator_forward.7} parent=1 // loop_exit
      _

</llo_original>
